<compile_context>
chip_gen: v6e
topology: v6e:2x2x1
jax: 0.10.0
libtpu: 0.0.40
codegen_flags: <defaults>
</compile_context>

<pallas_src>
import jax
import jax.numpy as jnp
from jax.experimental import pallas as pl
from jax.experimental.pallas import tpu as pltpu


# ---------------------------------------------------------------------------
# kernel bodies
# ---------------------------------------------------------------------------

def _make_band_compute(TH, W, Cin, Cout):
    """Compute one (TH+2)-row halo band of ConvTranspose2d(k=4, s=2, p=1).

    With xp the 1-pixel zero-padded NHWC input, output pixel (2i+a, 2j+b) is
        y = sum_{dh,dw in {0,1}} xp[i+a+dh, j+b+dw, :] @ W[:, :, 3-a-2dh, 3-b-2dw]
    Per row parity `a` the 6 distinct taps (column shift c in {0,1,2}, dh in
    {0,1}, tap index g = 2*c + dh) are packed into a (TH, W, 6*Cin) VMEM patch;
    column parity b uses taps [2*b*Cin, 2*b*Cin + 4*Cin) -> one MXU matmul
    with K = 4*Cin per parity (f32 accumulation).
    """

    def compute(band_ref, band_idx, w_ref, b_ref, o_ref, patch_ref):
        bias2 = b_ref[...]                              # (1, 2*Cout) float32
        for a in range(2):                              # output row parity
            # -- build the 6-tap patch (ref-slice -> ref-slice copies); the
            #    patch slot alternates with `a` so these stores can overlap
            #    the previous phase's MXU work (no WAR hazard).
            for c in range(3):                          # column shift
                for dh in range(2):                     # row shift
                    g = 2 * c + dh
                    patch_ref[a, :, :, pl.ds(g * Cin, Cin)] = band_ref[
                        band_idx, pl.ds(a + dh, TH), pl.ds(c, W), :]
            # -- one MXU matmul per output column parity (K = 4*Cin)
            res = []
            for b in range(2):
                p = patch_ref[a, :, :, pl.ds(2 * b * Cin, 4 * Cin)]
                res.append(jnp.dot(p.reshape(TH * W, 4 * Cin), w_ref[a, b],
                                   preferred_element_type=jnp.float32))
            if Cout % 128 == 0:
                # already lane-aligned: two unmasked sub-range stores; avoids
                # keeping both halves live across the second matmul.
                o_ref[0, a, :, pl.ds(0, Cout)] = (
                    res[0] + bias2[:, :Cout]).astype(o_ref.dtype)
                o_ref[0, a, :, pl.ds(Cout, Cout)] = (
                    res[1] + bias2[:, Cout:]).astype(o_ref.dtype)
            else:
                # lane-dense single full-width store per row parity.
                o_ref[0, a, :, :] = (
                    jnp.concatenate(res, axis=-1) + bias2).astype(o_ref.dtype)

    return compute


def _make_whole_image_kernel(H, W, Cin, Cout):
    """nb == 1: the padded image block arrives via the normal BlockSpec pipeline."""
    compute = _make_band_compute(H, W, Cin, Cout)

    def kernel(xp_ref, w_ref, b_ref, o_ref, patch_ref):
        compute(xp_ref, 0, w_ref, b_ref, o_ref, patch_ref)

    return kernel


def _make_banded_kernel(TH, W, Cin, Cout, ng, nbg):
    """nb > 1: overlapping (TH+2)-row halo bands are DMA'd manually from the
    padded input in HBM (memory_space=pl.ANY) into a double-buffered VMEM
    scratch, prefetching the next band of the same group during compute."""
    compute = _make_band_compute(TH, W, Cin, Cout)

    def kernel(xp_hbm, w_ref, b_ref, o_ref, band_buf, patch_ref, sems):
        bg = pl.program_id(0)                 # batch * band-group ("parallel")
        t = pl.program_id(1)                  # band within group ("arbitrary")
        n = bg // ng
        g = bg % ng
        slot = t % 2

        def band_dma(tt, s):
            return pltpu.make_async_copy(
                xp_hbm.at[n, pl.ds((g * nbg + tt) * TH, TH + 2)],
                band_buf.at[s],
                sems.at[s])

        @pl.when(t == 0)                      # first band of this group
        def _():
            band_dma(t, slot).start()

        @pl.when(t + 1 < nbg)                 # prefetch next band of same group
        def _():
            band_dma(t + 1, 1 - slot).start()

        band_dma(t, slot).wait()
        compute(band_buf, slot, w_ref, b_ref, o_ref, patch_ref)

    return kernel


# ---------------------------------------------------------------------------
# tiling / VMEM accounting
# ---------------------------------------------------------------------------

def _working_set_bytes(d, W, Cin, Cout, csz, osz):
    """Per-step VMEM working set for band height d (incl. double buffers)."""
    in_b = 2 * (d + 2) * (W + 2) * Cin * csz        # halo band (2 buffers)
    out_b = 2 * (d * W * 4 * Cout) * osz            # output block (2 buffers)
    w_b = 2 * (16 * Cin * Cout) * csz               # packed weights (2 buffers)
    patch = 2 * (d * W * 6 * Cin) * csz             # phase-double-buffered patch
    acc = d * W * 2 * Cout * 4                      # live f32 matmul results
    return in_b + out_b + w_b + patch + acc


def _pick_band_rows(H, W, Cin, Cout, csz, osz, budget, max_band_rows, min_bands):
    """Largest band height TH that divides H, keeps TH*W sublane-aligned for
    the compute dtype, fits the VMEM budget and (if possible) yields at least
    `min_bands` bands."""
    if max_band_rows is None:
        max_band_rows = H
    sub = 8 * max(1, 4 // max(1, csz))              # 8 (f32) / 16 (bf16) / 32 (i8)

    def legal(d):
        return H % d == 0 and (d == H or (d * W) % sub == 0)

    legal_ds = [d for d in range(1, H + 1) if legal(d)]
    fit = [d for d in legal_ds if d <= max_band_rows
           and _working_set_bytes(d, W, Cin, Cout, csz, osz) <= budget]
    pref = [d for d in fit if H // d >= min_bands]
    if pref:
        return max(pref)
    if fit:
        return max(fit)
    return min(legal_ds)       # may exceed budget; compiler will flag it loudly


def _vmem_capacity_bytes():
    try:
        cap = int(pltpu.get_tpu_info().vmem_capacity_bytes)
        if cap > 0:
            return cap
    except Exception:
        pass
    return 64 << 20            # conservative fallback (v7x per-core VMEM)


# ---------------------------------------------------------------------------
# wrapper
# ---------------------------------------------------------------------------

def upconv_forward(x_nchw, weight, bias, *, compute_dtype=None, max_band_rows=None):
    """UpConv default forward: ConvTranspose2d(Cin, Cout, 4, stride=2, padding=1).

    x_nchw: (N, Cin, H, W); weight: (Cin, Cout, 4, 4) (PyTorch ConvTranspose2d
    layout); bias: (Cout,). Returns (N, Cout, 2H, 2W).
    compute_dtype: optional MXU dtype (e.g. jnp.bfloat16 on v6e/v7x); results
    are accumulated in f32 and returned in x's dtype."""
    N, Cin, H, W = x_nchw.shape
    Cout = weight.shape[1]
    out_dt = x_nchw.dtype
    cdt = jnp.dtype(compute_dtype) if compute_dtype is not None else jnp.dtype(out_dt)
    csz = cdt.itemsize
    osz = jnp.dtype(out_dt).itemsize

    cap = _vmem_capacity_bytes()
    budget = cap // 2                               # per-step block budget
    min_bands = 2 if N == 1 else 1                  # keep both v7x TCs fed
    TH = _pick_band_rows(H, W, Cin, Cout, csz, osz, budget, max_band_rows, min_bands)
    nb = H // TH
    vmem_limit = int(min(cap - (2 << 20),
                         max(int(cap * 0.75),
                             _working_set_bytes(TH, W, Cin, Cout, csz, osz)
                             + (4 << 20))))

    # ---- layout glue (one fused XLA pass over x): NCHW -> NHWC + 1px zero pad.
    x = jnp.transpose(x_nchw, (0, 2, 3, 1)).astype(cdt)
    xp = jnp.pad(x, ((0, 0), (1, 1), (1, 1), (0, 0)))          # (N, H+2, W+2, Cin)

    # ---- per-phase packed weights, column-shift-major taps (k = 2*dw + dh):
    #      Wf[a, b, k*Cin + ci, co] = weight[ci, co, 3-a-2*(k%2), 3-b-2*(k//2)]
    wt = jnp.asarray(weight)
    Wf = jnp.zeros((2, 2, 4, Cin, Cout), wt.dtype)
    for a in range(2):
        for b in range(2):
            for k in range(4):
                dh, dw = k % 2, k // 2
                Wf = Wf.at[a, b, k].set(wt[:, :, 3 - a - 2 * dh, 3 - b - 2 * dw])
    Wf = Wf.reshape(2, 2, 4 * Cin, Cout).astype(cdt)
    b2 = jnp.tile(jnp.asarray(bias, jnp.float32).reshape(1, Cout), (1, 2))

    cost = pl.CostEstimate(
        flops=int(32 * N * H * W * Cin * Cout),
        transcendentals=0,
        bytes_accessed=int(N * (H + 2 * nb) * (W + 2) * Cin * csz
                           + Wf.size * csz + b2.size * 4
                           + N * 4 * H * W * Cout * osz))

    out_shape = jax.ShapeDtypeStruct((N, 2, H * W, 2 * Cout), out_dt)
    w_blk = (2, 2, 4 * Cin, Cout)

    if nb == 1:
        out = pl.pallas_call(
            _make_whole_image_kernel(H, W, Cin, Cout),
            out_shape=out_shape,
            grid=(N,),
            in_specs=[
                pl.BlockSpec((1, H + 2, W + 2, Cin), lambda n: (n, 0, 0, 0)),
                pl.BlockSpec(w_blk, lambda n: (0, 0, 0, 0)),
                pl.BlockSpec((1, 2 * Cout), lambda n: (0, 0)),
            ],
            out_specs=pl.BlockSpec((1, 2, H * W, 2 * Cout), lambda n: (n, 0, 0, 0)),
            scratch_shapes=[pltpu.VMEM((2, H, W, 6 * Cin), cdt)],
            compiler_params=pltpu.CompilerParams(
                dimension_semantics=("parallel",),
                vmem_limit_bytes=vmem_limit),
            cost_estimate=cost,
        )(xp, Wf, b2)
    else:
        # Split N == 1 into two band groups so the parallel axis reaches both
        # v7x TensorCores; bands inside a group stay sequential for prefetch.
        ng = 2 if (N == 1 and nb % 2 == 0) else 1
        nbg = nb // ng
        out = pl.pallas_call(
            _make_banded_kernel(TH, W, Cin, Cout, ng, nbg),
            out_shape=out_shape,
            grid=(N * ng, nbg),
            in_specs=[
                pl.BlockSpec(memory_space=pl.ANY),       # padded input stays in HBM
                pl.BlockSpec(w_blk, lambda bg, t: (0, 0, 0, 0)),
                pl.BlockSpec((1, 2 * Cout), lambda bg, t: (0, 0)),
            ],
            out_specs=pl.BlockSpec(
                (1, 2, TH * W, 2 * Cout),
                lambda bg, t: (bg // ng, 0, (bg % ng) * nbg + t, 0)),
            scratch_shapes=[
                pltpu.VMEM((2, TH + 2, W + 2, Cin), cdt),    # halo-band double buffer
                pltpu.VMEM((2, TH, W, 6 * Cin), cdt),        # per-phase patch buffers
                pltpu.SemaphoreType.DMA((2,)),
            ],
            compiler_params=pltpu.CompilerParams(
                dimension_semantics=("parallel", "arbitrary"),
                vmem_limit_bytes=vmem_limit),
            cost_estimate=cost,
        )(xp, Wf, b2)

    # out[n, a, i*W + j, b*Cout + c] == y_nhwc[n, 2i+a, 2j+b, c].
    # NCHW kept for module fidelity; NHWC consumers could take `out` directly
    # and skip this extra HBM pass.
    out = out.reshape(N, 2, H, W, 2, Cout)
    out = jnp.transpose(out, (0, 5, 2, 1, 3, 4))             # (N, Cout, H, 2, W, 2)
    return out.reshape(N, Cout, 2 * H, 2 * W)


if __name__ == "__main__":
    N, Cin, Cout, H, W = 2, 4, 8, 16, 16
    key = jax.random.PRNGKey(0)
    kx, kw, kb = jax.random.split(key, 3)

    x = jax.random.normal(kx, (N, Cin, H, W), jnp.float32)
    # deterministic synthetic params, PyTorch ConvTranspose2d weight layout (Cin, Cout, kH, kW)
    bound = 1.0 / (Cin * 4 * 4) ** 0.5
    weight = jax.random.uniform(kw, (Cin, Cout, 4, 4), jnp.float32, -bound, bound)
    bias = jax.random.uniform(kb, (Cout,), jnp.float32, -bound, bound)

    # independent reference (pure JAX): ConvTranspose2d == correlation with
    # lhs_dilation=2, padding=2, flipped/transposed kernel.
    w_oihw = jnp.transpose(weight, (1, 0, 2, 3))[:, :, ::-1, ::-1]
    ref = jax.lax.conv_general_dilated(
        x, w_oihw, window_strides=(1, 1), padding=((2, 2), (2, 2)),
        lhs_dilation=(2, 2), dimension_numbers=("NCHW", "OIHW", "NCHW"))
    ref = ref + bias.reshape(1, Cout, 1, 1)

    # 1) whole-image path (nb == 1, BlockSpec-pipelined input)
    out = jax.block_until_ready(upconv_forward(x, weight, bias))
    assert out.shape == (N, Cout, 2 * H, 2 * W), out.shape
    assert jnp.allclose(out, ref, atol=1e-4, rtol=1e-4), \
        float(jnp.max(jnp.abs(out - ref)))

    # 2) banded path (manual halo-band DMA with next-band prefetch)
    out_b = jax.block_until_ready(upconv_forward(x, weight, bias, max_band_rows=4))
    assert jnp.allclose(out_b, ref, atol=1e-4, rtol=1e-4), \
        float(jnp.max(jnp.abs(out_b - ref)))

    # 3) N == 1 splits into >= 2 band groups (keeps both v7x TensorCores busy)
    out_1 = jax.block_until_ready(upconv_forward(x[:1], weight, bias))
    assert jnp.allclose(out_1, ref[:1], atol=1e-4, rtol=1e-4), \
        float(jnp.max(jnp.abs(out_1 - ref[:1])))

    # 4) bf16 MXU path (f32 accumulation), looser tolerance
    out_bf = jax.block_until_ready(
        upconv_forward(x, weight, bias, compute_dtype=jnp.bfloat16))
    assert jnp.allclose(out_bf, ref, atol=5e-2, rtol=5e-2), \
        float(jnp.max(jnp.abs(out_bf - ref)))

    print("KERNEL_OK")
</pallas_src>

<mosaic_0001>
module attributes {stable_mosaic.version = 11 : i64} {
  func.func @kernel(%arg0: i32, %arg1: memref<1x18x18x4xf32, #tpu.memory_space<vmem>>, %arg2: memref<2x2x16x8xf32, #tpu.memory_space<vmem>>, %arg3: memref<1x16xf32, #tpu.memory_space<vmem>>, %arg4: memref<1x2x256x16xf32, #tpu.memory_space<vmem>>, %arg5: memref<2x16x16x24xf32, #tpu.memory_space<vmem>>) attributes {dimension_semantics = [#tpu.dimension_semantics<parallel>], iteration_bounds = array<i64: 2>, scalar_prefetch = 0 : i64, scratch_operands = 1 : i64, tpu.core_type = #tpu.core_type<tc>, window_params = [{transform_indices = @transform_0, window_bounds = array<i64: 1, 18, 18, 4>}, {pipeline_mode = #tpu.pipeline_mode<synchronous>, transform_indices = @transform_1, window_bounds = array<i64: 2, 2, 16, 8>}, {pipeline_mode = #tpu.pipeline_mode<synchronous>, transform_indices = @transform_2, window_bounds = array<i64: 1, 16>}, {transform_indices = @transform_3, window_bounds = array<i64: 1, 2, 256, 16>}]} {
    %c0 = arith.constant 0 : index
    %c0_0 = arith.constant 0 : index
    %0 = vector.load %arg3[%c0, %c0_0] : memref<1x16xf32, #tpu.memory_space<vmem>>, vector<1x16xf32>
    %c0_1 = arith.constant 0 : index
    %c0_2 = arith.constant 0 : index
    %c0_3 = arith.constant 0 : index
    %c0_4 = arith.constant 0 : index
    %1 = vector.load %arg1[%c0_1, %c0_2, %c0_3, %c0_4] : memref<1x18x18x4xf32, #tpu.memory_space<vmem>>, vector<1x16x16x4xf32>
    %2 = vector.shape_cast %1 : vector<1x16x16x4xf32> to vector<16x16x4xf32>
    %c0_5 = arith.constant 0 : index
    %c0_6 = arith.constant 0 : index
    %c0_7 = arith.constant 0 : index
    %c0_8 = arith.constant 0 : index
    %3 = vector.load %arg5[%c0_5, %c0_6, %c0_7, %c0_8] : memref<2x16x16x24xf32, #tpu.memory_space<vmem>>, vector<1x16x16x4xf32>
    %4 = vector.shape_cast %3 : vector<1x16x16x4xf32> to vector<16x16x4xf32>
    %5 = vector.shape_cast %2 : vector<16x16x4xf32> to vector<1x16x16x4xf32>
    tpu.vector_store %arg5[%c0_5, %c0_6, %c0_7, %c0_8], %5 {strides = array<i32>} : memref<2x16x16x24xf32, #tpu.memory_space<vmem>>, vector<1x16x16x4xf32>,
    %c0_9 = arith.constant 0 : index
    %c1 = arith.constant 1 : index
    %c0_10 = arith.constant 0 : index
    %c0_11 = arith.constant 0 : index
    %6 = vector.load %arg1[%c0_9, %c1, %c0_10, %c0_11] : memref<1x18x18x4xf32, #tpu.memory_space<vmem>>, vector<1x16x16x4xf32>
    %7 = vector.shape_cast %6 : vector<1x16x16x4xf32> to vector<16x16x4xf32>
    %c0_12 = arith.constant 0 : index
    %c0_13 = arith.constant 0 : index
    %c0_14 = arith.constant 0 : index
    %c4 = arith.constant 4 : index
    %8 = vector.load %arg5[%c0_12, %c0_13, %c0_14, %c4] : memref<2x16x16x24xf32, #tpu.memory_space<vmem>>, vector<1x16x16x4xf32>
    %9 = vector.shape_cast %8 : vector<1x16x16x4xf32> to vector<16x16x4xf32>
    %10 = vector.shape_cast %7 : vector<16x16x4xf32> to vector<1x16x16x4xf32>
    tpu.vector_store %arg5[%c0_12, %c0_13, %c0_14, %c4], %10 {strides = array<i32>} : memref<2x16x16x24xf32, #tpu.memory_space<vmem>>, vector<1x16x16x4xf32>,
    %c0_15 = arith.constant 0 : index
    %c0_16 = arith.constant 0 : index
    %c1_17 = arith.constant 1 : index
    %c0_18 = arith.constant 0 : index
    %11 = vector.load %arg1[%c0_15, %c0_16, %c1_17, %c0_18] : memref<1x18x18x4xf32, #tpu.memory_space<vmem>>, vector<1x16x16x4xf32>
    %12 = vector.shape_cast %11 : vector<1x16x16x4xf32> to vector<16x16x4xf32>
    %c0_19 = arith.constant 0 : index
    %c0_20 = arith.constant 0 : index
    %c0_21 = arith.constant 0 : index
    %c8 = arith.constant 8 : index
    %13 = vector.load %arg5[%c0_19, %c0_20, %c0_21, %c8] : memref<2x16x16x24xf32, #tpu.memory_space<vmem>>, vector<1x16x16x4xf32>
    %14 = vector.shape_cast %13 : vector<1x16x16x4xf32> to vector<16x16x4xf32>
    %15 = vector.shape_cast %12 : vector<16x16x4xf32> to vector<1x16x16x4xf32>
    tpu.vector_store %arg5[%c0_19, %c0_20, %c0_21, %c8], %15 {strides = array<i32>} : memref<2x16x16x24xf32, #tpu.memory_space<vmem>>, vector<1x16x16x4xf32>,
    %c0_22 = arith.constant 0 : index
    %c1_23 = arith.constant 1 : index
    %c1_24 = arith.constant 1 : index
    %c0_25 = arith.constant 0 : index
    %16 = vector.load %arg1[%c0_22, %c1_23, %c1_24, %c0_25] : memref<1x18x18x4xf32, #tpu.memory_space<vmem>>, vector<1x16x16x4xf32>
    %17 = vector.shape_cast %16 : vector<1x16x16x4xf32> to vector<16x16x4xf32>
    %c0_26 = arith.constant 0 : index
    %c0_27 = arith.constant 0 : index
    %c0_28 = arith.constant 0 : index
    %c12 = arith.constant 12 : index
    %18 = vector.load %arg5[%c0_26, %c0_27, %c0_28, %c12] : memref<2x16x16x24xf32, #tpu.memory_space<vmem>>, vector<1x16x16x4xf32>
    %19 = vector.shape_cast %18 : vector<1x16x16x4xf32> to vector<16x16x4xf32>
    %20 = vector.shape_cast %17 : vector<16x16x4xf32> to vector<1x16x16x4xf32>
    tpu.vector_store %arg5[%c0_26, %c0_27, %c0_28, %c12], %20 {strides = array<i32>} : memref<2x16x16x24xf32, #tpu.memory_space<vmem>>, vector<1x16x16x4xf32>,
    %c0_29 = arith.constant 0 : index
    %c0_30 = arith.constant 0 : index
    %c2 = arith.constant 2 : index
    %c0_31 = arith.constant 0 : index
    %21 = vector.load %arg1[%c0_29, %c0_30, %c2, %c0_31] : memref<1x18x18x4xf32, #tpu.memory_space<vmem>>, vector<1x16x16x4xf32>
    %22 = vector.shape_cast %21 : vector<1x16x16x4xf32> to vector<16x16x4xf32>
    %c0_32 = arith.constant 0 : index
    %c0_33 = arith.constant 0 : index
    %c0_34 = arith.constant 0 : index
    %c16 = arith.constant 16 : index
    %23 = vector.load %arg5[%c0_32, %c0_33, %c0_34, %c16] : memref<2x16x16x24xf32, #tpu.memory_space<vmem>>, vector<1x16x16x4xf32>
    %24 = vector.shape_cast %23 : vector<1x16x16x4xf32> to vector<16x16x4xf32>
    %25 = vector.shape_cast %22 : vector<16x16x4xf32> to vector<1x16x16x4xf32>
    tpu.vector_store %arg5[%c0_32, %c0_33, %c0_34, %c16], %25 {strides = array<i32>} : memref<2x16x16x24xf32, #tpu.memory_space<vmem>>, vector<1x16x16x4xf32>,
    %c0_35 = arith.constant 0 : index
    %c1_36 = arith.constant 1 : index
    %c2_37 = arith.constant 2 : index
    %c0_38 = arith.constant 0 : index
    %26 = vector.load %arg1[%c0_35, %c1_36, %c2_37, %c0_38] : memref<1x18x18x4xf32, #tpu.memory_space<vmem>>, vector<1x16x16x4xf32>
    %27 = vector.shape_cast %26 : vector<1x16x16x4xf32> to vector<16x16x4xf32>
    %c0_39 = arith.constant 0 : index
    %c0_40 = arith.constant 0 : index
    %c0_41 = arith.constant 0 : index
    %c20 = arith.constant 20 : index
    %28 = vector.load %arg5[%c0_39, %c0_40, %c0_41, %c20] : memref<2x16x16x24xf32, #tpu.memory_space<vmem>>, vector<1x16x16x4xf32>
    %29 = vector.shape_cast %28 : vector<1x16x16x4xf32> to vector<16x16x4xf32>
    %30 = vector.shape_cast %27 : vector<16x16x4xf32> to vector<1x16x16x4xf32>
    tpu.vector_store %arg5[%c0_39, %c0_40, %c0_41, %c20], %30 {strides = array<i32>} : memref<2x16x16x24xf32, #tpu.memory_space<vmem>>, vector<1x16x16x4xf32>,
    %c0_42 = arith.constant 0 : index
    %c0_43 = arith.constant 0 : index
    %c0_44 = arith.constant 0 : index
    %c0_45 = arith.constant 0 : index
    %31 = vector.load %arg5[%c0_42, %c0_43, %c0_44, %c0_45] : memref<2x16x16x24xf32, #tpu.memory_space<vmem>>, vector<1x16x16x16xf32>
    %32 = vector.shape_cast %31 : vector<1x16x16x16xf32> to vector<16x16x16xf32>
    %33 = vector.shape_cast %32 : vector<16x16x16xf32> to vector<256x16xf32>
    %c0_46 = arith.constant 0 : index
    %c0_47 = arith.constant 0 : index
    %c0_48 = arith.constant 0 : index
    %c0_49 = arith.constant 0 : index
    %34 = vector.load %arg2[%c0_46, %c0_47, %c0_48, %c0_49] : memref<2x2x16x8xf32, #tpu.memory_space<vmem>>, vector<1x1x16x8xf32>
    %35 = vector.shape_cast %34 : vector<1x1x16x8xf32> to vector<16x8xf32>
    %cst = arith.constant dense<0.000000e+00> : vector<256x8xf32>
    %36 = tpu.matmul %33, %35, %cst {dimension_numbers = #tpu.dot_dimension_numbers<[1], [0], [0], [1], [0, 0, 1, 1], [], []>} : vector<256x16xf32>, vector<16x8xf32>, vector<256x8xf32> -> vector<256x8xf32>
    %c0_50 = arith.constant 0 : index
    %c0_51 = arith.constant 0 : index
    %c0_52 = arith.constant 0 : index
    %c8_53 = arith.constant 8 : index
    %37 = vector.load %arg5[%c0_50, %c0_51, %c0_52, %c8_53] : memref<2x16x16x24xf32, #tpu.memory_space<vmem>>, vector<1x16x16x16xf32>
    %38 = vector.shape_cast %37 : vector<1x16x16x16xf32> to vector<16x16x16xf32>
    %39 = vector.shape_cast %38 : vector<16x16x16xf32> to vector<256x16xf32>
    %c0_54 = arith.constant 0 : index
    %c1_55 = arith.constant 1 : index
    %c0_56 = arith.constant 0 : index
    %c0_57 = arith.constant 0 : index
    %40 = vector.load %arg2[%c0_54, %c1_55, %c0_56, %c0_57] : memref<2x2x16x8xf32, #tpu.memory_space<vmem>>, vector<1x1x16x8xf32>
    %41 = vector.shape_cast %40 : vector<1x1x16x8xf32> to vector<16x8xf32>
    %cst_58 = arith.constant dense<0.000000e+00> : vector<256x8xf32>
    %42 = tpu.matmul %39, %41, %cst_58 {dimension_numbers = #tpu.dot_dimension_numbers<[1], [0], [0], [1], [0, 0, 1, 1], [], []>} : vector<256x16xf32>, vector<16x8xf32>, vector<256x8xf32> -> vector<256x8xf32>
    %43 = tpu.concatenate %36, %42 in 1 : vector<256x8xf32>, vector<256x8xf32> -> vector<256x16xf32>
    %44 = vector.broadcast %0 : vector<1x16xf32> to vector<256x16xf32>
    %45 = arith.addf %43, %44 : vector<256x16xf32>
    %c0_59 = arith.constant 0 : index
    %c0_60 = arith.constant 0 : index
    %c0_61 = arith.constant 0 : index
    %c0_62 = arith.constant 0 : index
    %46 = vector.load %arg4[%c0_59, %c0_60, %c0_61, %c0_62] : memref<1x2x256x16xf32, #tpu.memory_space<vmem>>, vector<1x1x256x16xf32>
    %47 = vector.shape_cast %46 : vector<1x1x256x16xf32> to vector<256x16xf32>
    %48 = vector.shape_cast %45 : vector<256x16xf32> to vector<1x1x256x16xf32>
    tpu.vector_store %arg4[%c0_59, %c0_60, %c0_61, %c0_62], %48 {strides = array<i32>} : memref<1x2x256x16xf32, #tpu.memory_space<vmem>>, vector<1x1x256x16xf32>,
    %c0_63 = arith.constant 0 : index
    %c1_64 = arith.constant 1 : index
    %c0_65 = arith.constant 0 : index
    %c0_66 = arith.constant 0 : index
    %49 = vector.load %arg1[%c0_63, %c1_64, %c0_65, %c0_66] : memref<1x18x18x4xf32, #tpu.memory_space<vmem>>, vector<1x16x16x4xf32>
    %50 = vector.shape_cast %49 : vector<1x16x16x4xf32> to vector<16x16x4xf32>
    %c1_67 = arith.constant 1 : index
    %c0_68 = arith.constant 0 : index
    %c0_69 = arith.constant 0 : index
    %c0_70 = arith.constant 0 : index
    %51 = vector.load %arg5[%c1_67, %c0_68, %c0_69, %c0_70] : memref<2x16x16x24xf32, #tpu.memory_space<vmem>>, vector<1x16x16x4xf32>
    %52 = vector.shape_cast %51 : vector<1x16x16x4xf32> to vector<16x16x4xf32>
    %53 = vector.shape_cast %50 : vector<16x16x4xf32> to vector<1x16x16x4xf32>
    tpu.vector_store %arg5[%c1_67, %c0_68, %c0_69, %c0_70], %53 {strides = array<i32>} : memref<2x16x16x24xf32, #tpu.memory_space<vmem>>, vector<1x16x16x4xf32>,
    %c0_71 = arith.constant 0 : index
    %c2_72 = arith.constant 2 : index
    %c0_73 = arith.constant 0 : index
    %c0_74 = arith.constant 0 : index
    %54 = vector.load %arg1[%c0_71, %c2_72, %c0_73, %c0_74] : memref<1x18x18x4xf32, #tpu.memory_space<vmem>>, vector<1x16x16x4xf32>
    %55 = vector.shape_cast %54 : vector<1x16x16x4xf32> to vector<16x16x4xf32>
    %c1_75 = arith.constant 1 : index
    %c0_76 = arith.constant 0 : index
    %c0_77 = arith.constant 0 : index
    %c4_78 = arith.constant 4 : index
    %56 = vector.load %arg5[%c1_75, %c0_76, %c0_77, %c4_78] : memref<2x16x16x24xf32, #tpu.memory_space<vmem>>, vector<1x16x16x4xf32>
    %57 = vector.shape_cast %56 : vector<1x16x16x4xf32> to vector<16x16x4xf32>
    %58 = vector.shape_cast %55 : vector<16x16x4xf32> to vector<1x16x16x4xf32>
    tpu.vector_store %arg5[%c1_75, %c0_76, %c0_77, %c4_78], %58 {strides = array<i32>} : memref<2x16x16x24xf32, #tpu.memory_space<vmem>>, vector<1x16x16x4xf32>,
    %c0_79 = arith.constant 0 : index
    %c1_80 = arith.constant 1 : index
    %c1_81 = arith.constant 1 : index
    %c0_82 = arith.constant 0 : index
    %59 = vector.load %arg1[%c0_79, %c1_80, %c1_81, %c0_82] : memref<1x18x18x4xf32, #tpu.memory_space<vmem>>, vector<1x16x16x4xf32>
    %60 = vector.shape_cast %59 : vector<1x16x16x4xf32> to vector<16x16x4xf32>
    %c1_83 = arith.constant 1 : index
    %c0_84 = arith.constant 0 : index
    %c0_85 = arith.constant 0 : index
    %c8_86 = arith.constant 8 : index
    %61 = vector.load %arg5[%c1_83, %c0_84, %c0_85, %c8_86] : memref<2x16x16x24xf32, #tpu.memory_space<vmem>>, vector<1x16x16x4xf32>
    %62 = vector.shape_cast %61 : vector<1x16x16x4xf32> to vector<16x16x4xf32>
    %63 = vector.shape_cast %60 : vector<16x16x4xf32> to vector<1x16x16x4xf32>
    tpu.vector_store %arg5[%c1_83, %c0_84, %c0_85, %c8_86], %63 {strides = array<i32>} : memref<2x16x16x24xf32, #tpu.memory_space<vmem>>, vector<1x16x16x4xf32>,
    %c0_87 = arith.constant 0 : index
    %c2_88 = arith.constant 2 : index
    %c1_89 = arith.constant 1 : index
    %c0_90 = arith.constant 0 : index
    %64 = vector.load %arg1[%c0_87, %c2_88, %c1_89, %c0_90] : memref<1x18x18x4xf32, #tpu.memory_space<vmem>>, vector<1x16x16x4xf32>
    %65 = vector.shape_cast %64 : vector<1x16x16x4xf32> to vector<16x16x4xf32>
    %c1_91 = arith.constant 1 : index
    %c0_92 = arith.constant 0 : index
    %c0_93 = arith.constant 0 : index
    %c12_94 = arith.constant 12 : index
    %66 = vector.load %arg5[%c1_91, %c0_92, %c0_93, %c12_94] : memref<2x16x16x24xf32, #tpu.memory_space<vmem>>, vector<1x16x16x4xf32>
    %67 = vector.shape_cast %66 : vector<1x16x16x4xf32> to vector<16x16x4xf32>
    %68 = vector.shape_cast %65 : vector<16x16x4xf32> to vector<1x16x16x4xf32>
    tpu.vector_store %arg5[%c1_91, %c0_92, %c0_93, %c12_94], %68 {strides = array<i32>} : memref<2x16x16x24xf32, #tpu.memory_space<vmem>>, vector<1x16x16x4xf32>,
    %c0_95 = arith.constant 0 : index
    %c1_96 = arith.constant 1 : index
    %c2_97 = arith.constant 2 : index
    %c0_98 = arith.constant 0 : index
    %69 = vector.load %arg1[%c0_95, %c1_96, %c2_97, %c0_98] : memref<1x18x18x4xf32, #tpu.memory_space<vmem>>, vector<1x16x16x4xf32>
    %70 = vector.shape_cast %69 : vector<1x16x16x4xf32> to vector<16x16x4xf32>
    %c1_99 = arith.constant 1 : index
    %c0_100 = arith.constant 0 : index
    %c0_101 = arith.constant 0 : index
    %c16_102 = arith.constant 16 : index
    %71 = vector.load %arg5[%c1_99, %c0_100, %c0_101, %c16_102] : memref<2x16x16x24xf32, #tpu.memory_space<vmem>>, vector<1x16x16x4xf32>
    %72 = vector.shape_cast %71 : vector<1x16x16x4xf32> to vector<16x16x4xf32>
    %73 = vector.shape_cast %70 : vector<16x16x4xf32> to vector<1x16x16x4xf32>
    tpu.vector_store %arg5[%c1_99, %c0_100, %c0_101, %c16_102], %73 {strides = array<i32>} : memref<2x16x16x24xf32, #tpu.memory_space<vmem>>, vector<1x16x16x4xf32>,
    %c0_103 = arith.constant 0 : index
    %c2_104 = arith.constant 2 : index
    %c2_105 = arith.constant 2 : index
    %c0_106 = arith.constant 0 : index
    %74 = vector.load %arg1[%c0_103, %c2_104, %c2_105, %c0_106] : memref<1x18x18x4xf32, #tpu.memory_space<vmem>>, vector<1x16x16x4xf32>
    %75 = vector.shape_cast %74 : vector<1x16x16x4xf32> to vector<16x16x4xf32>
    %c1_107 = arith.constant 1 : index
    %c0_108 = arith.constant 0 : index
    %c0_109 = arith.constant 0 : index
    %c20_110 = arith.constant 20 : index
    %76 = vector.load %arg5[%c1_107, %c0_108, %c0_109, %c20_110] : memref<2x16x16x24xf32, #tpu.memory_space<vmem>>, vector<1x16x16x4xf32>
    %77 = vector.shape_cast %76 : vector<1x16x16x4xf32> to vector<16x16x4xf32>
    %78 = vector.shape_cast %75 : vector<16x16x4xf32> to vector<1x16x16x4xf32>
    tpu.vector_store %arg5[%c1_107, %c0_108, %c0_109, %c20_110], %78 {strides = array<i32>} : memref<2x16x16x24xf32, #tpu.memory_space<vmem>>, vector<1x16x16x4xf32>,
    %c1_111 = arith.constant 1 : index
    %c0_112 = arith.constant 0 : index
    %c0_113 = arith.constant 0 : index
    %c0_114 = arith.constant 0 : index
    %79 = vector.load %arg5[%c1_111, %c0_112, %c0_113, %c0_114] : memref<2x16x16x24xf32, #tpu.memory_space<vmem>>, vector<1x16x16x16xf32>
    %80 = vector.shape_cast %79 : vector<1x16x16x16xf32> to vector<16x16x16xf32>
    %81 = vector.shape_cast %80 : vector<16x16x16xf32> to vector<256x16xf32>
    %c1_115 = arith.constant 1 : index
    %c0_116 = arith.constant 0 : index
    %c0_117 = arith.constant 0 : index
    %c0_118 = arith.constant 0 : index
    %82 = vector.load %arg2[%c1_115, %c0_116, %c0_117, %c0_118] : memref<2x2x16x8xf32, #tpu.memory_space<vmem>>, vector<1x1x16x8xf32>
    %83 = vector.shape_cast %82 : vector<1x1x16x8xf32> to vector<16x8xf32>
    %cst_119 = arith.constant dense<0.000000e+00> : vector<256x8xf32>
    %84 = tpu.matmul %81, %83, %cst_119 {dimension_numbers = #tpu.dot_dimension_numbers<[1], [0], [0], [1], [0, 0, 1, 1], [], []>} : vector<256x16xf32>, vector<16x8xf32>, vector<256x8xf32> -> vector<256x8xf32>
    %c1_120 = arith.constant 1 : index
    %c0_121 = arith.constant 0 : index
    %c0_122 = arith.constant 0 : index
    %c8_123 = arith.constant 8 : index
    %85 = vector.load %arg5[%c1_120, %c0_121, %c0_122, %c8_123] : memref<2x16x16x24xf32, #tpu.memory_space<vmem>>, vector<1x16x16x16xf32>
    %86 = vector.shape_cast %85 : vector<1x16x16x16xf32> to vector<16x16x16xf32>
    %87 = vector.shape_cast %86 : vector<16x16x16xf32> to vector<256x16xf32>
    %c1_124 = arith.constant 1 : index
    %c1_125 = arith.constant 1 : index
    %c0_126 = arith.constant 0 : index
    %c0_127 = arith.constant 0 : index
    %88 = vector.load %arg2[%c1_124, %c1_125, %c0_126, %c0_127] : memref<2x2x16x8xf32, #tpu.memory_space<vmem>>, vector<1x1x16x8xf32>
    %89 = vector.shape_cast %88 : vector<1x1x16x8xf32> to vector<16x8xf32>
    %cst_128 = arith.constant dense<0.000000e+00> : vector<256x8xf32>
    %90 = tpu.matmul %87, %89, %cst_128 {dimension_numbers = #tpu.dot_dimension_numbers<[1], [0], [0], [1], [0, 0, 1, 1], [], []>} : vector<256x16xf32>, vector<16x8xf32>, vector<256x8xf32> -> vector<256x8xf32>
    %91 = tpu.concatenate %84, %90 in 1 : vector<256x8xf32>, vector<256x8xf32> -> vector<256x16xf32>
    %92 = vector.broadcast %0 : vector<1x16xf32> to vector<256x16xf32>
    %93 = arith.addf %91, %92 : vector<256x16xf32>
    %c0_129 = arith.constant 0 : index
    %c1_130 = arith.constant 1 : index
    %c0_131 = arith.constant 0 : index
    %c0_132 = arith.constant 0 : index
    %94 = vector.load %arg4[%c0_129, %c1_130, %c0_131, %c0_132] : memref<1x2x256x16xf32, #tpu.memory_space<vmem>>, vector<1x1x256x16xf32>
    %95 = vector.shape_cast %94 : vector<1x1x256x16xf32> to vector<256x16xf32>
    %96 = vector.shape_cast %93 : vector<256x16xf32> to vector<1x1x256x16xf32>
    tpu.vector_store %arg4[%c0_129, %c1_130, %c0_131, %c0_132], %96 {strides = array<i32>} : memref<1x2x256x16xf32, #tpu.memory_space<vmem>>, vector<1x1x256x16xf32>,
    return
  }
  func.func @transform_0(%arg0: i32) -> (i32, i32, i32, i32) {
    %c0_i32 = arith.constant 0 : i32
    %c0_i32_0 = arith.constant 0 : i32
    %c0_i32_1 = arith.constant 0 : i32
    %c0_i32_2 = arith.constant 0 : i32
    return %arg0, %c0_i32, %c0_i32_0, %c0_i32_1 : i32, i32, i32, i32
  }
  func.func @transform_1(%arg0: i32) -> (i32, i32, i32, i32) {
    %c0_i32 = arith.constant 0 : i32
    %c0_i32_0 = arith.constant 0 : i32
    %c0_i32_1 = arith.constant 0 : i32
    %c0_i32_2 = arith.constant 0 : i32
    %c0_i32_3 = arith.constant 0 : i32
    return %c0_i32, %c0_i32_0, %c0_i32_1, %c0_i32_2 : i32, i32, i32, i32
  }
  func.func @transform_2(%arg0: i32) -> (i32, i32) {
    %c0_i32 = arith.constant 0 : i32
    %c0_i32_0 = arith.constant 0 : i32
    %c0_i32_1 = arith.constant 0 : i32
    return %c0_i32, %c0_i32_0 : i32, i32
  }
  func.func @transform_3(%arg0: i32) -> (i32, i32, i32, i32) {
    %c0_i32 = arith.constant 0 : i32
    %c0_i32_0 = arith.constant 0 : i32
    %c0_i32_1 = arith.constant 0 : i32
    %c0_i32_2 = arith.constant 0 : i32
    return %arg0, %c0_i32, %c0_i32_0, %c0_i32_1 : i32, i32, i32, i32
  }
}

</mosaic_0001>

<llo_original>
// kernel: tpu_custom_call.1
$region0: #{tpu_custom_call.1}
  #allocation0 [shape = 'u32[]', space=smem, size = 0x4, offset = 0x4, fixed_abs, tag = 'smem constant byte address 0x4 - core index']
  #allocation1 [shape = 'u32[144,128]{1,0:T(1,128)}', space=vmem, size = 0x12000, scoped, tag = 'internal scratch']
  #allocation2 [shape = 'f32[2,16,16,24]{3,2,1,0:T(8,128)}', space=vmem, size = 0x40000, scoped, tag = 'scratch operand']
  %s0 = inlined_call_operand.vmem [shape: f32[2,18,18,4], index: 0, kind: input, shape index: {}]
  %s1 = inlined_call_operand.vmem [shape: f32[2,2,16,8], index: 1, kind: input, shape index: {}]
  %s2 = inlined_call_operand.vmem [shape: f32[1,16], index: 2, kind: input, shape index: {}]
  %s3 = inlined_call_operand.vmem [shape: f32[2,2,256,16], index: 3, kind: output, shape index: {}]
  %s4 = sld [smem:[#allocation0]]
  $region45: #{tpu_custom_call.1} parent=0
    _
  %s6 = ssub.s32 1, %s4
  %s7 = scalar_select 0, %s6, %s4
  loop: start=0, step=1, limit=4
  $region2: #{tpu_custom_call.1} parent=0 // loop_pre_header
    _
  $region3: #{tpu_custom_call.1} parent=0 // loop_header
    %s9 = sphi 0, %s13
    %p10 = scmp.ge.s32.totalorder %s9, 4
    %s19 = sphi 0, %s21
    %s22 = sphi 0, %s19
    %s23 = sphi 0, %s22
    %s39 = sphi 0, %s23
    %s43 = sphi 0, %s43
    %s45 = sphi 0, %s43
    %s46 = sphi 0, %s45
    %s60 = sphi 0, %s46
    %s64 = sphi 0, %s64
    %s66 = sphi 0, %s64
    %s67 = sphi 0, %s66
    %s81 = sphi 0, %s67
    %s87 = sphi 0, %s89
    %s90 = sphi 0, %s87
    %s91 = sphi 0, %s90
    %s107 = sphi 0, %s91
  $region4: #{tpu_custom_call.1} parent=0 // loop_header_branch
    %12 = sbr.rel (%p10) target = $region8
  $region5: #{tpu_custom_call.1} parent=0 // loop_body
    %s14 = ssub.s32 %s9, 1
    %s15 = ssub.s32 %s9, 2
    %s16 = sadd.s32 %s9, 1
    %s17 = ssub.s32 %s9, %s16
    %p18 = scmp.eq.s32.totalorder %s17, 0
    %s20 = sadd.s32 %s19, 1
    %s21 = scalar_select %p18, %s19, %s20
    %p24 = pneg %p18
    %p25 = scmp.eq.s32.totalorder %s9, 1
    %p26 = por %p24, %p25
    %p27 = scmp.ne.s32.totalorder %s19, %s22
    %p28 = scmp.eq.s32.totalorder %s9, 0
    %p29 = por %p27, %p28
    %p30 = scmp.ne.s32.totalorder %s19, %s22
    %p31 = scmp.eq.s32.totalorder %s14, 1
    %p32 = por %p30, %p31
    %p33 = scmp.ne.s32.totalorder %s22, %s23
    %p34 = scmp.eq.s32.totalorder %s14, 0
    %p35 = por %p33, %p34
    %p36 = scmp.ne.s32.totalorder %s22, %s23
    %p37 = scmp.eq.s32.totalorder %s15, 1
    %p38 = por %p36, %p37
    %p40 = scmp.ne.s32.totalorder %s23, %s39
    %p41 = scmp.eq.s32.totalorder %s15, 0
    %p42 = por %p40, %p41
    %s44 = sadd.s32 %s43, 1
    %p47 = scmp.eq.s32.totalorder %s9, 1
    %p48 = scmp.ne.s32.totalorder %s43, %s45
    %p49 = scmp.eq.s32.totalorder %s9, 0
    %p50 = por %p48, %p49
    %p51 = scmp.ne.s32.totalorder %s43, %s45
    %p52 = scmp.eq.s32.totalorder %s14, 1
    %p53 = por %p51, %p52
    %p54 = scmp.ne.s32.totalorder %s45, %s46
    %p55 = scmp.eq.s32.totalorder %s14, 0
    %p56 = por %p54, %p55
    %p57 = scmp.ne.s32.totalorder %s45, %s46
    %p58 = scmp.eq.s32.totalorder %s15, 1
    %p59 = por %p57, %p58
    %p61 = scmp.ne.s32.totalorder %s46, %s60
    %p62 = scmp.eq.s32.totalorder %s15, 0
    %p63 = por %p61, %p62
    %s65 = sadd.s32 %s64, 1
    %p68 = scmp.eq.s32.totalorder %s9, 1
    %p69 = scmp.ne.s32.totalorder %s64, %s66
    %p70 = scmp.eq.s32.totalorder %s9, 0
    %p71 = por %p69, %p70
    %p72 = scmp.ne.s32.totalorder %s64, %s66
    %p73 = scmp.eq.s32.totalorder %s14, 1
    %p74 = por %p72, %p73
    %p75 = scmp.ne.s32.totalorder %s66, %s67
    %p76 = scmp.eq.s32.totalorder %s14, 0
    %p77 = por %p75, %p76
    %p78 = scmp.ne.s32.totalorder %s66, %s67
    %p79 = scmp.eq.s32.totalorder %s15, 1
    %p80 = por %p78, %p79
    %p82 = scmp.ne.s32.totalorder %s67, %s81
    %p83 = scmp.eq.s32.totalorder %s15, 0
    %p84 = por %p82, %p83
    %s85 = ssub.s32 %s9, %s16
    %p86 = scmp.eq.s32.totalorder %s85, 0
    %s88 = sadd.s32 %s87, 1
    %s89 = scalar_select %p86, %s87, %s88
    %p92 = pneg %p86
    %p93 = scmp.eq.s32.totalorder %s9, 1
    %p94 = por %p92, %p93
    %p95 = scmp.ne.s32.totalorder %s87, %s90
    %p96 = scmp.eq.s32.totalorder %s9, 0
    %p97 = por %p95, %p96
    %p98 = scmp.ne.s32.totalorder %s87, %s90
    %p99 = scmp.eq.s32.totalorder %s14, 1
    %p100 = por %p98, %p99
    %p101 = scmp.ne.s32.totalorder %s90, %s91
    %p102 = scmp.eq.s32.totalorder %s14, 0
    %p103 = por %p101, %p102
    %p104 = scmp.ne.s32.totalorder %s90, %s91
    %p105 = scmp.eq.s32.totalorder %s15, 1
    %p106 = por %p104, %p105
    %p108 = scmp.ne.s32.totalorder %s91, %s107
    %p109 = scmp.eq.s32.totalorder %s15, 0
    %p110 = por %p108, %p109
    %p111 = scmp.le.s32.totalorder 1, %s9
    %p112 = scmp.lt.s32.totalorder %s9, 3
    %p113 = pnand %p111, %p112
    %p114 = pneg %p113
    // Predicated region
    $region9: #{tpu_custom_call.1} parent=5 // pred_check
      _
    $region10: #{tpu_custom_call.1} parent=5 // pred_check_branch
      %116 = sbr.rel (%p113) target = $region12
    $region11: #{tpu_custom_call.1} parent=5 // pred_region
      %s117 = ssub.s32 %s9, 1
      // Predicated region
      $region13: #{tpu_custom_call.1} parent=11 // pred_check
        %p118 = pneg %p56
      $region14: #{tpu_custom_call.1} parent=11 // pred_check_branch
        %120 = sbr.rel (%p118) target = $region16
      $region15: #{tpu_custom_call.1} parent=11 // pred_region
        _
      $region16: #{tpu_custom_call.1} parent=11 // pred_fallthru
        _
      // Predicated region
      $region17: #{tpu_custom_call.1} parent=11 // pred_check
        %p121 = pneg %p77
      $region18: #{tpu_custom_call.1} parent=11 // pred_check_branch
        %123 = sbr.rel (%p121) target = $region20
      $region19: #{tpu_custom_call.1} parent=11 // pred_region
        _
      $region20: #{tpu_custom_call.1} parent=11 // pred_fallthru
        _
    $region12: #{tpu_custom_call.1} parent=5 // pred_fallthru
      _
    %p124 = scmp.lt.s32.totalorder %s9, 2
    // Predicated region
    $region21: #{tpu_custom_call.1} parent=5 // pred_check
      %p125 = pneg %p124
    $region22: #{tpu_custom_call.1} parent=5 // pred_check_branch
      %127 = sbr.rel (%p125) target = $region24
    $region23: #{tpu_custom_call.1} parent=5 // pred_region
      // Predicated region
      $region25: #{tpu_custom_call.1} parent=23 // pred_check
        %p128 = pneg %p29
      $region26: #{tpu_custom_call.1} parent=23 // pred_check_branch
        %130 = sbr.rel (%p128) target = $region28
      $region27: #{tpu_custom_call.1} parent=23 // pred_region
        %p131 = scmp.lt.s32.totalorder %s9, 1
        %s132 = scalar_select %p131, %s9, 1
        %s133 = smul.addr %s132, 54
        %s134 = smul.addr %s133, 8
        %s135 = scalar_lea.vmem %s0, %s134
      $region28: #{tpu_custom_call.1} parent=23 // pred_fallthru
        _
    $region24: #{tpu_custom_call.1} parent=5 // pred_fallthru
      _
    %p136 = scmp.le.s32.totalorder 1, %s9
    %p137 = scmp.lt.s32.totalorder %s9, 3
    %p138 = pnand %p136, %p137
    %p139 = pneg %p138
    // Predicated region
    $region29: #{tpu_custom_call.1} parent=5 // pred_check
      _
    $region30: #{tpu_custom_call.1} parent=5 // pred_check_branch
      %141 = sbr.rel (%p138) target = $region32
    $region31: #{tpu_custom_call.1} parent=5 // pred_region
      %s142 = ssub.s32 %s9, 1
      %p143 = scmp.lt.s32.totalorder %s14, 1
      %s144 = scalar_select %p143, %s14, 1
      %s145 = smul.addr %s144, 54
      %s146 = smul.addr %s145, 8
      %s147 = scalar_lea.vmem %s0, %s146
      %p148 = pneg %p35
      %p149 = pneg %p32
      %p150 = pneg %p56
      %p151 = pneg %p53
      %p152 = pneg %p77
      %p153 = pneg %p74
      %p154 = pneg %p103
      %p155 = pneg %p100
      %p156 = scmp.lt.s32.totalorder %s14, 1
      %s157 = scalar_select %p156, %s14, 1
      %s158 = smul.addr %s157, 64
      %s159 = smul.addr %s158, 8
      %s160 = scalar_lea.vmem %s3, %s159
      %p161 = scmp.lt.s32.totalorder %s14, 1
      %s162 = scalar_select %p161, %s14, 1
      %s163 = smul.addr %s162, 54
      %s164 = smul.addr %s163, 8
      %s165 = scalar_lea.vmem %s0, %s164
      %p166 = scmp.lt.s32.totalorder %s14, 1
      %s167 = scalar_select %p166, %s14, 1
      %s168 = smul.addr %s167, 64
      %s169 = smul.addr %s168, 8
      %s170 = scalar_lea.vmem %s3, %s169
      %v171 = vld [vmem:[%s2] sm:$0x1]
      %v172 = vld [vmem:[%s165] sm:$0xff]
      %v173 = vld [vmem:[%s165 + $0x8] sm:$0xff]
      %v174 = vld [vmem:[%s165 + $0x18] sm:$0xff]
      %v175 = vld [vmem:[%s165 + $0x20] sm:$0xff]
      %v176 = vld [vmem:[%s165 + $0x30] sm:$0xff]
      %v177 = vld [vmem:[%s165 + $0x38] sm:$0xff]
      %v178 = vld [vmem:[%s165 + $0x48] sm:$0xff]
      %v179 = vld [vmem:[%s165 + $0x50] sm:$0xff]
      %v180 = vld [vmem:[%s165 + $0x60] sm:$0xff]
      %v181 = vld [vmem:[%s165 + $0x68] sm:$0xff]
      %v182 = vld [vmem:[%s165 + $0x78] sm:$0xff]
      %v183 = vld [vmem:[%s165 + $0x80] sm:$0xff]
      %v184 = vld [vmem:[%s165 + $0x90] sm:$0xff]
      %v185 = vld [vmem:[%s165 + $0x98] sm:$0xff]
      %v186 = vld [vmem:[%s165 + $0xa8] sm:$0xff]
      %v187 = vld [vmem:[%s165 + $0xb0] sm:$0xff]
      %v188 = vld [vmem:[%s165 + $0xc0] sm:$0xff]
      %v189 = vld [vmem:[%s165 + $0xc8] sm:$0xff]
      %v190 = vld [vmem:[%s165 + $0xd8] sm:$0xff]
      %v191 = vld [vmem:[%s165 + $0xe0] sm:$0xff]
      %v192 = vld [vmem:[%s165 + $0xf0] sm:$0xff]
      %v193 = vld [vmem:[%s165 + $0xf8] sm:$0xff]
      %v194 = vld [vmem:[%s165 + $0x108] sm:$0xff]
      %v195 = vld [vmem:[%s165 + $0x110] sm:$0xff]
      %v196 = vld [vmem:[%s165 + $0x120] sm:$0xff]
      %v197 = vld [vmem:[%s165 + $0x128] sm:$0xff]
      %v198 = vld [vmem:[%s165 + $0x138] sm:$0xff]
      %v199 = vld [vmem:[%s165 + $0x140] sm:$0xff]
      %v200 = vld [vmem:[%s165 + $0x150] sm:$0xff]
      %v201 = vld [vmem:[%s165 + $0x158] sm:$0xff]
      %v202 = vld [vmem:[%s165 + $0x168] sm:$0xff]
      %v203 = vld [vmem:[%s165 + $0x170] sm:$0xff]
      %vm204 = vcmask 31744
      %205 = vst.msk [vmem:[#allocation2] sm:$0xff] %vm204, %v172
      %206 = vst.msk [vmem:[#allocation2 + $0x8] sm:$0xff] %vm204, %v173
      %207 = vst.msk [vmem:[#allocation2 + $0x10] sm:$0xff] %vm204, %v174
      %208 = vst.msk [vmem:[#allocation2 + $0x18] sm:$0xff] %vm204, %v175
      %209 = vst.msk [vmem:[#allocation2 + $0x20] sm:$0xff] %vm204, %v176
      %210 = vst.msk [vmem:[#allocation2 + $0x28] sm:$0xff] %vm204, %v177
      %211 = vst.msk [vmem:[#allocation2 + $0x30] sm:$0xff] %vm204, %v178
      %212 = vst.msk [vmem:[#allocation2 + $0x38] sm:$0xff] %vm204, %v179
      %213 = vst.msk [vmem:[#allocation2 + $0x40] sm:$0xff] %vm204, %v180
      %214 = vst.msk [vmem:[#allocation2 + $0x48] sm:$0xff] %vm204, %v181
      %215 = vst.msk [vmem:[#allocation2 + $0x50] sm:$0xff] %vm204, %v182
      %216 = vst.msk [vmem:[#allocation2 + $0x58] sm:$0xff] %vm204, %v183
      %217 = vst.msk [vmem:[#allocation2 + $0x60] sm:$0xff] %vm204, %v184
      %218 = vst.msk [vmem:[#allocation2 + $0x68] sm:$0xff] %vm204, %v185
      %219 = vst.msk [vmem:[#allocation2 + $0x70] sm:$0xff] %vm204, %v186
      %220 = vst.msk [vmem:[#allocation2 + $0x78] sm:$0xff] %vm204, %v187
      %221 = vst.msk [vmem:[#allocation2 + $0x80] sm:$0xff] %vm204, %v188
      %222 = vst.msk [vmem:[#allocation2 + $0x88] sm:$0xff] %vm204, %v189
      %223 = vst.msk [vmem:[#allocation2 + $0x90] sm:$0xff] %vm204, %v190
      %224 = vst.msk [vmem:[#allocation2 + $0x98] sm:$0xff] %vm204, %v191
      %225 = vst.msk [vmem:[#allocation2 + $0xa0] sm:$0xff] %vm204, %v192
      %226 = vst.msk [vmem:[#allocation2 + $0xa8] sm:$0xff] %vm204, %v193
      %227 = vst.msk [vmem:[#allocation2 + $0xb0] sm:$0xff] %vm204, %v194
      %228 = vst.msk [vmem:[#allocation2 + $0xb8] sm:$0xff] %vm204, %v195
      %229 = vst.msk [vmem:[#allocation2 + $0xc0] sm:$0xff] %vm204, %v196
      %230 = vst.msk [vmem:[#allocation2 + $0xc8] sm:$0xff] %vm204, %v197
      %231 = vst.msk [vmem:[#allocation2 + $0xd0] sm:$0xff] %vm204, %v198
      %232 = vst.msk [vmem:[#allocation2 + $0xd8] sm:$0xff] %vm204, %v199
      %233 = vst.msk [vmem:[#allocation2 + $0xe0] sm:$0xff] %vm204, %v200
      %234 = vst.msk [vmem:[#allocation2 + $0xe8] sm:$0xff] %vm204, %v201
      %235 = vst.msk [vmem:[#allocation2 + $0xf0] sm:$0xff] %vm204, %v202
      %236 = vst.msk [vmem:[#allocation2 + $0xf8] sm:$0xff] %vm204, %v203
      %s237 = scalar_lea.vmem %s165, 24
      %v238 = vld [vmem:[%s237] sm:$0xff]
      %v239 = vld [vmem:[%s237 + $0x8] sm:$0xff]
      %v240 = vld [vmem:[%s237 + $0x18] sm:$0xff]
      %v241 = vld [vmem:[%s237 + $0x20] sm:$0xff]
      %v242 = vld [vmem:[%s237 + $0x30] sm:$0xff]
      %v243 = vld [vmem:[%s237 + $0x38] sm:$0xff]
      %v244 = vld [vmem:[%s237 + $0x48] sm:$0xff]
      %v245 = vld [vmem:[%s237 + $0x50] sm:$0xff]
      %v246 = vld [vmem:[%s237 + $0x60] sm:$0xff]
      %v247 = vld [vmem:[%s237 + $0x68] sm:$0xff]
      %v248 = vld [vmem:[%s237 + $0x78] sm:$0xff]
      %v249 = vld [vmem:[%s237 + $0x80] sm:$0xff]
      %v250 = vld [vmem:[%s237 + $0x90] sm:$0xff]
      %v251 = vld [vmem:[%s237 + $0x98] sm:$0xff]
      %v252 = vld [vmem:[%s237 + $0xa8] sm:$0xff]
      %v253 = vld [vmem:[%s237 + $0xb0] sm:$0xff]
      %v254 = vld [vmem:[%s237 + $0xc0] sm:$0xff]
      %v255 = vld [vmem:[%s237 + $0xc8] sm:$0xff]
      %v256 = vld [vmem:[%s237 + $0xd8] sm:$0xff]
      %v257 = vld [vmem:[%s237 + $0xe0] sm:$0xff]
      %v258 = vld [vmem:[%s237 + $0xf0] sm:$0xff]
      %v259 = vld [vmem:[%s237 + $0xf8] sm:$0xff]
      %v260 = vld [vmem:[%s237 + $0x108] sm:$0xff]
      %v261 = vld [vmem:[%s237 + $0x110] sm:$0xff]
      %v262 = vld [vmem:[%s237 + $0x120] sm:$0xff]
      %v263 = vld [vmem:[%s237 + $0x128] sm:$0xff]
      %v264 = vld [vmem:[%s237 + $0x138] sm:$0xff]
      %v265 = vld [vmem:[%s237 + $0x140] sm:$0xff]
      %v266 = vld [vmem:[%s237 + $0x150] sm:$0xff]
      %v267 = vld [vmem:[%s237 + $0x158] sm:$0xff]
      %v268 = vld [vmem:[%s237 + $0x168] sm:$0xff]
      %v269 = vld [vmem:[%s237 + $0x170] sm:$0xff]
      %302 = vrot.lane.b32.xlu0 %v238, 4
      %v303 = vpop.permute.xlu0 %302
      %304 = vrot.lane.b32.xlu0 %v239, 4
      %v305 = vpop.permute.xlu0 %304
      %306 = vrot.lane.b32.xlu0 %v240, 4
      %v307 = vpop.permute.xlu0 %306
      %308 = vrot.lane.b32.xlu0 %v241, 4
      %v309 = vpop.permute.xlu0 %308
      %310 = vrot.lane.b32.xlu0 %v242, 4
      %v311 = vpop.permute.xlu0 %310
      %312 = vrot.lane.b32.xlu0 %v243, 4
      %v313 = vpop.permute.xlu0 %312
      %314 = vrot.lane.b32.xlu0 %v244, 4
      %v315 = vpop.permute.xlu0 %314
      %316 = vrot.lane.b32.xlu0 %v245, 4
      %v317 = vpop.permute.xlu0 %316
      %318 = vrot.lane.b32.xlu0 %v246, 4
      %v319 = vpop.permute.xlu0 %318
      %320 = vrot.lane.b32.xlu0 %v247, 4
      %v321 = vpop.permute.xlu0 %320
      %322 = vrot.lane.b32.xlu0 %v248, 4
      %v323 = vpop.permute.xlu0 %322
      %324 = vrot.lane.b32.xlu0 %v249, 4
      %v325 = vpop.permute.xlu0 %324
      %326 = vrot.lane.b32.xlu0 %v250, 4
      %v327 = vpop.permute.xlu0 %326
      %328 = vrot.lane.b32.xlu0 %v251, 4
      %v329 = vpop.permute.xlu0 %328
      %330 = vrot.lane.b32.xlu0 %v252, 4
      %v331 = vpop.permute.xlu0 %330
      %332 = vrot.lane.b32.xlu0 %v253, 4
      %v333 = vpop.permute.xlu0 %332
      %334 = vrot.lane.b32.xlu0 %v254, 4
      %v335 = vpop.permute.xlu0 %334
      %336 = vrot.lane.b32.xlu0 %v255, 4
      %v337 = vpop.permute.xlu0 %336
      %338 = vrot.lane.b32.xlu0 %v256, 4
      %v339 = vpop.permute.xlu0 %338
      %340 = vrot.lane.b32.xlu0 %v257, 4
      %v341 = vpop.permute.xlu0 %340
      %342 = vrot.lane.b32.xlu0 %v258, 4
      %v343 = vpop.permute.xlu0 %342
      %344 = vrot.lane.b32.xlu0 %v259, 4
      %v345 = vpop.permute.xlu0 %344
      %346 = vrot.lane.b32.xlu0 %v260, 4
      %v347 = vpop.permute.xlu0 %346
      %348 = vrot.lane.b32.xlu0 %v261, 4
      %v349 = vpop.permute.xlu0 %348
      %350 = vrot.lane.b32.xlu0 %v262, 4
      %v351 = vpop.permute.xlu0 %350
      %352 = vrot.lane.b32.xlu0 %v263, 4
      %v353 = vpop.permute.xlu0 %352
      %354 = vrot.lane.b32.xlu0 %v264, 4
      %v355 = vpop.permute.xlu0 %354
      %356 = vrot.lane.b32.xlu0 %v265, 4
      %v357 = vpop.permute.xlu0 %356
      %358 = vrot.lane.b32.xlu0 %v266, 4
      %v359 = vpop.permute.xlu0 %358
      %360 = vrot.lane.b32.xlu0 %v267, 4
      %v361 = vpop.permute.xlu0 %360
      %362 = vrot.lane.b32.xlu0 %v268, 4
      %v363 = vpop.permute.xlu0 %362
      %364 = vrot.lane.b32.xlu0 %v269, 4
      %v365 = vpop.permute.xlu0 %364
      %vm398 = vcmask 64544
      %399 = vst.msk [vmem:[#allocation2] sm:$0xff] %vm398, %v303
      %400 = vst.msk [vmem:[#allocation2 + $0x8] sm:$0xff] %vm398, %v305
      %401 = vst.msk [vmem:[#allocation2 + $0x10] sm:$0xff] %vm398, %v307
      %402 = vst.msk [vmem:[#allocation2 + $0x18] sm:$0xff] %vm398, %v309
      %403 = vst.msk [vmem:[#allocation2 + $0x20] sm:$0xff] %vm398, %v311
      %404 = vst.msk [vmem:[#allocation2 + $0x28] sm:$0xff] %vm398, %v313
      %405 = vst.msk [vmem:[#allocation2 + $0x30] sm:$0xff] %vm398, %v315
      %406 = vst.msk [vmem:[#allocation2 + $0x38] sm:$0xff] %vm398, %v317
      %407 = vst.msk [vmem:[#allocation2 + $0x40] sm:$0xff] %vm398, %v319
      %408 = vst.msk [vmem:[#allocation2 + $0x48] sm:$0xff] %vm398, %v321
      %409 = vst.msk [vmem:[#allocation2 + $0x50] sm:$0xff] %vm398, %v323
      %410 = vst.msk [vmem:[#allocation2 + $0x58] sm:$0xff] %vm398, %v325
      %411 = vst.msk [vmem:[#allocation2 + $0x60] sm:$0xff] %vm398, %v327
      %412 = vst.msk [vmem:[#allocation2 + $0x68] sm:$0xff] %vm398, %v329
      %413 = vst.msk [vmem:[#allocation2 + $0x70] sm:$0xff] %vm398, %v331
      %414 = vst.msk [vmem:[#allocation2 + $0x78] sm:$0xff] %vm398, %v333
      %415 = vst.msk [vmem:[#allocation2 + $0x80] sm:$0xff] %vm398, %v335
      %416 = vst.msk [vmem:[#allocation2 + $0x88] sm:$0xff] %vm398, %v337
      %417 = vst.msk [vmem:[#allocation2 + $0x90] sm:$0xff] %vm398, %v339
      %418 = vst.msk [vmem:[#allocation2 + $0x98] sm:$0xff] %vm398, %v341
      %419 = vst.msk [vmem:[#allocation2 + $0xa0] sm:$0xff] %vm398, %v343
      %420 = vst.msk [vmem:[#allocation2 + $0xa8] sm:$0xff] %vm398, %v345
      %421 = vst.msk [vmem:[#allocation2 + $0xb0] sm:$0xff] %vm398, %v347
      %422 = vst.msk [vmem:[#allocation2 + $0xb8] sm:$0xff] %vm398, %v349
      %423 = vst.msk [vmem:[#allocation2 + $0xc0] sm:$0xff] %vm398, %v351
      %424 = vst.msk [vmem:[#allocation2 + $0xc8] sm:$0xff] %vm398, %v353
      %425 = vst.msk [vmem:[#allocation2 + $0xd0] sm:$0xff] %vm398, %v355
      %426 = vst.msk [vmem:[#allocation2 + $0xd8] sm:$0xff] %vm398, %v357
      %427 = vst.msk [vmem:[#allocation2 + $0xe0] sm:$0xff] %vm398, %v359
      %428 = vst.msk [vmem:[#allocation2 + $0xe8] sm:$0xff] %vm398, %v361
      %429 = vst.msk [vmem:[#allocation2 + $0xf0] sm:$0xff] %vm398, %v363
      %430 = vst.msk [vmem:[#allocation2 + $0xf8] sm:$0xff] %vm398, %v365
      %v431 = vld [vmem:[%s165 + $0x1] sm:$0xff]
      %v432 = vld [vmem:[%s165 + $0x9] sm:$0xff]
      %v433 = vld [vmem:[%s165 + $0x19] sm:$0xff]
      %v434 = vld [vmem:[%s165 + $0x21] sm:$0xff]
      %v435 = vld [vmem:[%s165 + $0x31] sm:$0xff]
      %v436 = vld [vmem:[%s165 + $0x39] sm:$0xff]
      %v437 = vld [vmem:[%s165 + $0x49] sm:$0xff]
      %v438 = vld [vmem:[%s165 + $0x51] sm:$0xff]
      %v439 = vld [vmem:[%s165 + $0x61] sm:$0xff]
      %v440 = vld [vmem:[%s165 + $0x69] sm:$0xff]
      %v441 = vld [vmem:[%s165 + $0x79] sm:$0xff]
      %v442 = vld [vmem:[%s165 + $0x81] sm:$0xff]
      %v443 = vld [vmem:[%s165 + $0x91] sm:$0xff]
      %v444 = vld [vmem:[%s165 + $0x99] sm:$0xff]
      %v445 = vld [vmem:[%s165 + $0xa9] sm:$0xff]
      %v446 = vld [vmem:[%s165 + $0xb1] sm:$0xff]
      %v447 = vld [vmem:[%s165 + $0xc1] sm:$0xff]
      %v448 = vld [vmem:[%s165 + $0xc9] sm:$0xff]
      %v449 = vld [vmem:[%s165 + $0xd9] sm:$0xff]
      %v450 = vld [vmem:[%s165 + $0xe1] sm:$0xff]
      %v451 = vld [vmem:[%s165 + $0xf1] sm:$0xff]
      %v452 = vld [vmem:[%s165 + $0xf9] sm:$0xff]
      %v453 = vld [vmem:[%s165 + $0x109] sm:$0xff]
      %v454 = vld [vmem:[%s165 + $0x111] sm:$0xff]
      %v455 = vld [vmem:[%s165 + $0x121] sm:$0xff]
      %v456 = vld [vmem:[%s165 + $0x129] sm:$0xff]
      %v457 = vld [vmem:[%s165 + $0x139] sm:$0xff]
      %v458 = vld [vmem:[%s165 + $0x141] sm:$0xff]
      %v459 = vld [vmem:[%s165 + $0x151] sm:$0xff]
      %v460 = vld [vmem:[%s165 + $0x159] sm:$0xff]
      %v461 = vld [vmem:[%s165 + $0x169] sm:$0xff]
      %v462 = vld [vmem:[%s165 + $0x171] sm:$0xff]
      %495 = vrot.lane.b32.xlu0 %v431, 8
      %v496 = vpop.permute.xlu0 %495
      %497 = vrot.lane.b32.xlu0 %v432, 8
      %v498 = vpop.permute.xlu0 %497
      %499 = vrot.lane.b32.xlu0 %v433, 8
      %v500 = vpop.permute.xlu0 %499
      %501 = vrot.lane.b32.xlu0 %v434, 8
      %v502 = vpop.permute.xlu0 %501
      %503 = vrot.lane.b32.xlu0 %v435, 8
      %v504 = vpop.permute.xlu0 %503
      %505 = vrot.lane.b32.xlu0 %v436, 8
      %v506 = vpop.permute.xlu0 %505
      %507 = vrot.lane.b32.xlu0 %v437, 8
      %v508 = vpop.permute.xlu0 %507
      %509 = vrot.lane.b32.xlu0 %v438, 8
      %v510 = vpop.permute.xlu0 %509
      %511 = vrot.lane.b32.xlu0 %v439, 8
      %v512 = vpop.permute.xlu0 %511
      %513 = vrot.lane.b32.xlu0 %v440, 8
      %v514 = vpop.permute.xlu0 %513
      %515 = vrot.lane.b32.xlu0 %v441, 8
      %v516 = vpop.permute.xlu0 %515
      %517 = vrot.lane.b32.xlu0 %v442, 8
      %v518 = vpop.permute.xlu0 %517
      %519 = vrot.lane.b32.xlu0 %v443, 8
      %v520 = vpop.permute.xlu0 %519
      %521 = vrot.lane.b32.xlu0 %v444, 8
      %v522 = vpop.permute.xlu0 %521
      %523 = vrot.lane.b32.xlu0 %v445, 8
      %v524 = vpop.permute.xlu0 %523
      %525 = vrot.lane.b32.xlu0 %v446, 8
      %v526 = vpop.permute.xlu0 %525
      %527 = vrot.lane.b32.xlu0 %v447, 8
      %v528 = vpop.permute.xlu0 %527
      %529 = vrot.lane.b32.xlu0 %v448, 8
      %v530 = vpop.permute.xlu0 %529
      %531 = vrot.lane.b32.xlu0 %v449, 8
      %v532 = vpop.permute.xlu0 %531
      %533 = vrot.lane.b32.xlu0 %v450, 8
      %v534 = vpop.permute.xlu0 %533
      %535 = vrot.lane.b32.xlu0 %v451, 8
      %v536 = vpop.permute.xlu0 %535
      %537 = vrot.lane.b32.xlu0 %v452, 8
      %v538 = vpop.permute.xlu0 %537
      %539 = vrot.lane.b32.xlu0 %v453, 8
      %v540 = vpop.permute.xlu0 %539
      %541 = vrot.lane.b32.xlu0 %v454, 8
      %v542 = vpop.permute.xlu0 %541
      %543 = vrot.lane.b32.xlu0 %v455, 8
      %v544 = vpop.permute.xlu0 %543
      %545 = vrot.lane.b32.xlu0 %v456, 8
      %v546 = vpop.permute.xlu0 %545
      %547 = vrot.lane.b32.xlu0 %v457, 8
      %v548 = vpop.permute.xlu0 %547
      %549 = vrot.lane.b32.xlu0 %v458, 8
      %v550 = vpop.permute.xlu0 %549
      %551 = vrot.lane.b32.xlu0 %v459, 8
      %v552 = vpop.permute.xlu0 %551
      %553 = vrot.lane.b32.xlu0 %v460, 8
      %v554 = vpop.permute.xlu0 %553
      %555 = vrot.lane.b32.xlu0 %v461, 8
      %v556 = vpop.permute.xlu0 %555
      %557 = vrot.lane.b32.xlu0 %v462, 8
      %v558 = vpop.permute.xlu0 %557
      %vm591 = vcmask 97344
      %592 = vst.msk [vmem:[#allocation2] sm:$0xff] %vm591, %v496
      %593 = vst.msk [vmem:[#allocation2 + $0x8] sm:$0xff] %vm591, %v498
      %594 = vst.msk [vmem:[#allocation2 + $0x10] sm:$0xff] %vm591, %v500
      %595 = vst.msk [vmem:[#allocation2 + $0x18] sm:$0xff] %vm591, %v502
      %596 = vst.msk [vmem:[#allocation2 + $0x20] sm:$0xff] %vm591, %v504
      %597 = vst.msk [vmem:[#allocation2 + $0x28] sm:$0xff] %vm591, %v506
      %598 = vst.msk [vmem:[#allocation2 + $0x30] sm:$0xff] %vm591, %v508
      %599 = vst.msk [vmem:[#allocation2 + $0x38] sm:$0xff] %vm591, %v510
      %600 = vst.msk [vmem:[#allocation2 + $0x40] sm:$0xff] %vm591, %v512
      %601 = vst.msk [vmem:[#allocation2 + $0x48] sm:$0xff] %vm591, %v514
      %602 = vst.msk [vmem:[#allocation2 + $0x50] sm:$0xff] %vm591, %v516
      %603 = vst.msk [vmem:[#allocation2 + $0x58] sm:$0xff] %vm591, %v518
      %604 = vst.msk [vmem:[#allocation2 + $0x60] sm:$0xff] %vm591, %v520
      %605 = vst.msk [vmem:[#allocation2 + $0x68] sm:$0xff] %vm591, %v522
      %606 = vst.msk [vmem:[#allocation2 + $0x70] sm:$0xff] %vm591, %v524
      %607 = vst.msk [vmem:[#allocation2 + $0x78] sm:$0xff] %vm591, %v526
      %608 = vst.msk [vmem:[#allocation2 + $0x80] sm:$0xff] %vm591, %v528
      %609 = vst.msk [vmem:[#allocation2 + $0x88] sm:$0xff] %vm591, %v530
      %610 = vst.msk [vmem:[#allocation2 + $0x90] sm:$0xff] %vm591, %v532
      %611 = vst.msk [vmem:[#allocation2 + $0x98] sm:$0xff] %vm591, %v534
      %612 = vst.msk [vmem:[#allocation2 + $0xa0] sm:$0xff] %vm591, %v536
      %613 = vst.msk [vmem:[#allocation2 + $0xa8] sm:$0xff] %vm591, %v538
      %614 = vst.msk [vmem:[#allocation2 + $0xb0] sm:$0xff] %vm591, %v540
      %615 = vst.msk [vmem:[#allocation2 + $0xb8] sm:$0xff] %vm591, %v542
      %616 = vst.msk [vmem:[#allocation2 + $0xc0] sm:$0xff] %vm591, %v544
      %617 = vst.msk [vmem:[#allocation2 + $0xc8] sm:$0xff] %vm591, %v546
      %618 = vst.msk [vmem:[#allocation2 + $0xd0] sm:$0xff] %vm591, %v548
      %619 = vst.msk [vmem:[#allocation2 + $0xd8] sm:$0xff] %vm591, %v550
      %620 = vst.msk [vmem:[#allocation2 + $0xe0] sm:$0xff] %vm591, %v552
      %621 = vst.msk [vmem:[#allocation2 + $0xe8] sm:$0xff] %vm591, %v554
      %622 = vst.msk [vmem:[#allocation2 + $0xf0] sm:$0xff] %vm591, %v556
      %623 = vst.msk [vmem:[#allocation2 + $0xf8] sm:$0xff] %vm591, %v558
      %v624 = vld [vmem:[%s237 + $0x1] sm:$0xff]
      %v625 = vld [vmem:[%s237 + $0x9] sm:$0xff]
      %v626 = vld [vmem:[%s237 + $0x19] sm:$0xff]
      %v627 = vld [vmem:[%s237 + $0x21] sm:$0xff]
      %v628 = vld [vmem:[%s237 + $0x31] sm:$0xff]
      %v629 = vld [vmem:[%s237 + $0x39] sm:$0xff]
      %v630 = vld [vmem:[%s237 + $0x49] sm:$0xff]
      %v631 = vld [vmem:[%s237 + $0x51] sm:$0xff]
      %v632 = vld [vmem:[%s237 + $0x61] sm:$0xff]
      %v633 = vld [vmem:[%s237 + $0x69] sm:$0xff]
      %v634 = vld [vmem:[%s237 + $0x79] sm:$0xff]
      %v635 = vld [vmem:[%s237 + $0x81] sm:$0xff]
      %v636 = vld [vmem:[%s237 + $0x91] sm:$0xff]
      %v637 = vld [vmem:[%s237 + $0x99] sm:$0xff]
      %v638 = vld [vmem:[%s237 + $0xa9] sm:$0xff]
      %v639 = vld [vmem:[%s237 + $0xb1] sm:$0xff]
      %v640 = vld [vmem:[%s237 + $0xc1] sm:$0xff]
      %v641 = vld [vmem:[%s237 + $0xc9] sm:$0xff]
      %v642 = vld [vmem:[%s237 + $0xd9] sm:$0xff]
      %v643 = vld [vmem:[%s237 + $0xe1] sm:$0xff]
      %v644 = vld [vmem:[%s237 + $0xf1] sm:$0xff]
      %v645 = vld [vmem:[%s237 + $0xf9] sm:$0xff]
      %v646 = vld [vmem:[%s237 + $0x109] sm:$0xff]
      %v647 = vld [vmem:[%s237 + $0x111] sm:$0xff]
      %v648 = vld [vmem:[%s237 + $0x121] sm:$0xff]
      %v649 = vld [vmem:[%s237 + $0x129] sm:$0xff]
      %v650 = vld [vmem:[%s237 + $0x139] sm:$0xff]
      %v651 = vld [vmem:[%s237 + $0x141] sm:$0xff]
      %v652 = vld [vmem:[%s237 + $0x151] sm:$0xff]
      %v653 = vld [vmem:[%s237 + $0x159] sm:$0xff]
      %v654 = vld [vmem:[%s237 + $0x169] sm:$0xff]
      %v655 = vld [vmem:[%s237 + $0x171] sm:$0xff]
      %688 = vrot.lane.b32.xlu0 %v624, 12
      %v689 = vpop.permute.xlu0 %688
      %690 = vrot.lane.b32.xlu0 %v625, 12
      %v691 = vpop.permute.xlu0 %690
      %692 = vrot.lane.b32.xlu0 %v626, 12
      %v693 = vpop.permute.xlu0 %692
      %694 = vrot.lane.b32.xlu0 %v627, 12
      %v695 = vpop.permute.xlu0 %694
      %696 = vrot.lane.b32.xlu0 %v628, 12
      %v697 = vpop.permute.xlu0 %696
      %698 = vrot.lane.b32.xlu0 %v629, 12
      %v699 = vpop.permute.xlu0 %698
      %700 = vrot.lane.b32.xlu0 %v630, 12
      %v701 = vpop.permute.xlu0 %700
      %702 = vrot.lane.b32.xlu0 %v631, 12
      %v703 = vpop.permute.xlu0 %702
      %704 = vrot.lane.b32.xlu0 %v632, 12
      %v705 = vpop.permute.xlu0 %704
      %706 = vrot.lane.b32.xlu0 %v633, 12
      %v707 = vpop.permute.xlu0 %706
      %708 = vrot.lane.b32.xlu0 %v634, 12
      %v709 = vpop.permute.xlu0 %708
      %710 = vrot.lane.b32.xlu0 %v635, 12
      %v711 = vpop.permute.xlu0 %710
      %712 = vrot.lane.b32.xlu0 %v636, 12
      %v713 = vpop.permute.xlu0 %712
      %714 = vrot.lane.b32.xlu0 %v637, 12
      %v715 = vpop.permute.xlu0 %714
      %716 = vrot.lane.b32.xlu0 %v638, 12
      %v717 = vpop.permute.xlu0 %716
      %718 = vrot.lane.b32.xlu0 %v639, 12
      %v719 = vpop.permute.xlu0 %718
      %720 = vrot.lane.b32.xlu0 %v640, 12
      %v721 = vpop.permute.xlu0 %720
      %722 = vrot.lane.b32.xlu0 %v641, 12
      %v723 = vpop.permute.xlu0 %722
      %724 = vrot.lane.b32.xlu0 %v642, 12
      %v725 = vpop.permute.xlu0 %724
      %726 = vrot.lane.b32.xlu0 %v643, 12
      %v727 = vpop.permute.xlu0 %726
      %728 = vrot.lane.b32.xlu0 %v644, 12
      %v729 = vpop.permute.xlu0 %728
      %730 = vrot.lane.b32.xlu0 %v645, 12
      %v731 = vpop.permute.xlu0 %730
      %732 = vrot.lane.b32.xlu0 %v646, 12
      %v733 = vpop.permute.xlu0 %732
      %734 = vrot.lane.b32.xlu0 %v647, 12
      %v735 = vpop.permute.xlu0 %734
      %736 = vrot.lane.b32.xlu0 %v648, 12
      %v737 = vpop.permute.xlu0 %736
      %738 = vrot.lane.b32.xlu0 %v649, 12
      %v739 = vpop.permute.xlu0 %738
      %740 = vrot.lane.b32.xlu0 %v650, 12
      %v741 = vpop.permute.xlu0 %740
      %742 = vrot.lane.b32.xlu0 %v651, 12
      %v743 = vpop.permute.xlu0 %742
      %744 = vrot.lane.b32.xlu0 %v652, 12
      %v745 = vpop.permute.xlu0 %744
      %746 = vrot.lane.b32.xlu0 %v653, 12
      %v747 = vpop.permute.xlu0 %746
      %748 = vrot.lane.b32.xlu0 %v654, 12
      %v749 = vpop.permute.xlu0 %748
      %750 = vrot.lane.b32.xlu0 %v655, 12
      %v751 = vpop.permute.xlu0 %750
      %vm784 = vcmask 130144
      %785 = vst.msk [vmem:[#allocation2] sm:$0xff] %vm784, %v689
      %786 = vst.msk [vmem:[#allocation2 + $0x8] sm:$0xff] %vm784, %v691
      %787 = vst.msk [vmem:[#allocation2 + $0x10] sm:$0xff] %vm784, %v693
      %788 = vst.msk [vmem:[#allocation2 + $0x18] sm:$0xff] %vm784, %v695
      %789 = vst.msk [vmem:[#allocation2 + $0x20] sm:$0xff] %vm784, %v697
      %790 = vst.msk [vmem:[#allocation2 + $0x28] sm:$0xff] %vm784, %v699
      %791 = vst.msk [vmem:[#allocation2 + $0x30] sm:$0xff] %vm784, %v701
      %792 = vst.msk [vmem:[#allocation2 + $0x38] sm:$0xff] %vm784, %v703
      %793 = vst.msk [vmem:[#allocation2 + $0x40] sm:$0xff] %vm784, %v705
      %794 = vst.msk [vmem:[#allocation2 + $0x48] sm:$0xff] %vm784, %v707
      %795 = vst.msk [vmem:[#allocation2 + $0x50] sm:$0xff] %vm784, %v709
      %796 = vst.msk [vmem:[#allocation2 + $0x58] sm:$0xff] %vm784, %v711
      %797 = vst.msk [vmem:[#allocation2 + $0x60] sm:$0xff] %vm784, %v713
      %798 = vst.msk [vmem:[#allocation2 + $0x68] sm:$0xff] %vm784, %v715
      %799 = vst.msk [vmem:[#allocation2 + $0x70] sm:$0xff] %vm784, %v717
      %800 = vst.msk [vmem:[#allocation2 + $0x78] sm:$0xff] %vm784, %v719
      %801 = vst.msk [vmem:[#allocation2 + $0x80] sm:$0xff] %vm784, %v721
      %802 = vst.msk [vmem:[#allocation2 + $0x88] sm:$0xff] %vm784, %v723
      %803 = vst.msk [vmem:[#allocation2 + $0x90] sm:$0xff] %vm784, %v725
      %804 = vst.msk [vmem:[#allocation2 + $0x98] sm:$0xff] %vm784, %v727
      %805 = vst.msk [vmem:[#allocation2 + $0xa0] sm:$0xff] %vm784, %v729
      %806 = vst.msk [vmem:[#allocation2 + $0xa8] sm:$0xff] %vm784, %v731
      %807 = vst.msk [vmem:[#allocation2 + $0xb0] sm:$0xff] %vm784, %v733
      %808 = vst.msk [vmem:[#allocation2 + $0xb8] sm:$0xff] %vm784, %v735
      %809 = vst.msk [vmem:[#allocation2 + $0xc0] sm:$0xff] %vm784, %v737
      %810 = vst.msk [vmem:[#allocation2 + $0xc8] sm:$0xff] %vm784, %v739
      %811 = vst.msk [vmem:[#allocation2 + $0xd0] sm:$0xff] %vm784, %v741
      %812 = vst.msk [vmem:[#allocation2 + $0xd8] sm:$0xff] %vm784, %v743
      %813 = vst.msk [vmem:[#allocation2 + $0xe0] sm:$0xff] %vm784, %v745
      %814 = vst.msk [vmem:[#allocation2 + $0xe8] sm:$0xff] %vm784, %v747
      %815 = vst.msk [vmem:[#allocation2 + $0xf0] sm:$0xff] %vm784, %v749
      %816 = vst.msk [vmem:[#allocation2 + $0xf8] sm:$0xff] %vm784, %v751
      %v817 = vld [vmem:[%s165 + $0x2] sm:$0xff]
      %v818 = vld [vmem:[%s165 + $0xa] sm:$0xff]
      %v819 = vld [vmem:[%s165 + $0x1a] sm:$0xff]
      %v820 = vld [vmem:[%s165 + $0x22] sm:$0xff]
      %v821 = vld [vmem:[%s165 + $0x32] sm:$0xff]
      %v822 = vld [vmem:[%s165 + $0x3a] sm:$0xff]
      %v823 = vld [vmem:[%s165 + $0x4a] sm:$0xff]
      %v824 = vld [vmem:[%s165 + $0x52] sm:$0xff]
      %v825 = vld [vmem:[%s165 + $0x62] sm:$0xff]
      %v826 = vld [vmem:[%s165 + $0x6a] sm:$0xff]
      %v827 = vld [vmem:[%s165 + $0x7a] sm:$0xff]
      %v828 = vld [vmem:[%s165 + $0x82] sm:$0xff]
      %v829 = vld [vmem:[%s165 + $0x92] sm:$0xff]
      %v830 = vld [vmem:[%s165 + $0x9a] sm:$0xff]
      %v831 = vld [vmem:[%s165 + $0xaa] sm:$0xff]
      %v832 = vld [vmem:[%s165 + $0xb2] sm:$0xff]
      %v833 = vld [vmem:[%s165 + $0xc2] sm:$0xff]
      %v834 = vld [vmem:[%s165 + $0xca] sm:$0xff]
      %v835 = vld [vmem:[%s165 + $0xda] sm:$0xff]
      %v836 = vld [vmem:[%s165 + $0xe2] sm:$0xff]
      %v837 = vld [vmem:[%s165 + $0xf2] sm:$0xff]
      %v838 = vld [vmem:[%s165 + $0xfa] sm:$0xff]
      %v839 = vld [vmem:[%s165 + $0x10a] sm:$0xff]
      %v840 = vld [vmem:[%s165 + $0x112] sm:$0xff]
      %v841 = vld [vmem:[%s165 + $0x122] sm:$0xff]
      %v842 = vld [vmem:[%s165 + $0x12a] sm:$0xff]
      %v843 = vld [vmem:[%s165 + $0x13a] sm:$0xff]
      %v844 = vld [vmem:[%s165 + $0x142] sm:$0xff]
      %v845 = vld [vmem:[%s165 + $0x152] sm:$0xff]
      %v846 = vld [vmem:[%s165 + $0x15a] sm:$0xff]
      %v847 = vld [vmem:[%s165 + $0x16a] sm:$0xff]
      %v848 = vld [vmem:[%s165 + $0x172] sm:$0xff]
      %881 = vrot.lane.b32.xlu0 %v817, 16
      %v882 = vpop.permute.xlu0 %881
      %883 = vrot.lane.b32.xlu0 %v818, 16
      %v884 = vpop.permute.xlu0 %883
      %885 = vrot.lane.b32.xlu0 %v819, 16
      %v886 = vpop.permute.xlu0 %885
      %887 = vrot.lane.b32.xlu0 %v820, 16
      %v888 = vpop.permute.xlu0 %887
      %889 = vrot.lane.b32.xlu0 %v821, 16
      %v890 = vpop.permute.xlu0 %889
      %891 = vrot.lane.b32.xlu0 %v822, 16
      %v892 = vpop.permute.xlu0 %891
      %893 = vrot.lane.b32.xlu0 %v823, 16
      %v894 = vpop.permute.xlu0 %893
      %895 = vrot.lane.b32.xlu0 %v824, 16
      %v896 = vpop.permute.xlu0 %895
      %897 = vrot.lane.b32.xlu0 %v825, 16
      %v898 = vpop.permute.xlu0 %897
      %899 = vrot.lane.b32.xlu0 %v826, 16
      %v900 = vpop.permute.xlu0 %899
      %901 = vrot.lane.b32.xlu0 %v827, 16
      %v902 = vpop.permute.xlu0 %901
      %903 = vrot.lane.b32.xlu0 %v828, 16
      %v904 = vpop.permute.xlu0 %903
      %905 = vrot.lane.b32.xlu0 %v829, 16
      %v906 = vpop.permute.xlu0 %905
      %907 = vrot.lane.b32.xlu0 %v830, 16
      %v908 = vpop.permute.xlu0 %907
      %909 = vrot.lane.b32.xlu0 %v831, 16
      %v910 = vpop.permute.xlu0 %909
      %911 = vrot.lane.b32.xlu0 %v832, 16
      %v912 = vpop.permute.xlu0 %911
      %913 = vrot.lane.b32.xlu0 %v833, 16
      %v914 = vpop.permute.xlu0 %913
      %915 = vrot.lane.b32.xlu0 %v834, 16
      %v916 = vpop.permute.xlu0 %915
      %917 = vrot.lane.b32.xlu0 %v835, 16
      %v918 = vpop.permute.xlu0 %917
      %919 = vrot.lane.b32.xlu0 %v836, 16
      %v920 = vpop.permute.xlu0 %919
      %921 = vrot.lane.b32.xlu0 %v837, 16
      %v922 = vpop.permute.xlu0 %921
      %923 = vrot.lane.b32.xlu0 %v838, 16
      %v924 = vpop.permute.xlu0 %923
      %925 = vrot.lane.b32.xlu0 %v839, 16
      %v926 = vpop.permute.xlu0 %925
      %927 = vrot.lane.b32.xlu0 %v840, 16
      %v928 = vpop.permute.xlu0 %927
      %929 = vrot.lane.b32.xlu0 %v841, 16
      %v930 = vpop.permute.xlu0 %929
      %931 = vrot.lane.b32.xlu0 %v842, 16
      %v932 = vpop.permute.xlu0 %931
      %933 = vrot.lane.b32.xlu0 %v843, 16
      %v934 = vpop.permute.xlu0 %933
      %935 = vrot.lane.b32.xlu0 %v844, 16
      %v936 = vpop.permute.xlu0 %935
      %937 = vrot.lane.b32.xlu0 %v845, 16
      %v938 = vpop.permute.xlu0 %937
      %939 = vrot.lane.b32.xlu0 %v846, 16
      %v940 = vpop.permute.xlu0 %939
      %941 = vrot.lane.b32.xlu0 %v847, 16
      %v942 = vpop.permute.xlu0 %941
      %943 = vrot.lane.b32.xlu0 %v848, 16
      %v944 = vpop.permute.xlu0 %943
      %vm977 = vcmask 162944
      %978 = vst.msk [vmem:[#allocation2] sm:$0xff] %vm977, %v882
      %979 = vst.msk [vmem:[#allocation2 + $0x8] sm:$0xff] %vm977, %v884
      %980 = vst.msk [vmem:[#allocation2 + $0x10] sm:$0xff] %vm977, %v886
      %981 = vst.msk [vmem:[#allocation2 + $0x18] sm:$0xff] %vm977, %v888
      %982 = vst.msk [vmem:[#allocation2 + $0x20] sm:$0xff] %vm977, %v890
      %983 = vst.msk [vmem:[#allocation2 + $0x28] sm:$0xff] %vm977, %v892
      %984 = vst.msk [vmem:[#allocation2 + $0x30] sm:$0xff] %vm977, %v894
      %985 = vst.msk [vmem:[#allocation2 + $0x38] sm:$0xff] %vm977, %v896
      %986 = vst.msk [vmem:[#allocation2 + $0x40] sm:$0xff] %vm977, %v898
      %987 = vst.msk [vmem:[#allocation2 + $0x48] sm:$0xff] %vm977, %v900
      %988 = vst.msk [vmem:[#allocation2 + $0x50] sm:$0xff] %vm977, %v902
      %989 = vst.msk [vmem:[#allocation2 + $0x58] sm:$0xff] %vm977, %v904
      %990 = vst.msk [vmem:[#allocation2 + $0x60] sm:$0xff] %vm977, %v906
      %991 = vst.msk [vmem:[#allocation2 + $0x68] sm:$0xff] %vm977, %v908
      %992 = vst.msk [vmem:[#allocation2 + $0x70] sm:$0xff] %vm977, %v910
      %993 = vst.msk [vmem:[#allocation2 + $0x78] sm:$0xff] %vm977, %v912
      %994 = vst.msk [vmem:[#allocation2 + $0x80] sm:$0xff] %vm977, %v914
      %995 = vst.msk [vmem:[#allocation2 + $0x88] sm:$0xff] %vm977, %v916
      %996 = vst.msk [vmem:[#allocation2 + $0x90] sm:$0xff] %vm977, %v918
      %997 = vst.msk [vmem:[#allocation2 + $0x98] sm:$0xff] %vm977, %v920
      %998 = vst.msk [vmem:[#allocation2 + $0xa0] sm:$0xff] %vm977, %v922
      %999 = vst.msk [vmem:[#allocation2 + $0xa8] sm:$0xff] %vm977, %v924
      %1000 = vst.msk [vmem:[#allocation2 + $0xb0] sm:$0xff] %vm977, %v926
      %1001 = vst.msk [vmem:[#allocation2 + $0xb8] sm:$0xff] %vm977, %v928
      %1002 = vst.msk [vmem:[#allocation2 + $0xc0] sm:$0xff] %vm977, %v930
      %1003 = vst.msk [vmem:[#allocation2 + $0xc8] sm:$0xff] %vm977, %v932
      %1004 = vst.msk [vmem:[#allocation2 + $0xd0] sm:$0xff] %vm977, %v934
      %1005 = vst.msk [vmem:[#allocation2 + $0xd8] sm:$0xff] %vm977, %v936
      %1006 = vst.msk [vmem:[#allocation2 + $0xe0] sm:$0xff] %vm977, %v938
      %1007 = vst.msk [vmem:[#allocation2 + $0xe8] sm:$0xff] %vm977, %v940
      %1008 = vst.msk [vmem:[#allocation2 + $0xf0] sm:$0xff] %vm977, %v942
      %1009 = vst.msk [vmem:[#allocation2 + $0xf8] sm:$0xff] %vm977, %v944
      %v1010 = vld [vmem:[%s237 + $0x2] sm:$0xff]
      %v1011 = vld [vmem:[%s237 + $0xa] sm:$0xff]
      %v1012 = vld [vmem:[%s237 + $0x1a] sm:$0xff]
      %v1013 = vld [vmem:[%s237 + $0x22] sm:$0xff]
      %v1014 = vld [vmem:[%s237 + $0x32] sm:$0xff]
      %v1015 = vld [vmem:[%s237 + $0x3a] sm:$0xff]
      %v1016 = vld [vmem:[%s237 + $0x4a] sm:$0xff]
      %v1017 = vld [vmem:[%s237 + $0x52] sm:$0xff]
      %v1018 = vld [vmem:[%s237 + $0x62] sm:$0xff]
      %v1019 = vld [vmem:[%s237 + $0x6a] sm:$0xff]
      %v1020 = vld [vmem:[%s237 + $0x7a] sm:$0xff]
      %v1021 = vld [vmem:[%s237 + $0x82] sm:$0xff]
      %v1022 = vld [vmem:[%s237 + $0x92] sm:$0xff]
      %v1023 = vld [vmem:[%s237 + $0x9a] sm:$0xff]
      %v1024 = vld [vmem:[%s237 + $0xaa] sm:$0xff]
      %v1025 = vld [vmem:[%s237 + $0xb2] sm:$0xff]
      %v1026 = vld [vmem:[%s237 + $0xc2] sm:$0xff]
      %v1027 = vld [vmem:[%s237 + $0xca] sm:$0xff]
      %v1028 = vld [vmem:[%s237 + $0xda] sm:$0xff]
      %v1029 = vld [vmem:[%s237 + $0xe2] sm:$0xff]
      %v1030 = vld [vmem:[%s237 + $0xf2] sm:$0xff]
      %v1031 = vld [vmem:[%s237 + $0xfa] sm:$0xff]
      %v1032 = vld [vmem:[%s237 + $0x10a] sm:$0xff]
      %v1033 = vld [vmem:[%s237 + $0x112] sm:$0xff]
      %v1034 = vld [vmem:[%s237 + $0x122] sm:$0xff]
      %v1035 = vld [vmem:[%s237 + $0x12a] sm:$0xff]
      %v1036 = vld [vmem:[%s237 + $0x13a] sm:$0xff]
      %v1037 = vld [vmem:[%s237 + $0x142] sm:$0xff]
      %v1038 = vld [vmem:[%s237 + $0x152] sm:$0xff]
      %v1039 = vld [vmem:[%s237 + $0x15a] sm:$0xff]
      %v1040 = vld [vmem:[%s237 + $0x16a] sm:$0xff]
      %v1041 = vld [vmem:[%s237 + $0x172] sm:$0xff]
      %1074 = vrot.lane.b32.xlu0 %v1010, 20
      %v1075 = vpop.permute.xlu0 %1074
      %1076 = vrot.lane.b32.xlu0 %v1011, 20
      %v1077 = vpop.permute.xlu0 %1076
      %1078 = vrot.lane.b32.xlu0 %v1012, 20
      %v1079 = vpop.permute.xlu0 %1078
      %1080 = vrot.lane.b32.xlu0 %v1013, 20
      %v1081 = vpop.permute.xlu0 %1080
      %1082 = vrot.lane.b32.xlu0 %v1014, 20
      %v1083 = vpop.permute.xlu0 %1082
      %1084 = vrot.lane.b32.xlu0 %v1015, 20
      %v1085 = vpop.permute.xlu0 %1084
      %1086 = vrot.lane.b32.xlu0 %v1016, 20
      %v1087 = vpop.permute.xlu0 %1086
      %1088 = vrot.lane.b32.xlu0 %v1017, 20
      %v1089 = vpop.permute.xlu0 %1088
      %1090 = vrot.lane.b32.xlu0 %v1018, 20
      %v1091 = vpop.permute.xlu0 %1090
      %1092 = vrot.lane.b32.xlu0 %v1019, 20
      %v1093 = vpop.permute.xlu0 %1092
      %1094 = vrot.lane.b32.xlu0 %v1020, 20
      %v1095 = vpop.permute.xlu0 %1094
      %1096 = vrot.lane.b32.xlu0 %v1021, 20
      %v1097 = vpop.permute.xlu0 %1096
      %1098 = vrot.lane.b32.xlu0 %v1022, 20
      %v1099 = vpop.permute.xlu0 %1098
      %1100 = vrot.lane.b32.xlu0 %v1023, 20
      %v1101 = vpop.permute.xlu0 %1100
      %1102 = vrot.lane.b32.xlu0 %v1024, 20
      %v1103 = vpop.permute.xlu0 %1102
      %1104 = vrot.lane.b32.xlu0 %v1025, 20
      %v1105 = vpop.permute.xlu0 %1104
      %1106 = vrot.lane.b32.xlu0 %v1026, 20
      %v1107 = vpop.permute.xlu0 %1106
      %1108 = vrot.lane.b32.xlu0 %v1027, 20
      %v1109 = vpop.permute.xlu0 %1108
      %1110 = vrot.lane.b32.xlu0 %v1028, 20
      %v1111 = vpop.permute.xlu0 %1110
      %1112 = vrot.lane.b32.xlu0 %v1029, 20
      %v1113 = vpop.permute.xlu0 %1112
      %1114 = vrot.lane.b32.xlu0 %v1030, 20
      %v1115 = vpop.permute.xlu0 %1114
      %1116 = vrot.lane.b32.xlu0 %v1031, 20
      %v1117 = vpop.permute.xlu0 %1116
      %1118 = vrot.lane.b32.xlu0 %v1032, 20
      %v1119 = vpop.permute.xlu0 %1118
      %1120 = vrot.lane.b32.xlu0 %v1033, 20
      %v1121 = vpop.permute.xlu0 %1120
      %1122 = vrot.lane.b32.xlu0 %v1034, 20
      %v1123 = vpop.permute.xlu0 %1122
      %1124 = vrot.lane.b32.xlu0 %v1035, 20
      %v1125 = vpop.permute.xlu0 %1124
      %1126 = vrot.lane.b32.xlu0 %v1036, 20
      %v1127 = vpop.permute.xlu0 %1126
      %1128 = vrot.lane.b32.xlu0 %v1037, 20
      %v1129 = vpop.permute.xlu0 %1128
      %1130 = vrot.lane.b32.xlu0 %v1038, 20
      %v1131 = vpop.permute.xlu0 %1130
      %1132 = vrot.lane.b32.xlu0 %v1039, 20
      %v1133 = vpop.permute.xlu0 %1132
      %1134 = vrot.lane.b32.xlu0 %v1040, 20
      %v1135 = vpop.permute.xlu0 %1134
      %1136 = vrot.lane.b32.xlu0 %v1041, 20
      %v1137 = vpop.permute.xlu0 %1136
      %vm1170 = vcmask 195744
      %1171 = vst.msk [vmem:[#allocation2] sm:$0xff] %vm1170, %v1075
      %1172 = vst.msk [vmem:[#allocation2 + $0x8] sm:$0xff] %vm1170, %v1077
      %1173 = vst.msk [vmem:[#allocation2 + $0x10] sm:$0xff] %vm1170, %v1079
      %1174 = vst.msk [vmem:[#allocation2 + $0x18] sm:$0xff] %vm1170, %v1081
      %1175 = vst.msk [vmem:[#allocation2 + $0x20] sm:$0xff] %vm1170, %v1083
      %1176 = vst.msk [vmem:[#allocation2 + $0x28] sm:$0xff] %vm1170, %v1085
      %1177 = vst.msk [vmem:[#allocation2 + $0x30] sm:$0xff] %vm1170, %v1087
      %1178 = vst.msk [vmem:[#allocation2 + $0x38] sm:$0xff] %vm1170, %v1089
      %1179 = vst.msk [vmem:[#allocation2 + $0x40] sm:$0xff] %vm1170, %v1091
      %1180 = vst.msk [vmem:[#allocation2 + $0x48] sm:$0xff] %vm1170, %v1093
      %1181 = vst.msk [vmem:[#allocation2 + $0x50] sm:$0xff] %vm1170, %v1095
      %1182 = vst.msk [vmem:[#allocation2 + $0x58] sm:$0xff] %vm1170, %v1097
      %1183 = vst.msk [vmem:[#allocation2 + $0x60] sm:$0xff] %vm1170, %v1099
      %1184 = vst.msk [vmem:[#allocation2 + $0x68] sm:$0xff] %vm1170, %v1101
      %1185 = vst.msk [vmem:[#allocation2 + $0x70] sm:$0xff] %vm1170, %v1103
      %1186 = vst.msk [vmem:[#allocation2 + $0x78] sm:$0xff] %vm1170, %v1105
      %1187 = vst.msk [vmem:[#allocation2 + $0x80] sm:$0xff] %vm1170, %v1107
      %1188 = vst.msk [vmem:[#allocation2 + $0x88] sm:$0xff] %vm1170, %v1109
      %1189 = vst.msk [vmem:[#allocation2 + $0x90] sm:$0xff] %vm1170, %v1111
      %1190 = vst.msk [vmem:[#allocation2 + $0x98] sm:$0xff] %vm1170, %v1113
      %1191 = vst.msk [vmem:[#allocation2 + $0xa0] sm:$0xff] %vm1170, %v1115
      %1192 = vst.msk [vmem:[#allocation2 + $0xa8] sm:$0xff] %vm1170, %v1117
      %1193 = vst.msk [vmem:[#allocation2 + $0xb0] sm:$0xff] %vm1170, %v1119
      %1194 = vst.msk [vmem:[#allocation2 + $0xb8] sm:$0xff] %vm1170, %v1121
      %1195 = vst.msk [vmem:[#allocation2 + $0xc0] sm:$0xff] %vm1170, %v1123
      %1196 = vst.msk [vmem:[#allocation2 + $0xc8] sm:$0xff] %vm1170, %v1125
      %1197 = vst.msk [vmem:[#allocation2 + $0xd0] sm:$0xff] %vm1170, %v1127
      %1198 = vst.msk [vmem:[#allocation2 + $0xd8] sm:$0xff] %vm1170, %v1129
      %1199 = vst.msk [vmem:[#allocation2 + $0xe0] sm:$0xff] %vm1170, %v1131
      %1200 = vst.msk [vmem:[#allocation2 + $0xe8] sm:$0xff] %vm1170, %v1133
      %1201 = vst.msk [vmem:[#allocation2 + $0xf0] sm:$0xff] %vm1170, %v1135
      %1202 = vst.msk [vmem:[#allocation2 + $0xf8] sm:$0xff] %vm1170, %v1137
      %v1203 = vld [vmem:[#allocation2] sm:$0xff]
      %v1204 = vld [vmem:[#allocation2 + $0x8] sm:$0xff]
      %v1205 = vld [vmem:[#allocation2 + $0x10] sm:$0xff]
      %v1206 = vld [vmem:[#allocation2 + $0x18] sm:$0xff]
      %v1207 = vld [vmem:[#allocation2 + $0x20] sm:$0xff]
      %v1208 = vld [vmem:[#allocation2 + $0x28] sm:$0xff]
      %v1209 = vld [vmem:[#allocation2 + $0x30] sm:$0xff]
      %v1210 = vld [vmem:[#allocation2 + $0x38] sm:$0xff]
      %v1211 = vld [vmem:[#allocation2 + $0x40] sm:$0xff]
      %v1212 = vld [vmem:[#allocation2 + $0x48] sm:$0xff]
      %v1213 = vld [vmem:[#allocation2 + $0x50] sm:$0xff]
      %v1214 = vld [vmem:[#allocation2 + $0x58] sm:$0xff]
      %v1215 = vld [vmem:[#allocation2 + $0x60] sm:$0xff]
      %v1216 = vld [vmem:[#allocation2 + $0x68] sm:$0xff]
      %v1217 = vld [vmem:[#allocation2 + $0x70] sm:$0xff]
      %v1218 = vld [vmem:[#allocation2 + $0x78] sm:$0xff]
      %v1219 = vld [vmem:[#allocation2 + $0x80] sm:$0xff]
      %v1220 = vld [vmem:[#allocation2 + $0x88] sm:$0xff]
      %v1221 = vld [vmem:[#allocation2 + $0x90] sm:$0xff]
      %v1222 = vld [vmem:[#allocation2 + $0x98] sm:$0xff]
      %v1223 = vld [vmem:[#allocation2 + $0xa0] sm:$0xff]
      %v1224 = vld [vmem:[#allocation2 + $0xa8] sm:$0xff]
      %v1225 = vld [vmem:[#allocation2 + $0xb0] sm:$0xff]
      %v1226 = vld [vmem:[#allocation2 + $0xb8] sm:$0xff]
      %v1227 = vld [vmem:[#allocation2 + $0xc0] sm:$0xff]
      %v1228 = vld [vmem:[#allocation2 + $0xc8] sm:$0xff]
      %v1229 = vld [vmem:[#allocation2 + $0xd0] sm:$0xff]
      %v1230 = vld [vmem:[#allocation2 + $0xd8] sm:$0xff]
      %v1231 = vld [vmem:[#allocation2 + $0xe0] sm:$0xff]
      %v1232 = vld [vmem:[#allocation2 + $0xe8] sm:$0xff]
      %v1233 = vld [vmem:[#allocation2 + $0xf0] sm:$0xff]
      %v1234 = vld [vmem:[#allocation2 + $0xf8] sm:$0xff]
      %v1235 = vld [vmem:[%s1] sm:$0xff]
      %v1236 = vld [vmem:[%s1 + $0x8] sm:$0xff]
      %vm1237 = vcmask 130048
      %v1239 = vsel %vm1237, %v1203, 0
      %v1242 = vsel %vm1237, %v1204, 0
      %v1245 = vsel %vm1237, %v1205, 0
      %v1248 = vsel %vm1237, %v1206, 0
      %v1251 = vsel %vm1237, %v1207, 0
      %v1254 = vsel %vm1237, %v1208, 0
      %v1257 = vsel %vm1237, %v1209, 0
      %v1260 = vsel %vm1237, %v1210, 0
      %v1263 = vsel %vm1237, %v1211, 0
      %v1266 = vsel %vm1237, %v1212, 0
      %v1269 = vsel %vm1237, %v1213, 0
      %v1272 = vsel %vm1237, %v1214, 0
      %v1275 = vsel %vm1237, %v1215, 0
      %v1278 = vsel %vm1237, %v1216, 0
      %v1281 = vsel %vm1237, %v1217, 0
      %v1284 = vsel %vm1237, %v1218, 0
      %v1287 = vsel %vm1237, %v1219, 0
      %v1290 = vsel %vm1237, %v1220, 0
      %v1293 = vsel %vm1237, %v1221, 0
      %v1296 = vsel %vm1237, %v1222, 0
      %v1299 = vsel %vm1237, %v1223, 0
      %v1302 = vsel %vm1237, %v1224, 0
      %v1305 = vsel %vm1237, %v1225, 0
      %v1308 = vsel %vm1237, %v1226, 0
      %v1311 = vsel %vm1237, %v1227, 0
      %v1314 = vsel %vm1237, %v1228, 0
      %v1317 = vsel %vm1237, %v1229, 0
      %v1320 = vsel %vm1237, %v1230, 0
      %v1323 = vsel %vm1237, %v1231, 0
      %v1326 = vsel %vm1237, %v1232, 0
      %v1329 = vsel %vm1237, %v1233, 0
      %v1332 = vsel %vm1237, %v1234, 0
      %1334 = vmatprep.subr.mxu0 0.0
      %1335 = vmatpush1.msra.mxu0 0.0
      %1336 = vmatprep.subr.mxu0 0.0
      %1337 = vmatpush1.msra.mxu0 0.0
      %1338 = vmatprep.subr.mxu0 0.0
      %1339 = vmatpush1.msra.mxu0 0.0
      %1340 = vmatprep.subr.mxu0 0.0
      %1341 = vmatpush1.msra.mxu0 0.0
      %1342 = vmatprep.subr.mxu0 0.0
      %1343 = vmatpush1.msra.mxu0 0.0
      %1344 = vmatprep.subr.mxu0 0.0
      %1345 = vmatpush1.msra.mxu0 0.0
      %1346 = vmatprep.subr.mxu0 0.0
      %1347 = vmatpush1.msra.mxu0 0.0
      %1348 = vmatprep.subr.mxu0 0.0
      %1349 = vmatpush1.msra.mxu0 0.0
      %1350 = vmatprep.subr.mxu0 0.0
      %1351 = vmatpush1.msra.mxu0 0.0
      %1352 = vmatprep.subr.mxu0 0.0
      %1353 = vmatpush1.msra.mxu0 0.0
      %1354 = vmatprep.subr.mxu0 0.0
      %1355 = vmatpush1.msra.mxu0 0.0
      %1356 = vmatprep.subr.mxu0 0.0
      %1357 = vmatpush1.msra.mxu0 0.0
      %1358 = vmatprep.subr.mxu0 0.0
      %1359 = vmatpush1.msra.mxu0 0.0
      %1360 = vmatprep.subr.mxu0 0.0
      %1361 = vmatpush1.msra.mxu0 0.0
      %1362 = vmatprep.subr.mxu0 0.0
      %1363 = vmatpush1.msra.mxu0 %v1236
      %1364 = vmatprep.subr.mxu0 0.0
      %1365 = vmatpush1.msra.mxu0 %v1235
      %1366 = vmatprep.subr.mxu0 0.0
      %1367 = vmatpush2.msra.mxu0 0.0
      %1368 = vmatprep.subr.mxu0 0.0
      %1369 = vmatpush2.msra.mxu0 0.0
      %1370 = vmatprep.subr.mxu0 0.0
      %1371 = vmatpush2.msra.mxu0 0.0
      %1372 = vmatprep.subr.mxu0 0.0
      %1373 = vmatpush2.msra.mxu0 0.0
      %1374 = vmatprep.subr.mxu0 0.0
      %1375 = vmatpush2.msra.mxu0 0.0
      %1376 = vmatprep.subr.mxu0 0.0
      %1377 = vmatpush2.msra.mxu0 0.0
      %1378 = vmatprep.subr.mxu0 0.0
      %1379 = vmatpush2.msra.mxu0 0.0
      %1380 = vmatprep.subr.mxu0 0.0
      %1381 = vmatpush2.msra.mxu0 0.0
      %1382 = vmatprep.subr.mxu0 0.0
      %1383 = vmatpush2.msra.mxu0 0.0
      %1384 = vmatprep.subr.mxu0 0.0
      %1385 = vmatpush2.msra.mxu0 0.0
      %1386 = vmatprep.subr.mxu0 0.0
      %1387 = vmatpush2.msra.mxu0 0.0
      %1388 = vmatprep.subr.mxu0 0.0
      %1389 = vmatpush2.msra.mxu0 0.0
      %1390 = vmatprep.subr.mxu0 0.0
      %1391 = vmatpush2.msra.mxu0 0.0
      %1392 = vmatprep.subr.mxu0 0.0
      %1393 = vmatpush2.msra.mxu0 0.0
      %1394 = vmatprep.subr.mxu0 0.0
      %1395 = vmatpush2.msra.mxu0 0.0
      %1396 = vmatprep.subr.mxu0 0.0
      %1397 = vmatpush2.msra.mxu0 0.0
      %1398 = vmatprep.mubr.f32.mxu0 0.0
      %1399 = vmatmul.mubr.f32.gmra.mxu0 %v1239
      %v1400 = vpop.f32.mrf.mxu0
      %v1401 = vadd.f32 0.0, %v1400
      %v1402 = vpop.f32.mrf.mxu0
      %1403 = vmatprep.mubr.f32.mxu0 0.0
      %1404 = vmatmul.mubr.f32.gmra.mxu0 %v1242
      %v1405 = vpop.f32.mrf.mxu0
      %v1406 = vadd.f32 0.0, %v1405
      %v1407 = vpop.f32.mrf.mxu0
      %1408 = vmatprep.mubr.f32.mxu0 0.0
      %1409 = vmatmul.mubr.f32.gmra.mxu0 %v1245
      %v1410 = vpop.f32.mrf.mxu0
      %v1411 = vadd.f32 0.0, %v1410
      %v1412 = vpop.f32.mrf.mxu0
      %1413 = vmatprep.mubr.f32.mxu0 0.0
      %1414 = vmatmul.mubr.f32.gmra.mxu0 %v1248
      %v1415 = vpop.f32.mrf.mxu0
      %v1416 = vadd.f32 0.0, %v1415
      %v1417 = vpop.f32.mrf.mxu0
      %1418 = vmatprep.mubr.f32.mxu0 0.0
      %1419 = vmatmul.mubr.f32.gmra.mxu0 %v1251
      %v1420 = vpop.f32.mrf.mxu0
      %v1421 = vadd.f32 0.0, %v1420
      %v1422 = vpop.f32.mrf.mxu0
      %1423 = vmatprep.mubr.f32.mxu0 0.0
      %1424 = vmatmul.mubr.f32.gmra.mxu0 %v1254
      %v1425 = vpop.f32.mrf.mxu0
      %v1426 = vadd.f32 0.0, %v1425
      %v1427 = vpop.f32.mrf.mxu0
      %1428 = vmatprep.mubr.f32.mxu0 0.0
      %1429 = vmatmul.mubr.f32.gmra.mxu0 %v1257
      %v1430 = vpop.f32.mrf.mxu0
      %v1431 = vadd.f32 0.0, %v1430
      %v1432 = vpop.f32.mrf.mxu0
      %1433 = vmatprep.mubr.f32.mxu0 0.0
      %1434 = vmatmul.mubr.f32.gmra.mxu0 %v1260
      %v1435 = vpop.f32.mrf.mxu0
      %v1436 = vadd.f32 0.0, %v1435
      %v1437 = vpop.f32.mrf.mxu0
      %1438 = vmatprep.mubr.f32.mxu0 0.0
      %1439 = vmatmul.mubr.f32.gmra.mxu0 %v1263
      %v1440 = vpop.f32.mrf.mxu0
      %v1441 = vadd.f32 0.0, %v1440
      %v1442 = vpop.f32.mrf.mxu0
      %1443 = vmatprep.mubr.f32.mxu0 0.0
      %1444 = vmatmul.mubr.f32.gmra.mxu0 %v1266
      %v1445 = vpop.f32.mrf.mxu0
      %v1446 = vadd.f32 0.0, %v1445
      %v1447 = vpop.f32.mrf.mxu0
      %1448 = vmatprep.mubr.f32.mxu0 0.0
      %1449 = vmatmul.mubr.f32.gmra.mxu0 %v1269
      %v1450 = vpop.f32.mrf.mxu0
      %v1451 = vadd.f32 0.0, %v1450
      %v1452 = vpop.f32.mrf.mxu0
      %1453 = vmatprep.mubr.f32.mxu0 0.0
      %1454 = vmatmul.mubr.f32.gmra.mxu0 %v1272
      %v1455 = vpop.f32.mrf.mxu0
      %v1456 = vadd.f32 0.0, %v1455
      %v1457 = vpop.f32.mrf.mxu0
      %1458 = vmatprep.mubr.f32.mxu0 0.0
      %1459 = vmatmul.mubr.f32.gmra.mxu0 %v1275
      %v1460 = vpop.f32.mrf.mxu0
      %v1461 = vadd.f32 0.0, %v1460
      %v1462 = vpop.f32.mrf.mxu0
      %1463 = vmatprep.mubr.f32.mxu0 0.0
      %1464 = vmatmul.mubr.f32.gmra.mxu0 %v1278
      %v1465 = vpop.f32.mrf.mxu0
      %v1466 = vadd.f32 0.0, %v1465
      %v1467 = vpop.f32.mrf.mxu0
      %1468 = vmatprep.mubr.f32.mxu0 0.0
      %1469 = vmatmul.mubr.f32.gmra.mxu0 %v1281
      %v1470 = vpop.f32.mrf.mxu0
      %v1471 = vadd.f32 0.0, %v1470
      %v1472 = vpop.f32.mrf.mxu0
      %1473 = vmatprep.mubr.f32.mxu0 0.0
      %1474 = vmatmul.mubr.f32.gmra.mxu0 %v1284
      %v1475 = vpop.f32.mrf.mxu0
      %v1476 = vadd.f32 0.0, %v1475
      %v1477 = vpop.f32.mrf.mxu0
      %1478 = vmatprep.mubr.f32.mxu0 0.0
      %1479 = vmatmul.mubr.f32.gmra.mxu0 %v1287
      %v1480 = vpop.f32.mrf.mxu0
      %v1481 = vadd.f32 0.0, %v1480
      %v1482 = vpop.f32.mrf.mxu0
      %1483 = vmatprep.mubr.f32.mxu0 0.0
      %1484 = vmatmul.mubr.f32.gmra.mxu0 %v1290
      %v1485 = vpop.f32.mrf.mxu0
      %v1486 = vadd.f32 0.0, %v1485
      %v1487 = vpop.f32.mrf.mxu0
      %1488 = vmatprep.mubr.f32.mxu0 0.0
      %1489 = vmatmul.mubr.f32.gmra.mxu0 %v1293
      %v1490 = vpop.f32.mrf.mxu0
      %v1491 = vadd.f32 0.0, %v1490
      %v1492 = vpop.f32.mrf.mxu0
      %1493 = vmatprep.mubr.f32.mxu0 0.0
      %1494 = vmatmul.mubr.f32.gmra.mxu0 %v1296
      %v1495 = vpop.f32.mrf.mxu0
      %v1496 = vadd.f32 0.0, %v1495
      %v1497 = vpop.f32.mrf.mxu0
      %1498 = vmatprep.mubr.f32.mxu0 0.0
      %1499 = vmatmul.mubr.f32.gmra.mxu0 %v1299
      %v1500 = vpop.f32.mrf.mxu0
      %v1501 = vadd.f32 0.0, %v1500
      %v1502 = vpop.f32.mrf.mxu0
      %1503 = vmatprep.mubr.f32.mxu0 0.0
      %1504 = vmatmul.mubr.f32.gmra.mxu0 %v1302
      %v1505 = vpop.f32.mrf.mxu0
      %v1506 = vadd.f32 0.0, %v1505
      %v1507 = vpop.f32.mrf.mxu0
      %1508 = vmatprep.mubr.f32.mxu0 0.0
      %1509 = vmatmul.mubr.f32.gmra.mxu0 %v1305
      %v1510 = vpop.f32.mrf.mxu0
      %v1511 = vadd.f32 0.0, %v1510
      %v1512 = vpop.f32.mrf.mxu0
      %1513 = vmatprep.mubr.f32.mxu0 0.0
      %1514 = vmatmul.mubr.f32.gmra.mxu0 %v1308
      %v1515 = vpop.f32.mrf.mxu0
      %v1516 = vadd.f32 0.0, %v1515
      %v1517 = vpop.f32.mrf.mxu0
      %1518 = vmatprep.mubr.f32.mxu0 0.0
      %1519 = vmatmul.mubr.f32.gmra.mxu0 %v1311
      %v1520 = vpop.f32.mrf.mxu0
      %v1521 = vadd.f32 0.0, %v1520
      %v1522 = vpop.f32.mrf.mxu0
      %1523 = vmatprep.mubr.f32.mxu0 0.0
      %1524 = vmatmul.mubr.f32.gmra.mxu0 %v1314
      %v1525 = vpop.f32.mrf.mxu0
      %v1526 = vadd.f32 0.0, %v1525
      %v1527 = vpop.f32.mrf.mxu0
      %1528 = vmatprep.mubr.f32.mxu0 0.0
      %1529 = vmatmul.mubr.f32.gmra.mxu0 %v1317
      %v1530 = vpop.f32.mrf.mxu0
      %v1531 = vadd.f32 0.0, %v1530
      %v1532 = vpop.f32.mrf.mxu0
      %1533 = vmatprep.mubr.f32.mxu0 0.0
      %1534 = vmatmul.mubr.f32.gmra.mxu0 %v1320
      %v1535 = vpop.f32.mrf.mxu0
      %v1536 = vadd.f32 0.0, %v1535
      %v1537 = vpop.f32.mrf.mxu0
      %1538 = vmatprep.mubr.f32.mxu0 0.0
      %1539 = vmatmul.mubr.f32.gmra.mxu0 %v1323
      %v1540 = vpop.f32.mrf.mxu0
      %v1541 = vadd.f32 0.0, %v1540
      %v1542 = vpop.f32.mrf.mxu0
      %1543 = vmatprep.mubr.f32.mxu0 0.0
      %1544 = vmatmul.mubr.f32.gmra.mxu0 %v1326
      %v1545 = vpop.f32.mrf.mxu0
      %v1546 = vadd.f32 0.0, %v1545
      %v1547 = vpop.f32.mrf.mxu0
      %1548 = vmatprep.mubr.f32.mxu0 0.0
      %1549 = vmatmul.mubr.f32.gmra.mxu0 %v1329
      %v1550 = vpop.f32.mrf.mxu0
      %v1551 = vadd.f32 0.0, %v1550
      %v1552 = vpop.f32.mrf.mxu0
      %1553 = vmatprep.mubr.f32.mxu0 0.0
      %1554 = vmatmul.mubr.f32.gmra.mxu0 %v1332
      %v1555 = vpop.f32.mrf.mxu0
      %v1556 = vadd.f32 0.0, %v1555
      %v1557 = vpop.f32.mrf.mxu0
      %1558 = vdwg.mxu0
      %s1559 = scalar_lea.vmem %s1, 16
      %v1560 = vld [vmem:[%s1559] sm:$0xff]
      %v1561 = vld [vmem:[%s1559 + $0x8] sm:$0xff]
      %1562 = vrot.lane.b32.xlu0 %v1203, 120
      %v1563 = vpop.permute.xlu0 %1562
      %1564 = vrot.lane.b32.xlu0 %v1204, 120
      %v1565 = vpop.permute.xlu0 %1564
      %1566 = vrot.lane.b32.xlu0 %v1205, 120
      %v1567 = vpop.permute.xlu0 %1566
      %1568 = vrot.lane.b32.xlu0 %v1206, 120
      %v1569 = vpop.permute.xlu0 %1568
      %1570 = vrot.lane.b32.xlu0 %v1207, 120
      %v1571 = vpop.permute.xlu0 %1570
      %1572 = vrot.lane.b32.xlu0 %v1208, 120
      %v1573 = vpop.permute.xlu0 %1572
      %1574 = vrot.lane.b32.xlu0 %v1209, 120
      %v1575 = vpop.permute.xlu0 %1574
      %1576 = vrot.lane.b32.xlu0 %v1210, 120
      %v1577 = vpop.permute.xlu0 %1576
      %1578 = vrot.lane.b32.xlu0 %v1211, 120
      %v1579 = vpop.permute.xlu0 %1578
      %1580 = vrot.lane.b32.xlu0 %v1212, 120
      %v1581 = vpop.permute.xlu0 %1580
      %1582 = vrot.lane.b32.xlu0 %v1213, 120
      %v1583 = vpop.permute.xlu0 %1582
      %1584 = vrot.lane.b32.xlu0 %v1214, 120
      %v1585 = vpop.permute.xlu0 %1584
      %1586 = vrot.lane.b32.xlu0 %v1215, 120
      %v1587 = vpop.permute.xlu0 %1586
      %1588 = vrot.lane.b32.xlu0 %v1216, 120
      %v1589 = vpop.permute.xlu0 %1588
      %1590 = vrot.lane.b32.xlu0 %v1217, 120
      %v1591 = vpop.permute.xlu0 %1590
      %1592 = vrot.lane.b32.xlu0 %v1218, 120
      %v1593 = vpop.permute.xlu0 %1592
      %1594 = vrot.lane.b32.xlu0 %v1219, 120
      %v1595 = vpop.permute.xlu0 %1594
      %1596 = vrot.lane.b32.xlu0 %v1220, 120
      %v1597 = vpop.permute.xlu0 %1596
      %1598 = vrot.lane.b32.xlu0 %v1221, 120
      %v1599 = vpop.permute.xlu0 %1598
      %1600 = vrot.lane.b32.xlu0 %v1222, 120
      %v1601 = vpop.permute.xlu0 %1600
      %1602 = vrot.lane.b32.xlu0 %v1223, 120
      %v1603 = vpop.permute.xlu0 %1602
      %1604 = vrot.lane.b32.xlu0 %v1224, 120
      %v1605 = vpop.permute.xlu0 %1604
      %1606 = vrot.lane.b32.xlu0 %v1225, 120
      %v1607 = vpop.permute.xlu0 %1606
      %1608 = vrot.lane.b32.xlu0 %v1226, 120
      %v1609 = vpop.permute.xlu0 %1608
      %1610 = vrot.lane.b32.xlu0 %v1227, 120
      %v1611 = vpop.permute.xlu0 %1610
      %1612 = vrot.lane.b32.xlu0 %v1228, 120
      %v1613 = vpop.permute.xlu0 %1612
      %1614 = vrot.lane.b32.xlu0 %v1229, 120
      %v1615 = vpop.permute.xlu0 %1614
      %1616 = vrot.lane.b32.xlu0 %v1230, 120
      %v1617 = vpop.permute.xlu0 %1616
      %1618 = vrot.lane.b32.xlu0 %v1231, 120
      %v1619 = vpop.permute.xlu0 %1618
      %1620 = vrot.lane.b32.xlu0 %v1232, 120
      %v1621 = vpop.permute.xlu0 %1620
      %1622 = vrot.lane.b32.xlu0 %v1233, 120
      %v1623 = vpop.permute.xlu0 %1622
      %1624 = vrot.lane.b32.xlu0 %v1234, 120
      %v1625 = vpop.permute.xlu0 %1624
      %v1626 = vsel %vm1237, %v1563, 0
      %v1628 = vsel %vm1237, %v1565, 0
      %v1630 = vsel %vm1237, %v1567, 0
      %v1632 = vsel %vm1237, %v1569, 0
      %v1634 = vsel %vm1237, %v1571, 0
      %v1636 = vsel %vm1237, %v1573, 0
      %v1638 = vsel %vm1237, %v1575, 0
      %v1640 = vsel %vm1237, %v1577, 0
      %v1642 = vsel %vm1237, %v1579, 0
      %v1644 = vsel %vm1237, %v1581, 0
      %v1646 = vsel %vm1237, %v1583, 0
      %v1648 = vsel %vm1237, %v1585, 0
      %v1650 = vsel %vm1237, %v1587, 0
      %v1652 = vsel %vm1237, %v1589, 0
      %v1654 = vsel %vm1237, %v1591, 0
      %v1656 = vsel %vm1237, %v1593, 0
      %v1658 = vsel %vm1237, %v1595, 0
      %v1660 = vsel %vm1237, %v1597, 0
      %v1662 = vsel %vm1237, %v1599, 0
      %v1664 = vsel %vm1237, %v1601, 0
      %v1666 = vsel %vm1237, %v1603, 0
      %v1668 = vsel %vm1237, %v1605, 0
      %v1670 = vsel %vm1237, %v1607, 0
      %v1672 = vsel %vm1237, %v1609, 0
      %v1674 = vsel %vm1237, %v1611, 0
      %v1676 = vsel %vm1237, %v1613, 0
      %v1678 = vsel %vm1237, %v1615, 0
      %v1680 = vsel %vm1237, %v1617, 0
      %v1682 = vsel %vm1237, %v1619, 0
      %v1684 = vsel %vm1237, %v1621, 0
      %v1686 = vsel %vm1237, %v1623, 0
      %v1688 = vsel %vm1237, %v1625, 0
      %1690 = vmatprep.subr.mxu0 0.0
      %1691 = vmatpush1.msra.mxu0 0.0
      %1692 = vmatprep.subr.mxu0 0.0
      %1693 = vmatpush1.msra.mxu0 0.0
      %1694 = vmatprep.subr.mxu0 0.0
      %1695 = vmatpush1.msra.mxu0 0.0
      %1696 = vmatprep.subr.mxu0 0.0
      %1697 = vmatpush1.msra.mxu0 0.0
      %1698 = vmatprep.subr.mxu0 0.0
      %1699 = vmatpush1.msra.mxu0 0.0
      %1700 = vmatprep.subr.mxu0 0.0
      %1701 = vmatpush1.msra.mxu0 0.0
      %1702 = vmatprep.subr.mxu0 0.0
      %1703 = vmatpush1.msra.mxu0 0.0
      %1704 = vmatprep.subr.mxu0 0.0
      %1705 = vmatpush1.msra.mxu0 0.0
      %1706 = vmatprep.subr.mxu0 0.0
      %1707 = vmatpush1.msra.mxu0 0.0
      %1708 = vmatprep.subr.mxu0 0.0
      %1709 = vmatpush1.msra.mxu0 0.0
      %1710 = vmatprep.subr.mxu0 0.0
      %1711 = vmatpush1.msra.mxu0 0.0
      %1712 = vmatprep.subr.mxu0 0.0
      %1713 = vmatpush1.msra.mxu0 0.0
      %1714 = vmatprep.subr.mxu0 0.0
      %1715 = vmatpush1.msra.mxu0 0.0
      %1716 = vmatprep.subr.mxu0 0.0
      %1717 = vmatpush1.msra.mxu0 0.0
      %1718 = vmatprep.subr.mxu0 0.0
      %1719 = vmatpush1.msra.mxu0 %v1561
      %1720 = vmatprep.subr.mxu0 0.0
      %1721 = vmatpush1.msra.mxu0 %v1560
      %1722 = vmatprep.subr.mxu0 0.0
      %1723 = vmatpush2.msra.mxu0 0.0
      %1724 = vmatprep.subr.mxu0 0.0
      %1725 = vmatpush2.msra.mxu0 0.0
      %1726 = vmatprep.subr.mxu0 0.0
      %1727 = vmatpush2.msra.mxu0 0.0
      %1728 = vmatprep.subr.mxu0 0.0
      %1729 = vmatpush2.msra.mxu0 0.0
      %1730 = vmatprep.subr.mxu0 0.0
      %1731 = vmatpush2.msra.mxu0 0.0
      %1732 = vmatprep.subr.mxu0 0.0
      %1733 = vmatpush2.msra.mxu0 0.0
      %1734 = vmatprep.subr.mxu0 0.0
      %1735 = vmatpush2.msra.mxu0 0.0
      %1736 = vmatprep.subr.mxu0 0.0
      %1737 = vmatpush2.msra.mxu0 0.0
      %1738 = vmatprep.subr.mxu0 0.0
      %1739 = vmatpush2.msra.mxu0 0.0
      %1740 = vmatprep.subr.mxu0 0.0
      %1741 = vmatpush2.msra.mxu0 0.0
      %1742 = vmatprep.subr.mxu0 0.0
      %1743 = vmatpush2.msra.mxu0 0.0
      %1744 = vmatprep.subr.mxu0 0.0
      %1745 = vmatpush2.msra.mxu0 0.0
      %1746 = vmatprep.subr.mxu0 0.0
      %1747 = vmatpush2.msra.mxu0 0.0
      %1748 = vmatprep.subr.mxu0 0.0
      %1749 = vmatpush2.msra.mxu0 0.0
      %1750 = vmatprep.subr.mxu0 0.0
      %1751 = vmatpush2.msra.mxu0 0.0
      %1752 = vmatprep.subr.mxu0 0.0
      %1753 = vmatpush2.msra.mxu0 0.0
      %1754 = vmatprep.mubr.f32.mxu0 0.0
      %1755 = vmatmul.mubr.f32.gmra.mxu0 %v1626
      %v1756 = vpop.f32.mrf.mxu0
      %v1757 = vadd.f32 0.0, %v1756
      %v1758 = vpop.f32.mrf.mxu0
      %1759 = vmatprep.mubr.f32.mxu0 0.0
      %1760 = vmatmul.mubr.f32.gmra.mxu0 %v1628
      %v1761 = vpop.f32.mrf.mxu0
      %v1762 = vadd.f32 0.0, %v1761
      %v1763 = vpop.f32.mrf.mxu0
      %1764 = vmatprep.mubr.f32.mxu0 0.0
      %1765 = vmatmul.mubr.f32.gmra.mxu0 %v1630
      %v1766 = vpop.f32.mrf.mxu0
      %v1767 = vadd.f32 0.0, %v1766
      %v1768 = vpop.f32.mrf.mxu0
      %1769 = vmatprep.mubr.f32.mxu0 0.0
      %1770 = vmatmul.mubr.f32.gmra.mxu0 %v1632
      %v1771 = vpop.f32.mrf.mxu0
      %v1772 = vadd.f32 0.0, %v1771
      %v1773 = vpop.f32.mrf.mxu0
      %1774 = vmatprep.mubr.f32.mxu0 0.0
      %1775 = vmatmul.mubr.f32.gmra.mxu0 %v1634
      %v1776 = vpop.f32.mrf.mxu0
      %v1777 = vadd.f32 0.0, %v1776
      %v1778 = vpop.f32.mrf.mxu0
      %1779 = vmatprep.mubr.f32.mxu0 0.0
      %1780 = vmatmul.mubr.f32.gmra.mxu0 %v1636
      %v1781 = vpop.f32.mrf.mxu0
      %v1782 = vadd.f32 0.0, %v1781
      %v1783 = vpop.f32.mrf.mxu0
      %1784 = vmatprep.mubr.f32.mxu0 0.0
      %1785 = vmatmul.mubr.f32.gmra.mxu0 %v1638
      %v1786 = vpop.f32.mrf.mxu0
      %v1787 = vadd.f32 0.0, %v1786
      %v1788 = vpop.f32.mrf.mxu0
      %1789 = vmatprep.mubr.f32.mxu0 0.0
      %1790 = vmatmul.mubr.f32.gmra.mxu0 %v1640
      %v1791 = vpop.f32.mrf.mxu0
      %v1792 = vadd.f32 0.0, %v1791
      %v1793 = vpop.f32.mrf.mxu0
      %1794 = vmatprep.mubr.f32.mxu0 0.0
      %1795 = vmatmul.mubr.f32.gmra.mxu0 %v1642
      %v1796 = vpop.f32.mrf.mxu0
      %v1797 = vadd.f32 0.0, %v1796
      %v1798 = vpop.f32.mrf.mxu0
      %1799 = vmatprep.mubr.f32.mxu0 0.0
      %1800 = vmatmul.mubr.f32.gmra.mxu0 %v1644
      %v1801 = vpop.f32.mrf.mxu0
      %v1802 = vadd.f32 0.0, %v1801
      %v1803 = vpop.f32.mrf.mxu0
      %1804 = vmatprep.mubr.f32.mxu0 0.0
      %1805 = vmatmul.mubr.f32.gmra.mxu0 %v1646
      %v1806 = vpop.f32.mrf.mxu0
      %v1807 = vadd.f32 0.0, %v1806
      %v1808 = vpop.f32.mrf.mxu0
      %1809 = vmatprep.mubr.f32.mxu0 0.0
      %1810 = vmatmul.mubr.f32.gmra.mxu0 %v1648
      %v1811 = vpop.f32.mrf.mxu0
      %v1812 = vadd.f32 0.0, %v1811
      %v1813 = vpop.f32.mrf.mxu0
      %1814 = vmatprep.mubr.f32.mxu0 0.0
      %1815 = vmatmul.mubr.f32.gmra.mxu0 %v1650
      %v1816 = vpop.f32.mrf.mxu0
      %v1817 = vadd.f32 0.0, %v1816
      %v1818 = vpop.f32.mrf.mxu0
      %1819 = vmatprep.mubr.f32.mxu0 0.0
      %1820 = vmatmul.mubr.f32.gmra.mxu0 %v1652
      %v1821 = vpop.f32.mrf.mxu0
      %v1822 = vadd.f32 0.0, %v1821
      %v1823 = vpop.f32.mrf.mxu0
      %1824 = vmatprep.mubr.f32.mxu0 0.0
      %1825 = vmatmul.mubr.f32.gmra.mxu0 %v1654
      %v1826 = vpop.f32.mrf.mxu0
      %v1827 = vadd.f32 0.0, %v1826
      %v1828 = vpop.f32.mrf.mxu0
      %1829 = vmatprep.mubr.f32.mxu0 0.0
      %1830 = vmatmul.mubr.f32.gmra.mxu0 %v1656
      %v1831 = vpop.f32.mrf.mxu0
      %v1832 = vadd.f32 0.0, %v1831
      %v1833 = vpop.f32.mrf.mxu0
      %1834 = vmatprep.mubr.f32.mxu0 0.0
      %1835 = vmatmul.mubr.f32.gmra.mxu0 %v1658
      %v1836 = vpop.f32.mrf.mxu0
      %v1837 = vadd.f32 0.0, %v1836
      %v1838 = vpop.f32.mrf.mxu0
      %1839 = vmatprep.mubr.f32.mxu0 0.0
      %1840 = vmatmul.mubr.f32.gmra.mxu0 %v1660
      %v1841 = vpop.f32.mrf.mxu0
      %v1842 = vadd.f32 0.0, %v1841
      %v1843 = vpop.f32.mrf.mxu0
      %1844 = vmatprep.mubr.f32.mxu0 0.0
      %1845 = vmatmul.mubr.f32.gmra.mxu0 %v1662
      %v1846 = vpop.f32.mrf.mxu0
      %v1847 = vadd.f32 0.0, %v1846
      %v1848 = vpop.f32.mrf.mxu0
      %1849 = vmatprep.mubr.f32.mxu0 0.0
      %1850 = vmatmul.mubr.f32.gmra.mxu0 %v1664
      %v1851 = vpop.f32.mrf.mxu0
      %v1852 = vadd.f32 0.0, %v1851
      %v1853 = vpop.f32.mrf.mxu0
      %1854 = vmatprep.mubr.f32.mxu0 0.0
      %1855 = vmatmul.mubr.f32.gmra.mxu0 %v1666
      %v1856 = vpop.f32.mrf.mxu0
      %v1857 = vadd.f32 0.0, %v1856
      %v1858 = vpop.f32.mrf.mxu0
      %1859 = vmatprep.mubr.f32.mxu0 0.0
      %1860 = vmatmul.mubr.f32.gmra.mxu0 %v1668
      %v1861 = vpop.f32.mrf.mxu0
      %v1862 = vadd.f32 0.0, %v1861
      %v1863 = vpop.f32.mrf.mxu0
      %1864 = vmatprep.mubr.f32.mxu0 0.0
      %1865 = vmatmul.mubr.f32.gmra.mxu0 %v1670
      %v1866 = vpop.f32.mrf.mxu0
      %v1867 = vadd.f32 0.0, %v1866
      %v1868 = vpop.f32.mrf.mxu0
      %1869 = vmatprep.mubr.f32.mxu0 0.0
      %1870 = vmatmul.mubr.f32.gmra.mxu0 %v1672
      %v1871 = vpop.f32.mrf.mxu0
      %v1872 = vadd.f32 0.0, %v1871
      %v1873 = vpop.f32.mrf.mxu0
      %1874 = vmatprep.mubr.f32.mxu0 0.0
      %1875 = vmatmul.mubr.f32.gmra.mxu0 %v1674
      %v1876 = vpop.f32.mrf.mxu0
      %v1877 = vadd.f32 0.0, %v1876
      %v1878 = vpop.f32.mrf.mxu0
      %1879 = vmatprep.mubr.f32.mxu0 0.0
      %1880 = vmatmul.mubr.f32.gmra.mxu0 %v1676
      %v1881 = vpop.f32.mrf.mxu0
      %v1882 = vadd.f32 0.0, %v1881
      %v1883 = vpop.f32.mrf.mxu0
      %1884 = vmatprep.mubr.f32.mxu0 0.0
      %1885 = vmatmul.mubr.f32.gmra.mxu0 %v1678
      %v1886 = vpop.f32.mrf.mxu0
      %v1887 = vadd.f32 0.0, %v1886
      %v1888 = vpop.f32.mrf.mxu0
      %1889 = vmatprep.mubr.f32.mxu0 0.0
      %1890 = vmatmul.mubr.f32.gmra.mxu0 %v1680
      %v1891 = vpop.f32.mrf.mxu0
      %v1892 = vadd.f32 0.0, %v1891
      %v1893 = vpop.f32.mrf.mxu0
      %1894 = vmatprep.mubr.f32.mxu0 0.0
      %1895 = vmatmul.mubr.f32.gmra.mxu0 %v1682
      %v1896 = vpop.f32.mrf.mxu0
      %v1897 = vadd.f32 0.0, %v1896
      %v1898 = vpop.f32.mrf.mxu0
      %1899 = vmatprep.mubr.f32.mxu0 0.0
      %1900 = vmatmul.mubr.f32.gmra.mxu0 %v1684
      %v1901 = vpop.f32.mrf.mxu0
      %v1902 = vadd.f32 0.0, %v1901
      %v1903 = vpop.f32.mrf.mxu0
      %1904 = vmatprep.mubr.f32.mxu0 0.0
      %1905 = vmatmul.mubr.f32.gmra.mxu0 %v1686
      %v1906 = vpop.f32.mrf.mxu0
      %v1907 = vadd.f32 0.0, %v1906
      %v1908 = vpop.f32.mrf.mxu0
      %1909 = vmatprep.mubr.f32.mxu0 0.0
      %1910 = vmatmul.mubr.f32.gmra.mxu0 %v1688
      %v1911 = vpop.f32.mrf.mxu0
      %v1912 = vadd.f32 0.0, %v1911
      %v1913 = vpop.f32.mrf.mxu0
      %1914 = vdwg.mxu0
      %1947 = vrot.lane.b32.xlu0 %v1757, 8
      %v1948 = vpop.permute.xlu0 %1947
      %1949 = vrot.lane.b32.xlu0 %v1762, 8
      %v1950 = vpop.permute.xlu0 %1949
      %1951 = vrot.lane.b32.xlu0 %v1767, 8
      %v1952 = vpop.permute.xlu0 %1951
      %1953 = vrot.lane.b32.xlu0 %v1772, 8
      %v1954 = vpop.permute.xlu0 %1953
      %1955 = vrot.lane.b32.xlu0 %v1777, 8
      %v1956 = vpop.permute.xlu0 %1955
      %1957 = vrot.lane.b32.xlu0 %v1782, 8
      %v1958 = vpop.permute.xlu0 %1957
      %1959 = vrot.lane.b32.xlu0 %v1787, 8
      %v1960 = vpop.permute.xlu0 %1959
      %1961 = vrot.lane.b32.xlu0 %v1792, 8
      %v1962 = vpop.permute.xlu0 %1961
      %1963 = vrot.lane.b32.xlu0 %v1797, 8
      %v1964 = vpop.permute.xlu0 %1963
      %1965 = vrot.lane.b32.xlu0 %v1802, 8
      %v1966 = vpop.permute.xlu0 %1965
      %1967 = vrot.lane.b32.xlu0 %v1807, 8
      %v1968 = vpop.permute.xlu0 %1967
      %1969 = vrot.lane.b32.xlu0 %v1812, 8
      %v1970 = vpop.permute.xlu0 %1969
      %1971 = vrot.lane.b32.xlu0 %v1817, 8
      %v1972 = vpop.permute.xlu0 %1971
      %1973 = vrot.lane.b32.xlu0 %v1822, 8
      %v1974 = vpop.permute.xlu0 %1973
      %1975 = vrot.lane.b32.xlu0 %v1827, 8
      %v1976 = vpop.permute.xlu0 %1975
      %1977 = vrot.lane.b32.xlu0 %v1832, 8
      %v1978 = vpop.permute.xlu0 %1977
      %1979 = vrot.lane.b32.xlu0 %v1837, 8
      %v1980 = vpop.permute.xlu0 %1979
      %1981 = vrot.lane.b32.xlu0 %v1842, 8
      %v1982 = vpop.permute.xlu0 %1981
      %1983 = vrot.lane.b32.xlu0 %v1847, 8
      %v1984 = vpop.permute.xlu0 %1983
      %1985 = vrot.lane.b32.xlu0 %v1852, 8
      %v1986 = vpop.permute.xlu0 %1985
      %1987 = vrot.lane.b32.xlu0 %v1857, 8
      %v1988 = vpop.permute.xlu0 %1987
      %1989 = vrot.lane.b32.xlu0 %v1862, 8
      %v1990 = vpop.permute.xlu0 %1989
      %1991 = vrot.lane.b32.xlu0 %v1867, 8
      %v1992 = vpop.permute.xlu0 %1991
      %1993 = vrot.lane.b32.xlu0 %v1872, 8
      %v1994 = vpop.permute.xlu0 %1993
      %1995 = vrot.lane.b32.xlu0 %v1877, 8
      %v1996 = vpop.permute.xlu0 %1995
      %1997 = vrot.lane.b32.xlu0 %v1882, 8
      %v1998 = vpop.permute.xlu0 %1997
      %1999 = vrot.lane.b32.xlu0 %v1887, 8
      %v2000 = vpop.permute.xlu0 %1999
      %2001 = vrot.lane.b32.xlu0 %v1892, 8
      %v2002 = vpop.permute.xlu0 %2001
      %2003 = vrot.lane.b32.xlu0 %v1897, 8
      %v2004 = vpop.permute.xlu0 %2003
      %2005 = vrot.lane.b32.xlu0 %v1902, 8
      %v2006 = vpop.permute.xlu0 %2005
      %2007 = vrot.lane.b32.xlu0 %v1907, 8
      %v2008 = vpop.permute.xlu0 %2007
      %2009 = vrot.lane.b32.xlu0 %v1912, 8
      %v2010 = vpop.permute.xlu0 %2009
      %vm2043 = vcmask 64512
      %v2044 = vsel %vm2043, %v1401, %v1948
      %v2045 = vsel %vm2043, %v1406, %v1950
      %v2046 = vsel %vm2043, %v1411, %v1952
      %v2047 = vsel %vm2043, %v1416, %v1954
      %v2048 = vsel %vm2043, %v1421, %v1956
      %v2049 = vsel %vm2043, %v1426, %v1958
      %v2050 = vsel %vm2043, %v1431, %v1960
      %v2051 = vsel %vm2043, %v1436, %v1962
      %v2052 = vsel %vm2043, %v1441, %v1964
      %v2053 = vsel %vm2043, %v1446, %v1966
      %v2054 = vsel %vm2043, %v1451, %v1968
      %v2055 = vsel %vm2043, %v1456, %v1970
      %v2056 = vsel %vm2043, %v1461, %v1972
      %v2057 = vsel %vm2043, %v1466, %v1974
      %v2058 = vsel %vm2043, %v1471, %v1976
      %v2059 = vsel %vm2043, %v1476, %v1978
      %v2060 = vsel %vm2043, %v1481, %v1980
      %v2061 = vsel %vm2043, %v1486, %v1982
      %v2062 = vsel %vm2043, %v1491, %v1984
      %v2063 = vsel %vm2043, %v1496, %v1986
      %v2064 = vsel %vm2043, %v1501, %v1988
      %v2065 = vsel %vm2043, %v1506, %v1990
      %v2066 = vsel %vm2043, %v1511, %v1992
      %v2067 = vsel %vm2043, %v1516, %v1994
      %v2068 = vsel %vm2043, %v1521, %v1996
      %v2069 = vsel %vm2043, %v1526, %v1998
      %v2070 = vsel %vm2043, %v1531, %v2000
      %v2071 = vsel %vm2043, %v1536, %v2002
      %v2072 = vsel %vm2043, %v1541, %v2004
      %v2073 = vsel %vm2043, %v1546, %v2006
      %v2074 = vsel %vm2043, %v1551, %v2008
      %v2075 = vsel %vm2043, %v1556, %v2010
      %v2077 = vlaneseq
      %v2078 = vshrl.u32 %v2077, 7
      %v2079 = vsub.s32 0, %v2078
      %v2080 = vrot.slane %v171, %v2079
      %v2082 = vadd.f32 %v2044, %v2080
      %v2083 = vadd.f32 %v2045, %v2080
      %v2084 = vadd.f32 %v2046, %v2080
      %v2085 = vadd.f32 %v2047, %v2080
      %v2086 = vadd.f32 %v2048, %v2080
      %v2087 = vadd.f32 %v2049, %v2080
      %v2088 = vadd.f32 %v2050, %v2080
      %v2089 = vadd.f32 %v2051, %v2080
      %v2090 = vadd.f32 %v2052, %v2080
      %v2091 = vadd.f32 %v2053, %v2080
      %v2092 = vadd.f32 %v2054, %v2080
      %v2093 = vadd.f32 %v2055, %v2080
      %v2094 = vadd.f32 %v2056, %v2080
      %v2095 = vadd.f32 %v2057, %v2080
      %v2096 = vadd.f32 %v2058, %v2080
      %v2097 = vadd.f32 %v2059, %v2080
      %v2098 = vadd.f32 %v2060, %v2080
      %v2099 = vadd.f32 %v2061, %v2080
      %v2100 = vadd.f32 %v2062, %v2080
      %v2101 = vadd.f32 %v2063, %v2080
      %v2102 = vadd.f32 %v2064, %v2080
      %v2103 = vadd.f32 %v2065, %v2080
      %v2104 = vadd.f32 %v2066, %v2080
      %v2105 = vadd.f32 %v2067, %v2080
      %v2106 = vadd.f32 %v2068, %v2080
      %v2107 = vadd.f32 %v2069, %v2080
      %v2108 = vadd.f32 %v2070, %v2080
      %v2109 = vadd.f32 %v2071, %v2080
      %v2110 = vadd.f32 %v2072, %v2080
      %v2111 = vadd.f32 %v2073, %v2080
      %v2112 = vadd.f32 %v2074, %v2080
      %v2113 = vadd.f32 %v2075, %v2080
      %2114 = vst.msk [vmem:[%s170] sm:$0xff] %vm1237, %v2082
      %2115 = vst.msk [vmem:[%s170 + $0x8] sm:$0xff] %vm1237, %v2083
      %2116 = vst.msk [vmem:[%s170 + $0x10] sm:$0xff] %vm1237, %v2084
      %2117 = vst.msk [vmem:[%s170 + $0x18] sm:$0xff] %vm1237, %v2085
      %2118 = vst.msk [vmem:[%s170 + $0x20] sm:$0xff] %vm1237, %v2086
      %2119 = vst.msk [vmem:[%s170 + $0x28] sm:$0xff] %vm1237, %v2087
      %2120 = vst.msk [vmem:[%s170 + $0x30] sm:$0xff] %vm1237, %v2088
      %2121 = vst.msk [vmem:[%s170 + $0x38] sm:$0xff] %vm1237, %v2089
      %2122 = vst.msk [vmem:[%s170 + $0x40] sm:$0xff] %vm1237, %v2090
      %2123 = vst.msk [vmem:[%s170 + $0x48] sm:$0xff] %vm1237, %v2091
      %2124 = vst.msk [vmem:[%s170 + $0x50] sm:$0xff] %vm1237, %v2092
      %2125 = vst.msk [vmem:[%s170 + $0x58] sm:$0xff] %vm1237, %v2093
      %2126 = vst.msk [vmem:[%s170 + $0x60] sm:$0xff] %vm1237, %v2094
      %2127 = vst.msk [vmem:[%s170 + $0x68] sm:$0xff] %vm1237, %v2095
      %2128 = vst.msk [vmem:[%s170 + $0x70] sm:$0xff] %vm1237, %v2096
      %2129 = vst.msk [vmem:[%s170 + $0x78] sm:$0xff] %vm1237, %v2097
      %2130 = vst.msk [vmem:[%s170 + $0x80] sm:$0xff] %vm1237, %v2098
      %2131 = vst.msk [vmem:[%s170 + $0x88] sm:$0xff] %vm1237, %v2099
      %2132 = vst.msk [vmem:[%s170 + $0x90] sm:$0xff] %vm1237, %v2100
      %2133 = vst.msk [vmem:[%s170 + $0x98] sm:$0xff] %vm1237, %v2101
      %2134 = vst.msk [vmem:[%s170 + $0xa0] sm:$0xff] %vm1237, %v2102
      %2135 = vst.msk [vmem:[%s170 + $0xa8] sm:$0xff] %vm1237, %v2103
      %2136 = vst.msk [vmem:[%s170 + $0xb0] sm:$0xff] %vm1237, %v2104
      %2137 = vst.msk [vmem:[%s170 + $0xb8] sm:$0xff] %vm1237, %v2105
      %2138 = vst.msk [vmem:[%s170 + $0xc0] sm:$0xff] %vm1237, %v2106
      %2139 = vst.msk [vmem:[%s170 + $0xc8] sm:$0xff] %vm1237, %v2107
      %2140 = vst.msk [vmem:[%s170 + $0xd0] sm:$0xff] %vm1237, %v2108
      %2141 = vst.msk [vmem:[%s170 + $0xd8] sm:$0xff] %vm1237, %v2109
      %2142 = vst.msk [vmem:[%s170 + $0xe0] sm:$0xff] %vm1237, %v2110
      %2143 = vst.msk [vmem:[%s170 + $0xe8] sm:$0xff] %vm1237, %v2111
      %2144 = vst.msk [vmem:[%s170 + $0xf0] sm:$0xff] %vm1237, %v2112
      %2145 = vst.msk [vmem:[%s170 + $0xf8] sm:$0xff] %vm1237, %v2113
      %v2146 = vld [vmem:[%s237] sm:$0xff]
      %v2147 = vld [vmem:[%s237 + $0x8] sm:$0xff]
      %v2148 = vld [vmem:[%s237 + $0x18] sm:$0xff]
      %v2149 = vld [vmem:[%s237 + $0x20] sm:$0xff]
      %v2150 = vld [vmem:[%s237 + $0x30] sm:$0xff]
      %v2151 = vld [vmem:[%s237 + $0x38] sm:$0xff]
      %v2152 = vld [vmem:[%s237 + $0x48] sm:$0xff]
      %v2153 = vld [vmem:[%s237 + $0x50] sm:$0xff]
      %v2154 = vld [vmem:[%s237 + $0x60] sm:$0xff]
      %v2155 = vld [vmem:[%s237 + $0x68] sm:$0xff]
      %v2156 = vld [vmem:[%s237 + $0x78] sm:$0xff]
      %v2157 = vld [vmem:[%s237 + $0x80] sm:$0xff]
      %v2158 = vld [vmem:[%s237 + $0x90] sm:$0xff]
      %v2159 = vld [vmem:[%s237 + $0x98] sm:$0xff]
      %v2160 = vld [vmem:[%s237 + $0xa8] sm:$0xff]
      %v2161 = vld [vmem:[%s237 + $0xb0] sm:$0xff]
      %v2162 = vld [vmem:[%s237 + $0xc0] sm:$0xff]
      %v2163 = vld [vmem:[%s237 + $0xc8] sm:$0xff]
      %v2164 = vld [vmem:[%s237 + $0xd8] sm:$0xff]
      %v2165 = vld [vmem:[%s237 + $0xe0] sm:$0xff]
      %v2166 = vld [vmem:[%s237 + $0xf0] sm:$0xff]
      %v2167 = vld [vmem:[%s237 + $0xf8] sm:$0xff]
      %v2168 = vld [vmem:[%s237 + $0x108] sm:$0xff]
      %v2169 = vld [vmem:[%s237 + $0x110] sm:$0xff]
      %v2170 = vld [vmem:[%s237 + $0x120] sm:$0xff]
      %v2171 = vld [vmem:[%s237 + $0x128] sm:$0xff]
      %v2172 = vld [vmem:[%s237 + $0x138] sm:$0xff]
      %v2173 = vld [vmem:[%s237 + $0x140] sm:$0xff]
      %v2174 = vld [vmem:[%s237 + $0x150] sm:$0xff]
      %v2175 = vld [vmem:[%s237 + $0x158] sm:$0xff]
      %v2176 = vld [vmem:[%s237 + $0x168] sm:$0xff]
      %v2177 = vld [vmem:[%s237 + $0x170] sm:$0xff]
      %s2178 = scalar_lea.vmem [#allocation2], 256
      %2179 = vst.msk [vmem:[%s2178] sm:$0xff] %vm204, %v2146
      %2180 = vst.msk [vmem:[%s2178 + $0x8] sm:$0xff] %vm204, %v2147
      %2181 = vst.msk [vmem:[%s2178 + $0x10] sm:$0xff] %vm204, %v2148
      %2182 = vst.msk [vmem:[%s2178 + $0x18] sm:$0xff] %vm204, %v2149
      %2183 = vst.msk [vmem:[%s2178 + $0x20] sm:$0xff] %vm204, %v2150
      %2184 = vst.msk [vmem:[%s2178 + $0x28] sm:$0xff] %vm204, %v2151
      %2185 = vst.msk [vmem:[%s2178 + $0x30] sm:$0xff] %vm204, %v2152
      %2186 = vst.msk [vmem:[%s2178 + $0x38] sm:$0xff] %vm204, %v2153
      %2187 = vst.msk [vmem:[%s2178 + $0x40] sm:$0xff] %vm204, %v2154
      %2188 = vst.msk [vmem:[%s2178 + $0x48] sm:$0xff] %vm204, %v2155
      %2189 = vst.msk [vmem:[%s2178 + $0x50] sm:$0xff] %vm204, %v2156
      %2190 = vst.msk [vmem:[%s2178 + $0x58] sm:$0xff] %vm204, %v2157
      %2191 = vst.msk [vmem:[%s2178 + $0x60] sm:$0xff] %vm204, %v2158
      %2192 = vst.msk [vmem:[%s2178 + $0x68] sm:$0xff] %vm204, %v2159
      %2193 = vst.msk [vmem:[%s2178 + $0x70] sm:$0xff] %vm204, %v2160
      %2194 = vst.msk [vmem:[%s2178 + $0x78] sm:$0xff] %vm204, %v2161
      %2195 = vst.msk [vmem:[%s2178 + $0x80] sm:$0xff] %vm204, %v2162
      %2196 = vst.msk [vmem:[%s2178 + $0x88] sm:$0xff] %vm204, %v2163
      %2197 = vst.msk [vmem:[%s2178 + $0x90] sm:$0xff] %vm204, %v2164
      %2198 = vst.msk [vmem:[%s2178 + $0x98] sm:$0xff] %vm204, %v2165
      %2199 = vst.msk [vmem:[%s2178 + $0xa0] sm:$0xff] %vm204, %v2166
      %2200 = vst.msk [vmem:[%s2178 + $0xa8] sm:$0xff] %vm204, %v2167
      %2201 = vst.msk [vmem:[%s2178 + $0xb0] sm:$0xff] %vm204, %v2168
      %2202 = vst.msk [vmem:[%s2178 + $0xb8] sm:$0xff] %vm204, %v2169
      %2203 = vst.msk [vmem:[%s2178 + $0xc0] sm:$0xff] %vm204, %v2170
      %2204 = vst.msk [vmem:[%s2178 + $0xc8] sm:$0xff] %vm204, %v2171
      %2205 = vst.msk [vmem:[%s2178 + $0xd0] sm:$0xff] %vm204, %v2172
      %2206 = vst.msk [vmem:[%s2178 + $0xd8] sm:$0xff] %vm204, %v2173
      %2207 = vst.msk [vmem:[%s2178 + $0xe0] sm:$0xff] %vm204, %v2174
      %2208 = vst.msk [vmem:[%s2178 + $0xe8] sm:$0xff] %vm204, %v2175
      %2209 = vst.msk [vmem:[%s2178 + $0xf0] sm:$0xff] %vm204, %v2176
      %2210 = vst.msk [vmem:[%s2178 + $0xf8] sm:$0xff] %vm204, %v2177
      %s2211 = scalar_lea.vmem %s165, 48
      %v2212 = vld [vmem:[%s2211] sm:$0xff]
      %v2213 = vld [vmem:[%s2211 + $0x8] sm:$0xff]
      %v2214 = vld [vmem:[%s2211 + $0x18] sm:$0xff]
      %v2215 = vld [vmem:[%s2211 + $0x20] sm:$0xff]
      %v2216 = vld [vmem:[%s2211 + $0x30] sm:$0xff]
      %v2217 = vld [vmem:[%s2211 + $0x38] sm:$0xff]
      %v2218 = vld [vmem:[%s2211 + $0x48] sm:$0xff]
      %v2219 = vld [vmem:[%s2211 + $0x50] sm:$0xff]
      %v2220 = vld [vmem:[%s2211 + $0x60] sm:$0xff]
      %v2221 = vld [vmem:[%s2211 + $0x68] sm:$0xff]
      %v2222 = vld [vmem:[%s2211 + $0x78] sm:$0xff]
      %v2223 = vld [vmem:[%s2211 + $0x80] sm:$0xff]
      %v2224 = vld [vmem:[%s2211 + $0x90] sm:$0xff]
      %v2225 = vld [vmem:[%s2211 + $0x98] sm:$0xff]
      %v2226 = vld [vmem:[%s2211 + $0xa8] sm:$0xff]
      %v2227 = vld [vmem:[%s2211 + $0xb0] sm:$0xff]
      %v2228 = vld [vmem:[%s2211 + $0xc0] sm:$0xff]
      %v2229 = vld [vmem:[%s2211 + $0xc8] sm:$0xff]
      %v2230 = vld [vmem:[%s2211 + $0xd8] sm:$0xff]
      %v2231 = vld [vmem:[%s2211 + $0xe0] sm:$0xff]
      %v2232 = vld [vmem:[%s2211 + $0xf0] sm:$0xff]
      %v2233 = vld [vmem:[%s2211 + $0xf8] sm:$0xff]
      %v2234 = vld [vmem:[%s2211 + $0x108] sm:$0xff]
      %v2235 = vld [vmem:[%s2211 + $0x110] sm:$0xff]
      %v2236 = vld [vmem:[%s2211 + $0x120] sm:$0xff]
      %v2237 = vld [vmem:[%s2211 + $0x128] sm:$0xff]
      %v2238 = vld [vmem:[%s2211 + $0x138] sm:$0xff]
      %v2239 = vld [vmem:[%s2211 + $0x140] sm:$0xff]
      %v2240 = vld [vmem:[%s2211 + $0x150] sm:$0xff]
      %v2241 = vld [vmem:[%s2211 + $0x158] sm:$0xff]
      %v2242 = vld [vmem:[%s2211 + $0x168] sm:$0xff]
      %v2243 = vld [vmem:[%s2211 + $0x170] sm:$0xff]
      %2276 = vrot.lane.b32.xlu0 %v2212, 4
      %v2277 = vpop.permute.xlu0 %2276
      %2278 = vrot.lane.b32.xlu0 %v2213, 4
      %v2279 = vpop.permute.xlu0 %2278
      %2280 = vrot.lane.b32.xlu0 %v2214, 4
      %v2281 = vpop.permute.xlu0 %2280
      %2282 = vrot.lane.b32.xlu0 %v2215, 4
      %v2283 = vpop.permute.xlu0 %2282
      %2284 = vrot.lane.b32.xlu0 %v2216, 4
      %v2285 = vpop.permute.xlu0 %2284
      %2286 = vrot.lane.b32.xlu0 %v2217, 4
      %v2287 = vpop.permute.xlu0 %2286
      %2288 = vrot.lane.b32.xlu0 %v2218, 4
      %v2289 = vpop.permute.xlu0 %2288
      %2290 = vrot.lane.b32.xlu0 %v2219, 4
      %v2291 = vpop.permute.xlu0 %2290
      %2292 = vrot.lane.b32.xlu0 %v2220, 4
      %v2293 = vpop.permute.xlu0 %2292
      %2294 = vrot.lane.b32.xlu0 %v2221, 4
      %v2295 = vpop.permute.xlu0 %2294
      %2296 = vrot.lane.b32.xlu0 %v2222, 4
      %v2297 = vpop.permute.xlu0 %2296
      %2298 = vrot.lane.b32.xlu0 %v2223, 4
      %v2299 = vpop.permute.xlu0 %2298
      %2300 = vrot.lane.b32.xlu0 %v2224, 4
      %v2301 = vpop.permute.xlu0 %2300
      %2302 = vrot.lane.b32.xlu0 %v2225, 4
      %v2303 = vpop.permute.xlu0 %2302
      %2304 = vrot.lane.b32.xlu0 %v2226, 4
      %v2305 = vpop.permute.xlu0 %2304
      %2306 = vrot.lane.b32.xlu0 %v2227, 4
      %v2307 = vpop.permute.xlu0 %2306
      %2308 = vrot.lane.b32.xlu0 %v2228, 4
      %v2309 = vpop.permute.xlu0 %2308
      %2310 = vrot.lane.b32.xlu0 %v2229, 4
      %v2311 = vpop.permute.xlu0 %2310
      %2312 = vrot.lane.b32.xlu0 %v2230, 4
      %v2313 = vpop.permute.xlu0 %2312
      %2314 = vrot.lane.b32.xlu0 %v2231, 4
      %v2315 = vpop.permute.xlu0 %2314
      %2316 = vrot.lane.b32.xlu0 %v2232, 4
      %v2317 = vpop.permute.xlu0 %2316
      %2318 = vrot.lane.b32.xlu0 %v2233, 4
      %v2319 = vpop.permute.xlu0 %2318
      %2320 = vrot.lane.b32.xlu0 %v2234, 4
      %v2321 = vpop.permute.xlu0 %2320
      %2322 = vrot.lane.b32.xlu0 %v2235, 4
      %v2323 = vpop.permute.xlu0 %2322
      %2324 = vrot.lane.b32.xlu0 %v2236, 4
      %v2325 = vpop.permute.xlu0 %2324
      %2326 = vrot.lane.b32.xlu0 %v2237, 4
      %v2327 = vpop.permute.xlu0 %2326
      %2328 = vrot.lane.b32.xlu0 %v2238, 4
      %v2329 = vpop.permute.xlu0 %2328
      %2330 = vrot.lane.b32.xlu0 %v2239, 4
      %v2331 = vpop.permute.xlu0 %2330
      %2332 = vrot.lane.b32.xlu0 %v2240, 4
      %v2333 = vpop.permute.xlu0 %2332
      %2334 = vrot.lane.b32.xlu0 %v2241, 4
      %v2335 = vpop.permute.xlu0 %2334
      %2336 = vrot.lane.b32.xlu0 %v2242, 4
      %v2337 = vpop.permute.xlu0 %2336
      %2338 = vrot.lane.b32.xlu0 %v2243, 4
      %v2339 = vpop.permute.xlu0 %2338
      %2372 = vst.msk [vmem:[%s2178] sm:$0xff] %vm398, %v2277
      %2373 = vst.msk [vmem:[%s2178 + $0x8] sm:$0xff] %vm398, %v2279
      %2374 = vst.msk [vmem:[%s2178 + $0x10] sm:$0xff] %vm398, %v2281
      %2375 = vst.msk [vmem:[%s2178 + $0x18] sm:$0xff] %vm398, %v2283
      %2376 = vst.msk [vmem:[%s2178 + $0x20] sm:$0xff] %vm398, %v2285
      %2377 = vst.msk [vmem:[%s2178 + $0x28] sm:$0xff] %vm398, %v2287
      %2378 = vst.msk [vmem:[%s2178 + $0x30] sm:$0xff] %vm398, %v2289
      %2379 = vst.msk [vmem:[%s2178 + $0x38] sm:$0xff] %vm398, %v2291
      %2380 = vst.msk [vmem:[%s2178 + $0x40] sm:$0xff] %vm398, %v2293
      %2381 = vst.msk [vmem:[%s2178 + $0x48] sm:$0xff] %vm398, %v2295
      %2382 = vst.msk [vmem:[%s2178 + $0x50] sm:$0xff] %vm398, %v2297
      %2383 = vst.msk [vmem:[%s2178 + $0x58] sm:$0xff] %vm398, %v2299
      %2384 = vst.msk [vmem:[%s2178 + $0x60] sm:$0xff] %vm398, %v2301
      %2385 = vst.msk [vmem:[%s2178 + $0x68] sm:$0xff] %vm398, %v2303
      %2386 = vst.msk [vmem:[%s2178 + $0x70] sm:$0xff] %vm398, %v2305
      %2387 = vst.msk [vmem:[%s2178 + $0x78] sm:$0xff] %vm398, %v2307
      %2388 = vst.msk [vmem:[%s2178 + $0x80] sm:$0xff] %vm398, %v2309
      %2389 = vst.msk [vmem:[%s2178 + $0x88] sm:$0xff] %vm398, %v2311
      %2390 = vst.msk [vmem:[%s2178 + $0x90] sm:$0xff] %vm398, %v2313
      %2391 = vst.msk [vmem:[%s2178 + $0x98] sm:$0xff] %vm398, %v2315
      %2392 = vst.msk [vmem:[%s2178 + $0xa0] sm:$0xff] %vm398, %v2317
      %2393 = vst.msk [vmem:[%s2178 + $0xa8] sm:$0xff] %vm398, %v2319
      %2394 = vst.msk [vmem:[%s2178 + $0xb0] sm:$0xff] %vm398, %v2321
      %2395 = vst.msk [vmem:[%s2178 + $0xb8] sm:$0xff] %vm398, %v2323
      %2396 = vst.msk [vmem:[%s2178 + $0xc0] sm:$0xff] %vm398, %v2325
      %2397 = vst.msk [vmem:[%s2178 + $0xc8] sm:$0xff] %vm398, %v2327
      %2398 = vst.msk [vmem:[%s2178 + $0xd0] sm:$0xff] %vm398, %v2329
      %2399 = vst.msk [vmem:[%s2178 + $0xd8] sm:$0xff] %vm398, %v2331
      %2400 = vst.msk [vmem:[%s2178 + $0xe0] sm:$0xff] %vm398, %v2333
      %2401 = vst.msk [vmem:[%s2178 + $0xe8] sm:$0xff] %vm398, %v2335
      %2402 = vst.msk [vmem:[%s2178 + $0xf0] sm:$0xff] %vm398, %v2337
      %2403 = vst.msk [vmem:[%s2178 + $0xf8] sm:$0xff] %vm398, %v2339
      %v2404 = vld [vmem:[%s237 + $0x1] sm:$0xff]
      %v2405 = vld [vmem:[%s237 + $0x9] sm:$0xff]
      %v2406 = vld [vmem:[%s237 + $0x19] sm:$0xff]
      %v2407 = vld [vmem:[%s237 + $0x21] sm:$0xff]
      %v2408 = vld [vmem:[%s237 + $0x31] sm:$0xff]
      %v2409 = vld [vmem:[%s237 + $0x39] sm:$0xff]
      %v2410 = vld [vmem:[%s237 + $0x49] sm:$0xff]
      %v2411 = vld [vmem:[%s237 + $0x51] sm:$0xff]
      %v2412 = vld [vmem:[%s237 + $0x61] sm:$0xff]
      %v2413 = vld [vmem:[%s237 + $0x69] sm:$0xff]
      %v2414 = vld [vmem:[%s237 + $0x79] sm:$0xff]
      %v2415 = vld [vmem:[%s237 + $0x81] sm:$0xff]
      %v2416 = vld [vmem:[%s237 + $0x91] sm:$0xff]
      %v2417 = vld [vmem:[%s237 + $0x99] sm:$0xff]
      %v2418 = vld [vmem:[%s237 + $0xa9] sm:$0xff]
      %v2419 = vld [vmem:[%s237 + $0xb1] sm:$0xff]
      %v2420 = vld [vmem:[%s237 + $0xc1] sm:$0xff]
      %v2421 = vld [vmem:[%s237 + $0xc9] sm:$0xff]
      %v2422 = vld [vmem:[%s237 + $0xd9] sm:$0xff]
      %v2423 = vld [vmem:[%s237 + $0xe1] sm:$0xff]
      %v2424 = vld [vmem:[%s237 + $0xf1] sm:$0xff]
      %v2425 = vld [vmem:[%s237 + $0xf9] sm:$0xff]
      %v2426 = vld [vmem:[%s237 + $0x109] sm:$0xff]
      %v2427 = vld [vmem:[%s237 + $0x111] sm:$0xff]
      %v2428 = vld [vmem:[%s237 + $0x121] sm:$0xff]
      %v2429 = vld [vmem:[%s237 + $0x129] sm:$0xff]
      %v2430 = vld [vmem:[%s237 + $0x139] sm:$0xff]
      %v2431 = vld [vmem:[%s237 + $0x141] sm:$0xff]
      %v2432 = vld [vmem:[%s237 + $0x151] sm:$0xff]
      %v2433 = vld [vmem:[%s237 + $0x159] sm:$0xff]
      %v2434 = vld [vmem:[%s237 + $0x169] sm:$0xff]
      %v2435 = vld [vmem:[%s237 + $0x171] sm:$0xff]
      %2468 = vrot.lane.b32.xlu0 %v2404, 8
      %v2469 = vpop.permute.xlu0 %2468
      %2470 = vrot.lane.b32.xlu0 %v2405, 8
      %v2471 = vpop.permute.xlu0 %2470
      %2472 = vrot.lane.b32.xlu0 %v2406, 8
      %v2473 = vpop.permute.xlu0 %2472
      %2474 = vrot.lane.b32.xlu0 %v2407, 8
      %v2475 = vpop.permute.xlu0 %2474
      %2476 = vrot.lane.b32.xlu0 %v2408, 8
      %v2477 = vpop.permute.xlu0 %2476
      %2478 = vrot.lane.b32.xlu0 %v2409, 8
      %v2479 = vpop.permute.xlu0 %2478
      %2480 = vrot.lane.b32.xlu0 %v2410, 8
      %v2481 = vpop.permute.xlu0 %2480
      %2482 = vrot.lane.b32.xlu0 %v2411, 8
      %v2483 = vpop.permute.xlu0 %2482
      %2484 = vrot.lane.b32.xlu0 %v2412, 8
      %v2485 = vpop.permute.xlu0 %2484
      %2486 = vrot.lane.b32.xlu0 %v2413, 8
      %v2487 = vpop.permute.xlu0 %2486
      %2488 = vrot.lane.b32.xlu0 %v2414, 8
      %v2489 = vpop.permute.xlu0 %2488
      %2490 = vrot.lane.b32.xlu0 %v2415, 8
      %v2491 = vpop.permute.xlu0 %2490
      %2492 = vrot.lane.b32.xlu0 %v2416, 8
      %v2493 = vpop.permute.xlu0 %2492
      %2494 = vrot.lane.b32.xlu0 %v2417, 8
      %v2495 = vpop.permute.xlu0 %2494
      %2496 = vrot.lane.b32.xlu0 %v2418, 8
      %v2497 = vpop.permute.xlu0 %2496
      %2498 = vrot.lane.b32.xlu0 %v2419, 8
      %v2499 = vpop.permute.xlu0 %2498
      %2500 = vrot.lane.b32.xlu0 %v2420, 8
      %v2501 = vpop.permute.xlu0 %2500
      %2502 = vrot.lane.b32.xlu0 %v2421, 8
      %v2503 = vpop.permute.xlu0 %2502
      %2504 = vrot.lane.b32.xlu0 %v2422, 8
      %v2505 = vpop.permute.xlu0 %2504
      %2506 = vrot.lane.b32.xlu0 %v2423, 8
      %v2507 = vpop.permute.xlu0 %2506
      %2508 = vrot.lane.b32.xlu0 %v2424, 8
      %v2509 = vpop.permute.xlu0 %2508
      %2510 = vrot.lane.b32.xlu0 %v2425, 8
      %v2511 = vpop.permute.xlu0 %2510
      %2512 = vrot.lane.b32.xlu0 %v2426, 8
      %v2513 = vpop.permute.xlu0 %2512
      %2514 = vrot.lane.b32.xlu0 %v2427, 8
      %v2515 = vpop.permute.xlu0 %2514
      %2516 = vrot.lane.b32.xlu0 %v2428, 8
      %v2517 = vpop.permute.xlu0 %2516
      %2518 = vrot.lane.b32.xlu0 %v2429, 8
      %v2519 = vpop.permute.xlu0 %2518
      %2520 = vrot.lane.b32.xlu0 %v2430, 8
      %v2521 = vpop.permute.xlu0 %2520
      %2522 = vrot.lane.b32.xlu0 %v2431, 8
      %v2523 = vpop.permute.xlu0 %2522
      %2524 = vrot.lane.b32.xlu0 %v2432, 8
      %v2525 = vpop.permute.xlu0 %2524
      %2526 = vrot.lane.b32.xlu0 %v2433, 8
      %v2527 = vpop.permute.xlu0 %2526
      %2528 = vrot.lane.b32.xlu0 %v2434, 8
      %v2529 = vpop.permute.xlu0 %2528
      %2530 = vrot.lane.b32.xlu0 %v2435, 8
      %v2531 = vpop.permute.xlu0 %2530
      %2564 = vst.msk [vmem:[%s2178] sm:$0xff] %vm591, %v2469
      %2565 = vst.msk [vmem:[%s2178 + $0x8] sm:$0xff] %vm591, %v2471
      %2566 = vst.msk [vmem:[%s2178 + $0x10] sm:$0xff] %vm591, %v2473
      %2567 = vst.msk [vmem:[%s2178 + $0x18] sm:$0xff] %vm591, %v2475
      %2568 = vst.msk [vmem:[%s2178 + $0x20] sm:$0xff] %vm591, %v2477
      %2569 = vst.msk [vmem:[%s2178 + $0x28] sm:$0xff] %vm591, %v2479
      %2570 = vst.msk [vmem:[%s2178 + $0x30] sm:$0xff] %vm591, %v2481
      %2571 = vst.msk [vmem:[%s2178 + $0x38] sm:$0xff] %vm591, %v2483
      %2572 = vst.msk [vmem:[%s2178 + $0x40] sm:$0xff] %vm591, %v2485
      %2573 = vst.msk [vmem:[%s2178 + $0x48] sm:$0xff] %vm591, %v2487
      %2574 = vst.msk [vmem:[%s2178 + $0x50] sm:$0xff] %vm591, %v2489
      %2575 = vst.msk [vmem:[%s2178 + $0x58] sm:$0xff] %vm591, %v2491
      %2576 = vst.msk [vmem:[%s2178 + $0x60] sm:$0xff] %vm591, %v2493
      %2577 = vst.msk [vmem:[%s2178 + $0x68] sm:$0xff] %vm591, %v2495
      %2578 = vst.msk [vmem:[%s2178 + $0x70] sm:$0xff] %vm591, %v2497
      %2579 = vst.msk [vmem:[%s2178 + $0x78] sm:$0xff] %vm591, %v2499
      %2580 = vst.msk [vmem:[%s2178 + $0x80] sm:$0xff] %vm591, %v2501
      %2581 = vst.msk [vmem:[%s2178 + $0x88] sm:$0xff] %vm591, %v2503
      %2582 = vst.msk [vmem:[%s2178 + $0x90] sm:$0xff] %vm591, %v2505
      %2583 = vst.msk [vmem:[%s2178 + $0x98] sm:$0xff] %vm591, %v2507
      %2584 = vst.msk [vmem:[%s2178 + $0xa0] sm:$0xff] %vm591, %v2509
      %2585 = vst.msk [vmem:[%s2178 + $0xa8] sm:$0xff] %vm591, %v2511
      %2586 = vst.msk [vmem:[%s2178 + $0xb0] sm:$0xff] %vm591, %v2513
      %2587 = vst.msk [vmem:[%s2178 + $0xb8] sm:$0xff] %vm591, %v2515
      %2588 = vst.msk [vmem:[%s2178 + $0xc0] sm:$0xff] %vm591, %v2517
      %2589 = vst.msk [vmem:[%s2178 + $0xc8] sm:$0xff] %vm591, %v2519
      %2590 = vst.msk [vmem:[%s2178 + $0xd0] sm:$0xff] %vm591, %v2521
      %2591 = vst.msk [vmem:[%s2178 + $0xd8] sm:$0xff] %vm591, %v2523
      %2592 = vst.msk [vmem:[%s2178 + $0xe0] sm:$0xff] %vm591, %v2525
      %2593 = vst.msk [vmem:[%s2178 + $0xe8] sm:$0xff] %vm591, %v2527
      %2594 = vst.msk [vmem:[%s2178 + $0xf0] sm:$0xff] %vm591, %v2529
      %2595 = vst.msk [vmem:[%s2178 + $0xf8] sm:$0xff] %vm591, %v2531
      %v2596 = vld [vmem:[%s2211 + $0x1] sm:$0xff]
      %v2597 = vld [vmem:[%s2211 + $0x9] sm:$0xff]
      %v2598 = vld [vmem:[%s2211 + $0x19] sm:$0xff]
      %v2599 = vld [vmem:[%s2211 + $0x21] sm:$0xff]
      %v2600 = vld [vmem:[%s2211 + $0x31] sm:$0xff]
      %v2601 = vld [vmem:[%s2211 + $0x39] sm:$0xff]
      %v2602 = vld [vmem:[%s2211 + $0x49] sm:$0xff]
      %v2603 = vld [vmem:[%s2211 + $0x51] sm:$0xff]
      %v2604 = vld [vmem:[%s2211 + $0x61] sm:$0xff]
      %v2605 = vld [vmem:[%s2211 + $0x69] sm:$0xff]
      %v2606 = vld [vmem:[%s2211 + $0x79] sm:$0xff]
      %v2607 = vld [vmem:[%s2211 + $0x81] sm:$0xff]
      %v2608 = vld [vmem:[%s2211 + $0x91] sm:$0xff]
      %v2609 = vld [vmem:[%s2211 + $0x99] sm:$0xff]
      %v2610 = vld [vmem:[%s2211 + $0xa9] sm:$0xff]
      %v2611 = vld [vmem:[%s2211 + $0xb1] sm:$0xff]
      %v2612 = vld [vmem:[%s2211 + $0xc1] sm:$0xff]
      %v2613 = vld [vmem:[%s2211 + $0xc9] sm:$0xff]
      %v2614 = vld [vmem:[%s2211 + $0xd9] sm:$0xff]
      %v2615 = vld [vmem:[%s2211 + $0xe1] sm:$0xff]
      %v2616 = vld [vmem:[%s2211 + $0xf1] sm:$0xff]
      %v2617 = vld [vmem:[%s2211 + $0xf9] sm:$0xff]
      %v2618 = vld [vmem:[%s2211 + $0x109] sm:$0xff]
      %v2619 = vld [vmem:[%s2211 + $0x111] sm:$0xff]
      %v2620 = vld [vmem:[%s2211 + $0x121] sm:$0xff]
      %v2621 = vld [vmem:[%s2211 + $0x129] sm:$0xff]
      %v2622 = vld [vmem:[%s2211 + $0x139] sm:$0xff]
      %v2623 = vld [vmem:[%s2211 + $0x141] sm:$0xff]
      %v2624 = vld [vmem:[%s2211 + $0x151] sm:$0xff]
      %v2625 = vld [vmem:[%s2211 + $0x159] sm:$0xff]
      %v2626 = vld [vmem:[%s2211 + $0x169] sm:$0xff]
      %v2627 = vld [vmem:[%s2211 + $0x171] sm:$0xff]
      %2660 = vrot.lane.b32.xlu0 %v2596, 12
      %v2661 = vpop.permute.xlu0 %2660
      %2662 = vrot.lane.b32.xlu0 %v2597, 12
      %v2663 = vpop.permute.xlu0 %2662
      %2664 = vrot.lane.b32.xlu0 %v2598, 12
      %v2665 = vpop.permute.xlu0 %2664
      %2666 = vrot.lane.b32.xlu0 %v2599, 12
      %v2667 = vpop.permute.xlu0 %2666
      %2668 = vrot.lane.b32.xlu0 %v2600, 12
      %v2669 = vpop.permute.xlu0 %2668
      %2670 = vrot.lane.b32.xlu0 %v2601, 12
      %v2671 = vpop.permute.xlu0 %2670
      %2672 = vrot.lane.b32.xlu0 %v2602, 12
      %v2673 = vpop.permute.xlu0 %2672
      %2674 = vrot.lane.b32.xlu0 %v2603, 12
      %v2675 = vpop.permute.xlu0 %2674
      %2676 = vrot.lane.b32.xlu0 %v2604, 12
      %v2677 = vpop.permute.xlu0 %2676
      %2678 = vrot.lane.b32.xlu0 %v2605, 12
      %v2679 = vpop.permute.xlu0 %2678
      %2680 = vrot.lane.b32.xlu0 %v2606, 12
      %v2681 = vpop.permute.xlu0 %2680
      %2682 = vrot.lane.b32.xlu0 %v2607, 12
      %v2683 = vpop.permute.xlu0 %2682
      %2684 = vrot.lane.b32.xlu0 %v2608, 12
      %v2685 = vpop.permute.xlu0 %2684
      %2686 = vrot.lane.b32.xlu0 %v2609, 12
      %v2687 = vpop.permute.xlu0 %2686
      %2688 = vrot.lane.b32.xlu0 %v2610, 12
      %v2689 = vpop.permute.xlu0 %2688
      %2690 = vrot.lane.b32.xlu0 %v2611, 12
      %v2691 = vpop.permute.xlu0 %2690
      %2692 = vrot.lane.b32.xlu0 %v2612, 12
      %v2693 = vpop.permute.xlu0 %2692
      %2694 = vrot.lane.b32.xlu0 %v2613, 12
      %v2695 = vpop.permute.xlu0 %2694
      %2696 = vrot.lane.b32.xlu0 %v2614, 12
      %v2697 = vpop.permute.xlu0 %2696
      %2698 = vrot.lane.b32.xlu0 %v2615, 12
      %v2699 = vpop.permute.xlu0 %2698
      %2700 = vrot.lane.b32.xlu0 %v2616, 12
      %v2701 = vpop.permute.xlu0 %2700
      %2702 = vrot.lane.b32.xlu0 %v2617, 12
      %v2703 = vpop.permute.xlu0 %2702
      %2704 = vrot.lane.b32.xlu0 %v2618, 12
      %v2705 = vpop.permute.xlu0 %2704
      %2706 = vrot.lane.b32.xlu0 %v2619, 12
      %v2707 = vpop.permute.xlu0 %2706
      %2708 = vrot.lane.b32.xlu0 %v2620, 12
      %v2709 = vpop.permute.xlu0 %2708
      %2710 = vrot.lane.b32.xlu0 %v2621, 12
      %v2711 = vpop.permute.xlu0 %2710
      %2712 = vrot.lane.b32.xlu0 %v2622, 12
      %v2713 = vpop.permute.xlu0 %2712
      %2714 = vrot.lane.b32.xlu0 %v2623, 12
      %v2715 = vpop.permute.xlu0 %2714
      %2716 = vrot.lane.b32.xlu0 %v2624, 12
      %v2717 = vpop.permute.xlu0 %2716
      %2718 = vrot.lane.b32.xlu0 %v2625, 12
      %v2719 = vpop.permute.xlu0 %2718
      %2720 = vrot.lane.b32.xlu0 %v2626, 12
      %v2721 = vpop.permute.xlu0 %2720
      %2722 = vrot.lane.b32.xlu0 %v2627, 12
      %v2723 = vpop.permute.xlu0 %2722
      %2756 = vst.msk [vmem:[%s2178] sm:$0xff] %vm784, %v2661
      %2757 = vst.msk [vmem:[%s2178 + $0x8] sm:$0xff] %vm784, %v2663
      %2758 = vst.msk [vmem:[%s2178 + $0x10] sm:$0xff] %vm784, %v2665
      %2759 = vst.msk [vmem:[%s2178 + $0x18] sm:$0xff] %vm784, %v2667
      %2760 = vst.msk [vmem:[%s2178 + $0x20] sm:$0xff] %vm784, %v2669
      %2761 = vst.msk [vmem:[%s2178 + $0x28] sm:$0xff] %vm784, %v2671
      %2762 = vst.msk [vmem:[%s2178 + $0x30] sm:$0xff] %vm784, %v2673
      %2763 = vst.msk [vmem:[%s2178 + $0x38] sm:$0xff] %vm784, %v2675
      %2764 = vst.msk [vmem:[%s2178 + $0x40] sm:$0xff] %vm784, %v2677
      %2765 = vst.msk [vmem:[%s2178 + $0x48] sm:$0xff] %vm784, %v2679
      %2766 = vst.msk [vmem:[%s2178 + $0x50] sm:$0xff] %vm784, %v2681
      %2767 = vst.msk [vmem:[%s2178 + $0x58] sm:$0xff] %vm784, %v2683
      %2768 = vst.msk [vmem:[%s2178 + $0x60] sm:$0xff] %vm784, %v2685
      %2769 = vst.msk [vmem:[%s2178 + $0x68] sm:$0xff] %vm784, %v2687
      %2770 = vst.msk [vmem:[%s2178 + $0x70] sm:$0xff] %vm784, %v2689
      %2771 = vst.msk [vmem:[%s2178 + $0x78] sm:$0xff] %vm784, %v2691
      %2772 = vst.msk [vmem:[%s2178 + $0x80] sm:$0xff] %vm784, %v2693
      %2773 = vst.msk [vmem:[%s2178 + $0x88] sm:$0xff] %vm784, %v2695
      %2774 = vst.msk [vmem:[%s2178 + $0x90] sm:$0xff] %vm784, %v2697
      %2775 = vst.msk [vmem:[%s2178 + $0x98] sm:$0xff] %vm784, %v2699
      %2776 = vst.msk [vmem:[%s2178 + $0xa0] sm:$0xff] %vm784, %v2701
      %2777 = vst.msk [vmem:[%s2178 + $0xa8] sm:$0xff] %vm784, %v2703
      %2778 = vst.msk [vmem:[%s2178 + $0xb0] sm:$0xff] %vm784, %v2705
      %2779 = vst.msk [vmem:[%s2178 + $0xb8] sm:$0xff] %vm784, %v2707
      %2780 = vst.msk [vmem:[%s2178 + $0xc0] sm:$0xff] %vm784, %v2709
      %2781 = vst.msk [vmem:[%s2178 + $0xc8] sm:$0xff] %vm784, %v2711
      %2782 = vst.msk [vmem:[%s2178 + $0xd0] sm:$0xff] %vm784, %v2713
      %2783 = vst.msk [vmem:[%s2178 + $0xd8] sm:$0xff] %vm784, %v2715
      %2784 = vst.msk [vmem:[%s2178 + $0xe0] sm:$0xff] %vm784, %v2717
      %2785 = vst.msk [vmem:[%s2178 + $0xe8] sm:$0xff] %vm784, %v2719
      %2786 = vst.msk [vmem:[%s2178 + $0xf0] sm:$0xff] %vm784, %v2721
      %2787 = vst.msk [vmem:[%s2178 + $0xf8] sm:$0xff] %vm784, %v2723
      %v2788 = vld [vmem:[%s237 + $0x2] sm:$0xff]
      %v2789 = vld [vmem:[%s237 + $0xa] sm:$0xff]
      %v2790 = vld [vmem:[%s237 + $0x1a] sm:$0xff]
      %v2791 = vld [vmem:[%s237 + $0x22] sm:$0xff]
      %v2792 = vld [vmem:[%s237 + $0x32] sm:$0xff]
      %v2793 = vld [vmem:[%s237 + $0x3a] sm:$0xff]
      %v2794 = vld [vmem:[%s237 + $0x4a] sm:$0xff]
      %v2795 = vld [vmem:[%s237 + $0x52] sm:$0xff]
      %v2796 = vld [vmem:[%s237 + $0x62] sm:$0xff]
      %v2797 = vld [vmem:[%s237 + $0x6a] sm:$0xff]
      %v2798 = vld [vmem:[%s237 + $0x7a] sm:$0xff]
      %v2799 = vld [vmem:[%s237 + $0x82] sm:$0xff]
      %v2800 = vld [vmem:[%s237 + $0x92] sm:$0xff]
      %v2801 = vld [vmem:[%s237 + $0x9a] sm:$0xff]
      %v2802 = vld [vmem:[%s237 + $0xaa] sm:$0xff]
      %v2803 = vld [vmem:[%s237 + $0xb2] sm:$0xff]
      %v2804 = vld [vmem:[%s237 + $0xc2] sm:$0xff]
      %v2805 = vld [vmem:[%s237 + $0xca] sm:$0xff]
      %v2806 = vld [vmem:[%s237 + $0xda] sm:$0xff]
      %v2807 = vld [vmem:[%s237 + $0xe2] sm:$0xff]
      %v2808 = vld [vmem:[%s237 + $0xf2] sm:$0xff]
      %v2809 = vld [vmem:[%s237 + $0xfa] sm:$0xff]
      %v2810 = vld [vmem:[%s237 + $0x10a] sm:$0xff]
      %v2811 = vld [vmem:[%s237 + $0x112] sm:$0xff]
      %v2812 = vld [vmem:[%s237 + $0x122] sm:$0xff]
      %v2813 = vld [vmem:[%s237 + $0x12a] sm:$0xff]
      %v2814 = vld [vmem:[%s237 + $0x13a] sm:$0xff]
      %v2815 = vld [vmem:[%s237 + $0x142] sm:$0xff]
      %v2816 = vld [vmem:[%s237 + $0x152] sm:$0xff]
      %v2817 = vld [vmem:[%s237 + $0x15a] sm:$0xff]
      %v2818 = vld [vmem:[%s237 + $0x16a] sm:$0xff]
      %v2819 = vld [vmem:[%s237 + $0x172] sm:$0xff]
      %2852 = vrot.lane.b32.xlu0 %v2788, 16
      %v2853 = vpop.permute.xlu0 %2852
      %2854 = vrot.lane.b32.xlu0 %v2789, 16
      %v2855 = vpop.permute.xlu0 %2854
      %2856 = vrot.lane.b32.xlu0 %v2790, 16
      %v2857 = vpop.permute.xlu0 %2856
      %2858 = vrot.lane.b32.xlu0 %v2791, 16
      %v2859 = vpop.permute.xlu0 %2858
      %2860 = vrot.lane.b32.xlu0 %v2792, 16
      %v2861 = vpop.permute.xlu0 %2860
      %2862 = vrot.lane.b32.xlu0 %v2793, 16
      %v2863 = vpop.permute.xlu0 %2862
      %2864 = vrot.lane.b32.xlu0 %v2794, 16
      %v2865 = vpop.permute.xlu0 %2864
      %2866 = vrot.lane.b32.xlu0 %v2795, 16
      %v2867 = vpop.permute.xlu0 %2866
      %2868 = vrot.lane.b32.xlu0 %v2796, 16
      %v2869 = vpop.permute.xlu0 %2868
      %2870 = vrot.lane.b32.xlu0 %v2797, 16
      %v2871 = vpop.permute.xlu0 %2870
      %2872 = vrot.lane.b32.xlu0 %v2798, 16
      %v2873 = vpop.permute.xlu0 %2872
      %2874 = vrot.lane.b32.xlu0 %v2799, 16
      %v2875 = vpop.permute.xlu0 %2874
      %2876 = vrot.lane.b32.xlu0 %v2800, 16
      %v2877 = vpop.permute.xlu0 %2876
      %2878 = vrot.lane.b32.xlu0 %v2801, 16
      %v2879 = vpop.permute.xlu0 %2878
      %2880 = vrot.lane.b32.xlu0 %v2802, 16
      %v2881 = vpop.permute.xlu0 %2880
      %2882 = vrot.lane.b32.xlu0 %v2803, 16
      %v2883 = vpop.permute.xlu0 %2882
      %2884 = vrot.lane.b32.xlu0 %v2804, 16
      %v2885 = vpop.permute.xlu0 %2884
      %2886 = vrot.lane.b32.xlu0 %v2805, 16
      %v2887 = vpop.permute.xlu0 %2886
      %2888 = vrot.lane.b32.xlu0 %v2806, 16
      %v2889 = vpop.permute.xlu0 %2888
      %2890 = vrot.lane.b32.xlu0 %v2807, 16
      %v2891 = vpop.permute.xlu0 %2890
      %2892 = vrot.lane.b32.xlu0 %v2808, 16
      %v2893 = vpop.permute.xlu0 %2892
      %2894 = vrot.lane.b32.xlu0 %v2809, 16
      %v2895 = vpop.permute.xlu0 %2894
      %2896 = vrot.lane.b32.xlu0 %v2810, 16
      %v2897 = vpop.permute.xlu0 %2896
      %2898 = vrot.lane.b32.xlu0 %v2811, 16
      %v2899 = vpop.permute.xlu0 %2898
      %2900 = vrot.lane.b32.xlu0 %v2812, 16
      %v2901 = vpop.permute.xlu0 %2900
      %2902 = vrot.lane.b32.xlu0 %v2813, 16
      %v2903 = vpop.permute.xlu0 %2902
      %2904 = vrot.lane.b32.xlu0 %v2814, 16
      %v2905 = vpop.permute.xlu0 %2904
      %2906 = vrot.lane.b32.xlu0 %v2815, 16
      %v2907 = vpop.permute.xlu0 %2906
      %2908 = vrot.lane.b32.xlu0 %v2816, 16
      %v2909 = vpop.permute.xlu0 %2908
      %2910 = vrot.lane.b32.xlu0 %v2817, 16
      %v2911 = vpop.permute.xlu0 %2910
      %2912 = vrot.lane.b32.xlu0 %v2818, 16
      %v2913 = vpop.permute.xlu0 %2912
      %2914 = vrot.lane.b32.xlu0 %v2819, 16
      %v2915 = vpop.permute.xlu0 %2914
      %2948 = vst.msk [vmem:[%s2178] sm:$0xff] %vm977, %v2853
      %2949 = vst.msk [vmem:[%s2178 + $0x8] sm:$0xff] %vm977, %v2855
      %2950 = vst.msk [vmem:[%s2178 + $0x10] sm:$0xff] %vm977, %v2857
      %2951 = vst.msk [vmem:[%s2178 + $0x18] sm:$0xff] %vm977, %v2859
      %2952 = vst.msk [vmem:[%s2178 + $0x20] sm:$0xff] %vm977, %v2861
      %2953 = vst.msk [vmem:[%s2178 + $0x28] sm:$0xff] %vm977, %v2863
      %2954 = vst.msk [vmem:[%s2178 + $0x30] sm:$0xff] %vm977, %v2865
      %2955 = vst.msk [vmem:[%s2178 + $0x38] sm:$0xff] %vm977, %v2867
      %2956 = vst.msk [vmem:[%s2178 + $0x40] sm:$0xff] %vm977, %v2869
      %2957 = vst.msk [vmem:[%s2178 + $0x48] sm:$0xff] %vm977, %v2871
      %2958 = vst.msk [vmem:[%s2178 + $0x50] sm:$0xff] %vm977, %v2873
      %2959 = vst.msk [vmem:[%s2178 + $0x58] sm:$0xff] %vm977, %v2875
      %2960 = vst.msk [vmem:[%s2178 + $0x60] sm:$0xff] %vm977, %v2877
      %2961 = vst.msk [vmem:[%s2178 + $0x68] sm:$0xff] %vm977, %v2879
      %2962 = vst.msk [vmem:[%s2178 + $0x70] sm:$0xff] %vm977, %v2881
      %2963 = vst.msk [vmem:[%s2178 + $0x78] sm:$0xff] %vm977, %v2883
      %2964 = vst.msk [vmem:[%s2178 + $0x80] sm:$0xff] %vm977, %v2885
      %2965 = vst.msk [vmem:[%s2178 + $0x88] sm:$0xff] %vm977, %v2887
      %2966 = vst.msk [vmem:[%s2178 + $0x90] sm:$0xff] %vm977, %v2889
      %2967 = vst.msk [vmem:[%s2178 + $0x98] sm:$0xff] %vm977, %v2891
      %2968 = vst.msk [vmem:[%s2178 + $0xa0] sm:$0xff] %vm977, %v2893
      %2969 = vst.msk [vmem:[%s2178 + $0xa8] sm:$0xff] %vm977, %v2895
      %2970 = vst.msk [vmem:[%s2178 + $0xb0] sm:$0xff] %vm977, %v2897
      %2971 = vst.msk [vmem:[%s2178 + $0xb8] sm:$0xff] %vm977, %v2899
      %2972 = vst.msk [vmem:[%s2178 + $0xc0] sm:$0xff] %vm977, %v2901
      %2973 = vst.msk [vmem:[%s2178 + $0xc8] sm:$0xff] %vm977, %v2903
      %2974 = vst.msk [vmem:[%s2178 + $0xd0] sm:$0xff] %vm977, %v2905
      %2975 = vst.msk [vmem:[%s2178 + $0xd8] sm:$0xff] %vm977, %v2907
      %2976 = vst.msk [vmem:[%s2178 + $0xe0] sm:$0xff] %vm977, %v2909
      %2977 = vst.msk [vmem:[%s2178 + $0xe8] sm:$0xff] %vm977, %v2911
      %2978 = vst.msk [vmem:[%s2178 + $0xf0] sm:$0xff] %vm977, %v2913
      %2979 = vst.msk [vmem:[%s2178 + $0xf8] sm:$0xff] %vm977, %v2915
      %v2980 = vld [vmem:[%s2211 + $0x2] sm:$0xff]
      %v2981 = vld [vmem:[%s2211 + $0xa] sm:$0xff]
      %v2982 = vld [vmem:[%s2211 + $0x1a] sm:$0xff]
      %v2983 = vld [vmem:[%s2211 + $0x22] sm:$0xff]
      %v2984 = vld [vmem:[%s2211 + $0x32] sm:$0xff]
      %v2985 = vld [vmem:[%s2211 + $0x3a] sm:$0xff]
      %v2986 = vld [vmem:[%s2211 + $0x4a] sm:$0xff]
      %v2987 = vld [vmem:[%s2211 + $0x52] sm:$0xff]
      %v2988 = vld [vmem:[%s2211 + $0x62] sm:$0xff]
      %v2989 = vld [vmem:[%s2211 + $0x6a] sm:$0xff]
      %v2990 = vld [vmem:[%s2211 + $0x7a] sm:$0xff]
      %v2991 = vld [vmem:[%s2211 + $0x82] sm:$0xff]
      %v2992 = vld [vmem:[%s2211 + $0x92] sm:$0xff]
      %v2993 = vld [vmem:[%s2211 + $0x9a] sm:$0xff]
      %v2994 = vld [vmem:[%s2211 + $0xaa] sm:$0xff]
      %v2995 = vld [vmem:[%s2211 + $0xb2] sm:$0xff]
      %v2996 = vld [vmem:[%s2211 + $0xc2] sm:$0xff]
      %v2997 = vld [vmem:[%s2211 + $0xca] sm:$0xff]
      %v2998 = vld [vmem:[%s2211 + $0xda] sm:$0xff]
      %v2999 = vld [vmem:[%s2211 + $0xe2] sm:$0xff]
      %v3000 = vld [vmem:[%s2211 + $0xf2] sm:$0xff]
      %v3001 = vld [vmem:[%s2211 + $0xfa] sm:$0xff]
      %v3002 = vld [vmem:[%s2211 + $0x10a] sm:$0xff]
      %v3003 = vld [vmem:[%s2211 + $0x112] sm:$0xff]
      %v3004 = vld [vmem:[%s2211 + $0x122] sm:$0xff]
      %v3005 = vld [vmem:[%s2211 + $0x12a] sm:$0xff]
      %v3006 = vld [vmem:[%s2211 + $0x13a] sm:$0xff]
      %v3007 = vld [vmem:[%s2211 + $0x142] sm:$0xff]
      %v3008 = vld [vmem:[%s2211 + $0x152] sm:$0xff]
      %v3009 = vld [vmem:[%s2211 + $0x15a] sm:$0xff]
      %v3010 = vld [vmem:[%s2211 + $0x16a] sm:$0xff]
      %v3011 = vld [vmem:[%s2211 + $0x172] sm:$0xff]
      %3044 = vrot.lane.b32.xlu0 %v2980, 20
      %v3045 = vpop.permute.xlu0 %3044
      %3046 = vrot.lane.b32.xlu0 %v2981, 20
      %v3047 = vpop.permute.xlu0 %3046
      %3048 = vrot.lane.b32.xlu0 %v2982, 20
      %v3049 = vpop.permute.xlu0 %3048
      %3050 = vrot.lane.b32.xlu0 %v2983, 20
      %v3051 = vpop.permute.xlu0 %3050
      %3052 = vrot.lane.b32.xlu0 %v2984, 20
      %v3053 = vpop.permute.xlu0 %3052
      %3054 = vrot.lane.b32.xlu0 %v2985, 20
      %v3055 = vpop.permute.xlu0 %3054
      %3056 = vrot.lane.b32.xlu0 %v2986, 20
      %v3057 = vpop.permute.xlu0 %3056
      %3058 = vrot.lane.b32.xlu0 %v2987, 20
      %v3059 = vpop.permute.xlu0 %3058
      %3060 = vrot.lane.b32.xlu0 %v2988, 20
      %v3061 = vpop.permute.xlu0 %3060
      %3062 = vrot.lane.b32.xlu0 %v2989, 20
      %v3063 = vpop.permute.xlu0 %3062
      %3064 = vrot.lane.b32.xlu0 %v2990, 20
      %v3065 = vpop.permute.xlu0 %3064
      %3066 = vrot.lane.b32.xlu0 %v2991, 20
      %v3067 = vpop.permute.xlu0 %3066
      %3068 = vrot.lane.b32.xlu0 %v2992, 20
      %v3069 = vpop.permute.xlu0 %3068
      %3070 = vrot.lane.b32.xlu0 %v2993, 20
      %v3071 = vpop.permute.xlu0 %3070
      %3072 = vrot.lane.b32.xlu0 %v2994, 20
      %v3073 = vpop.permute.xlu0 %3072
      %3074 = vrot.lane.b32.xlu0 %v2995, 20
      %v3075 = vpop.permute.xlu0 %3074
      %3076 = vrot.lane.b32.xlu0 %v2996, 20
      %v3077 = vpop.permute.xlu0 %3076
      %3078 = vrot.lane.b32.xlu0 %v2997, 20
      %v3079 = vpop.permute.xlu0 %3078
      %3080 = vrot.lane.b32.xlu0 %v2998, 20
      %v3081 = vpop.permute.xlu0 %3080
      %3082 = vrot.lane.b32.xlu0 %v2999, 20
      %v3083 = vpop.permute.xlu0 %3082
      %3084 = vrot.lane.b32.xlu0 %v3000, 20
      %v3085 = vpop.permute.xlu0 %3084
      %3086 = vrot.lane.b32.xlu0 %v3001, 20
      %v3087 = vpop.permute.xlu0 %3086
      %3088 = vrot.lane.b32.xlu0 %v3002, 20
      %v3089 = vpop.permute.xlu0 %3088
      %3090 = vrot.lane.b32.xlu0 %v3003, 20
      %v3091 = vpop.permute.xlu0 %3090
      %3092 = vrot.lane.b32.xlu0 %v3004, 20
      %v3093 = vpop.permute.xlu0 %3092
      %3094 = vrot.lane.b32.xlu0 %v3005, 20
      %v3095 = vpop.permute.xlu0 %3094
      %3096 = vrot.lane.b32.xlu0 %v3006, 20
      %v3097 = vpop.permute.xlu0 %3096
      %3098 = vrot.lane.b32.xlu0 %v3007, 20
      %v3099 = vpop.permute.xlu0 %3098
      %3100 = vrot.lane.b32.xlu0 %v3008, 20
      %v3101 = vpop.permute.xlu0 %3100
      %3102 = vrot.lane.b32.xlu0 %v3009, 20
      %v3103 = vpop.permute.xlu0 %3102
      %3104 = vrot.lane.b32.xlu0 %v3010, 20
      %v3105 = vpop.permute.xlu0 %3104
      %3106 = vrot.lane.b32.xlu0 %v3011, 20
      %v3107 = vpop.permute.xlu0 %3106
      %3140 = vst.msk [vmem:[%s2178] sm:$0xff] %vm1170, %v3045
      %3141 = vst.msk [vmem:[%s2178 + $0x8] sm:$0xff] %vm1170, %v3047
      %3142 = vst.msk [vmem:[%s2178 + $0x10] sm:$0xff] %vm1170, %v3049
      %3143 = vst.msk [vmem:[%s2178 + $0x18] sm:$0xff] %vm1170, %v3051
      %3144 = vst.msk [vmem:[%s2178 + $0x20] sm:$0xff] %vm1170, %v3053
      %3145 = vst.msk [vmem:[%s2178 + $0x28] sm:$0xff] %vm1170, %v3055
      %3146 = vst.msk [vmem:[%s2178 + $0x30] sm:$0xff] %vm1170, %v3057
      %3147 = vst.msk [vmem:[%s2178 + $0x38] sm:$0xff] %vm1170, %v3059
      %3148 = vst.msk [vmem:[%s2178 + $0x40] sm:$0xff] %vm1170, %v3061
      %3149 = vst.msk [vmem:[%s2178 + $0x48] sm:$0xff] %vm1170, %v3063
      %3150 = vst.msk [vmem:[%s2178 + $0x50] sm:$0xff] %vm1170, %v3065
      %3151 = vst.msk [vmem:[%s2178 + $0x58] sm:$0xff] %vm1170, %v3067
      %3152 = vst.msk [vmem:[%s2178 + $0x60] sm:$0xff] %vm1170, %v3069
      %3153 = vst.msk [vmem:[%s2178 + $0x68] sm:$0xff] %vm1170, %v3071
      %3154 = vst.msk [vmem:[%s2178 + $0x70] sm:$0xff] %vm1170, %v3073
      %3155 = vst.msk [vmem:[%s2178 + $0x78] sm:$0xff] %vm1170, %v3075
      %3156 = vst.msk [vmem:[%s2178 + $0x80] sm:$0xff] %vm1170, %v3077
      %3157 = vst.msk [vmem:[%s2178 + $0x88] sm:$0xff] %vm1170, %v3079
      %3158 = vst.msk [vmem:[%s2178 + $0x90] sm:$0xff] %vm1170, %v3081
      %3159 = vst.msk [vmem:[%s2178 + $0x98] sm:$0xff] %vm1170, %v3083
      %3160 = vst.msk [vmem:[%s2178 + $0xa0] sm:$0xff] %vm1170, %v3085
      %3161 = vst.msk [vmem:[%s2178 + $0xa8] sm:$0xff] %vm1170, %v3087
      %3162 = vst.msk [vmem:[%s2178 + $0xb0] sm:$0xff] %vm1170, %v3089
      %3163 = vst.msk [vmem:[%s2178 + $0xb8] sm:$0xff] %vm1170, %v3091
      %3164 = vst.msk [vmem:[%s2178 + $0xc0] sm:$0xff] %vm1170, %v3093
      %3165 = vst.msk [vmem:[%s2178 + $0xc8] sm:$0xff] %vm1170, %v3095
      %3166 = vst.msk [vmem:[%s2178 + $0xd0] sm:$0xff] %vm1170, %v3097
      %3167 = vst.msk [vmem:[%s2178 + $0xd8] sm:$0xff] %vm1170, %v3099
      %3168 = vst.msk [vmem:[%s2178 + $0xe0] sm:$0xff] %vm1170, %v3101
      %3169 = vst.msk [vmem:[%s2178 + $0xe8] sm:$0xff] %vm1170, %v3103
      %3170 = vst.msk [vmem:[%s2178 + $0xf0] sm:$0xff] %vm1170, %v3105
      %3171 = vst.msk [vmem:[%s2178 + $0xf8] sm:$0xff] %vm1170, %v3107
      %v3172 = vld [vmem:[%s2178] sm:$0xff]
      %v3173 = vld [vmem:[%s2178 + $0x8] sm:$0xff]
      %v3174 = vld [vmem:[%s2178 + $0x10] sm:$0xff]
      %v3175 = vld [vmem:[%s2178 + $0x18] sm:$0xff]
      %v3176 = vld [vmem:[%s2178 + $0x20] sm:$0xff]
      %v3177 = vld [vmem:[%s2178 + $0x28] sm:$0xff]
      %v3178 = vld [vmem:[%s2178 + $0x30] sm:$0xff]
      %v3179 = vld [vmem:[%s2178 + $0x38] sm:$0xff]
      %v3180 = vld [vmem:[%s2178 + $0x40] sm:$0xff]
      %v3181 = vld [vmem:[%s2178 + $0x48] sm:$0xff]
      %v3182 = vld [vmem:[%s2178 + $0x50] sm:$0xff]
      %v3183 = vld [vmem:[%s2178 + $0x58] sm:$0xff]
      %v3184 = vld [vmem:[%s2178 + $0x60] sm:$0xff]
      %v3185 = vld [vmem:[%s2178 + $0x68] sm:$0xff]
      %v3186 = vld [vmem:[%s2178 + $0x70] sm:$0xff]
      %v3187 = vld [vmem:[%s2178 + $0x78] sm:$0xff]
      %v3188 = vld [vmem:[%s2178 + $0x80] sm:$0xff]
      %v3189 = vld [vmem:[%s2178 + $0x88] sm:$0xff]
      %v3190 = vld [vmem:[%s2178 + $0x90] sm:$0xff]
      %v3191 = vld [vmem:[%s2178 + $0x98] sm:$0xff]
      %v3192 = vld [vmem:[%s2178 + $0xa0] sm:$0xff]
      %v3193 = vld [vmem:[%s2178 + $0xa8] sm:$0xff]
      %v3194 = vld [vmem:[%s2178 + $0xb0] sm:$0xff]
      %v3195 = vld [vmem:[%s2178 + $0xb8] sm:$0xff]
      %v3196 = vld [vmem:[%s2178 + $0xc0] sm:$0xff]
      %v3197 = vld [vmem:[%s2178 + $0xc8] sm:$0xff]
      %v3198 = vld [vmem:[%s2178 + $0xd0] sm:$0xff]
      %v3199 = vld [vmem:[%s2178 + $0xd8] sm:$0xff]
      %v3200 = vld [vmem:[%s2178 + $0xe0] sm:$0xff]
      %v3201 = vld [vmem:[%s2178 + $0xe8] sm:$0xff]
      %v3202 = vld [vmem:[%s2178 + $0xf0] sm:$0xff]
      %v3203 = vld [vmem:[%s2178 + $0xf8] sm:$0xff]
      %s3204 = scalar_lea.vmem %s1, 32
      %v3205 = vld [vmem:[%s3204] sm:$0xff]
      %v3206 = vld [vmem:[%s3204 + $0x8] sm:$0xff]
      %v3208 = vsel %vm1237, %v3172, 0
      %v3211 = vsel %vm1237, %v3173, 0
      %v3214 = vsel %vm1237, %v3174, 0
      %v3217 = vsel %vm1237, %v3175, 0
      %v3220 = vsel %vm1237, %v3176, 0
      %v3223 = vsel %vm1237, %v3177, 0
      %v3226 = vsel %vm1237, %v3178, 0
      %v3229 = vsel %vm1237, %v3179, 0
      %v3232 = vsel %vm1237, %v3180, 0
      %v3235 = vsel %vm1237, %v3181, 0
      %v3238 = vsel %vm1237, %v3182, 0
      %v3241 = vsel %vm1237, %v3183, 0
      %v3244 = vsel %vm1237, %v3184, 0
      %v3247 = vsel %vm1237, %v3185, 0
      %v3250 = vsel %vm1237, %v3186, 0
      %v3253 = vsel %vm1237, %v3187, 0
      %v3256 = vsel %vm1237, %v3188, 0
      %v3259 = vsel %vm1237, %v3189, 0
      %v3262 = vsel %vm1237, %v3190, 0
      %v3265 = vsel %vm1237, %v3191, 0
      %v3268 = vsel %vm1237, %v3192, 0
      %v3271 = vsel %vm1237, %v3193, 0
      %v3274 = vsel %vm1237, %v3194, 0
      %v3277 = vsel %vm1237, %v3195, 0
      %v3280 = vsel %vm1237, %v3196, 0
      %v3283 = vsel %vm1237, %v3197, 0
      %v3286 = vsel %vm1237, %v3198, 0
      %v3289 = vsel %vm1237, %v3199, 0
      %v3292 = vsel %vm1237, %v3200, 0
      %v3295 = vsel %vm1237, %v3201, 0
      %v3298 = vsel %vm1237, %v3202, 0
      %v3301 = vsel %vm1237, %v3203, 0
      %3303 = vmatprep.subr.mxu0 0.0
      %3304 = vmatpush1.msra.mxu0 0.0
      %3305 = vmatprep.subr.mxu0 0.0
      %3306 = vmatpush1.msra.mxu0 0.0
      %3307 = vmatprep.subr.mxu0 0.0
      %3308 = vmatpush1.msra.mxu0 0.0
      %3309 = vmatprep.subr.mxu0 0.0
      %3310 = vmatpush1.msra.mxu0 0.0
      %3311 = vmatprep.subr.mxu0 0.0
      %3312 = vmatpush1.msra.mxu0 0.0
      %3313 = vmatprep.subr.mxu0 0.0
      %3314 = vmatpush1.msra.mxu0 0.0
      %3315 = vmatprep.subr.mxu0 0.0
      %3316 = vmatpush1.msra.mxu0 0.0
      %3317 = vmatprep.subr.mxu0 0.0
      %3318 = vmatpush1.msra.mxu0 0.0
      %3319 = vmatprep.subr.mxu0 0.0
      %3320 = vmatpush1.msra.mxu0 0.0
      %3321 = vmatprep.subr.mxu0 0.0
      %3322 = vmatpush1.msra.mxu0 0.0
      %3323 = vmatprep.subr.mxu0 0.0
      %3324 = vmatpush1.msra.mxu0 0.0
      %3325 = vmatprep.subr.mxu0 0.0
      %3326 = vmatpush1.msra.mxu0 0.0
      %3327 = vmatprep.subr.mxu0 0.0
      %3328 = vmatpush1.msra.mxu0 0.0
      %3329 = vmatprep.subr.mxu0 0.0
      %3330 = vmatpush1.msra.mxu0 0.0
      %3331 = vmatprep.subr.mxu0 0.0
      %3332 = vmatpush1.msra.mxu0 %v3206
      %3333 = vmatprep.subr.mxu0 0.0
      %3334 = vmatpush1.msra.mxu0 %v3205
      %3335 = vmatprep.subr.mxu0 0.0
      %3336 = vmatpush2.msra.mxu0 0.0
      %3337 = vmatprep.subr.mxu0 0.0
      %3338 = vmatpush2.msra.mxu0 0.0
      %3339 = vmatprep.subr.mxu0 0.0
      %3340 = vmatpush2.msra.mxu0 0.0
      %3341 = vmatprep.subr.mxu0 0.0
      %3342 = vmatpush2.msra.mxu0 0.0
      %3343 = vmatprep.subr.mxu0 0.0
      %3344 = vmatpush2.msra.mxu0 0.0
      %3345 = vmatprep.subr.mxu0 0.0
      %3346 = vmatpush2.msra.mxu0 0.0
      %3347 = vmatprep.subr.mxu0 0.0
      %3348 = vmatpush2.msra.mxu0 0.0
      %3349 = vmatprep.subr.mxu0 0.0
      %3350 = vmatpush2.msra.mxu0 0.0
      %3351 = vmatprep.subr.mxu0 0.0
      %3352 = vmatpush2.msra.mxu0 0.0
      %3353 = vmatprep.subr.mxu0 0.0
      %3354 = vmatpush2.msra.mxu0 0.0
      %3355 = vmatprep.subr.mxu0 0.0
      %3356 = vmatpush2.msra.mxu0 0.0
      %3357 = vmatprep.subr.mxu0 0.0
      %3358 = vmatpush2.msra.mxu0 0.0
      %3359 = vmatprep.subr.mxu0 0.0
      %3360 = vmatpush2.msra.mxu0 0.0
      %3361 = vmatprep.subr.mxu0 0.0
      %3362 = vmatpush2.msra.mxu0 0.0
      %3363 = vmatprep.subr.mxu0 0.0
      %3364 = vmatpush2.msra.mxu0 0.0
      %3365 = vmatprep.subr.mxu0 0.0
      %3366 = vmatpush2.msra.mxu0 0.0
      %3367 = vmatprep.mubr.f32.mxu0 0.0
      %3368 = vmatmul.mubr.f32.gmra.mxu0 %v3208
      %v3369 = vpop.f32.mrf.mxu0
      %v3370 = vadd.f32 0.0, %v3369
      %v3371 = vpop.f32.mrf.mxu0
      %3372 = vmatprep.mubr.f32.mxu0 0.0
      %3373 = vmatmul.mubr.f32.gmra.mxu0 %v3211
      %v3374 = vpop.f32.mrf.mxu0
      %v3375 = vadd.f32 0.0, %v3374
      %v3376 = vpop.f32.mrf.mxu0
      %3377 = vmatprep.mubr.f32.mxu0 0.0
      %3378 = vmatmul.mubr.f32.gmra.mxu0 %v3214
      %v3379 = vpop.f32.mrf.mxu0
      %v3380 = vadd.f32 0.0, %v3379
      %v3381 = vpop.f32.mrf.mxu0
      %3382 = vmatprep.mubr.f32.mxu0 0.0
      %3383 = vmatmul.mubr.f32.gmra.mxu0 %v3217
      %v3384 = vpop.f32.mrf.mxu0
      %v3385 = vadd.f32 0.0, %v3384
      %v3386 = vpop.f32.mrf.mxu0
      %3387 = vmatprep.mubr.f32.mxu0 0.0
      %3388 = vmatmul.mubr.f32.gmra.mxu0 %v3220
      %v3389 = vpop.f32.mrf.mxu0
      %v3390 = vadd.f32 0.0, %v3389
      %v3391 = vpop.f32.mrf.mxu0
      %3392 = vmatprep.mubr.f32.mxu0 0.0
      %3393 = vmatmul.mubr.f32.gmra.mxu0 %v3223
      %v3394 = vpop.f32.mrf.mxu0
      %v3395 = vadd.f32 0.0, %v3394
      %v3396 = vpop.f32.mrf.mxu0
      %3397 = vmatprep.mubr.f32.mxu0 0.0
      %3398 = vmatmul.mubr.f32.gmra.mxu0 %v3226
      %v3399 = vpop.f32.mrf.mxu0
      %v3400 = vadd.f32 0.0, %v3399
      %v3401 = vpop.f32.mrf.mxu0
      %3402 = vmatprep.mubr.f32.mxu0 0.0
      %3403 = vmatmul.mubr.f32.gmra.mxu0 %v3229
      %v3404 = vpop.f32.mrf.mxu0
      %v3405 = vadd.f32 0.0, %v3404
      %v3406 = vpop.f32.mrf.mxu0
      %3407 = vmatprep.mubr.f32.mxu0 0.0
      %3408 = vmatmul.mubr.f32.gmra.mxu0 %v3232
      %v3409 = vpop.f32.mrf.mxu0
      %v3410 = vadd.f32 0.0, %v3409
      %v3411 = vpop.f32.mrf.mxu0
      %3412 = vmatprep.mubr.f32.mxu0 0.0
      %3413 = vmatmul.mubr.f32.gmra.mxu0 %v3235
      %v3414 = vpop.f32.mrf.mxu0
      %v3415 = vadd.f32 0.0, %v3414
      %v3416 = vpop.f32.mrf.mxu0
      %3417 = vmatprep.mubr.f32.mxu0 0.0
      %3418 = vmatmul.mubr.f32.gmra.mxu0 %v3238
      %v3419 = vpop.f32.mrf.mxu0
      %v3420 = vadd.f32 0.0, %v3419
      %v3421 = vpop.f32.mrf.mxu0
      %3422 = vmatprep.mubr.f32.mxu0 0.0
      %3423 = vmatmul.mubr.f32.gmra.mxu0 %v3241
      %v3424 = vpop.f32.mrf.mxu0
      %v3425 = vadd.f32 0.0, %v3424
      %v3426 = vpop.f32.mrf.mxu0
      %3427 = vmatprep.mubr.f32.mxu0 0.0
      %3428 = vmatmul.mubr.f32.gmra.mxu0 %v3244
      %v3429 = vpop.f32.mrf.mxu0
      %v3430 = vadd.f32 0.0, %v3429
      %v3431 = vpop.f32.mrf.mxu0
      %3432 = vmatprep.mubr.f32.mxu0 0.0
      %3433 = vmatmul.mubr.f32.gmra.mxu0 %v3247
      %v3434 = vpop.f32.mrf.mxu0
      %v3435 = vadd.f32 0.0, %v3434
      %v3436 = vpop.f32.mrf.mxu0
      %3437 = vmatprep.mubr.f32.mxu0 0.0
      %3438 = vmatmul.mubr.f32.gmra.mxu0 %v3250
      %v3439 = vpop.f32.mrf.mxu0
      %v3440 = vadd.f32 0.0, %v3439
      %v3441 = vpop.f32.mrf.mxu0
      %3442 = vmatprep.mubr.f32.mxu0 0.0
      %3443 = vmatmul.mubr.f32.gmra.mxu0 %v3253
      %v3444 = vpop.f32.mrf.mxu0
      %v3445 = vadd.f32 0.0, %v3444
      %v3446 = vpop.f32.mrf.mxu0
      %3447 = vmatprep.mubr.f32.mxu0 0.0
      %3448 = vmatmul.mubr.f32.gmra.mxu0 %v3256
      %v3449 = vpop.f32.mrf.mxu0
      %v3450 = vadd.f32 0.0, %v3449
      %v3451 = vpop.f32.mrf.mxu0
      %3452 = vmatprep.mubr.f32.mxu0 0.0
      %3453 = vmatmul.mubr.f32.gmra.mxu0 %v3259
      %v3454 = vpop.f32.mrf.mxu0
      %v3455 = vadd.f32 0.0, %v3454
      %v3456 = vpop.f32.mrf.mxu0
      %3457 = vmatprep.mubr.f32.mxu0 0.0
      %3458 = vmatmul.mubr.f32.gmra.mxu0 %v3262
      %v3459 = vpop.f32.mrf.mxu0
      %v3460 = vadd.f32 0.0, %v3459
      %v3461 = vpop.f32.mrf.mxu0
      %3462 = vmatprep.mubr.f32.mxu0 0.0
      %3463 = vmatmul.mubr.f32.gmra.mxu0 %v3265
      %v3464 = vpop.f32.mrf.mxu0
      %v3465 = vadd.f32 0.0, %v3464
      %v3466 = vpop.f32.mrf.mxu0
      %3467 = vmatprep.mubr.f32.mxu0 0.0
      %3468 = vmatmul.mubr.f32.gmra.mxu0 %v3268
      %v3469 = vpop.f32.mrf.mxu0
      %v3470 = vadd.f32 0.0, %v3469
      %v3471 = vpop.f32.mrf.mxu0
      %3472 = vmatprep.mubr.f32.mxu0 0.0
      %3473 = vmatmul.mubr.f32.gmra.mxu0 %v3271
      %v3474 = vpop.f32.mrf.mxu0
      %v3475 = vadd.f32 0.0, %v3474
      %v3476 = vpop.f32.mrf.mxu0
      %3477 = vmatprep.mubr.f32.mxu0 0.0
      %3478 = vmatmul.mubr.f32.gmra.mxu0 %v3274
      %v3479 = vpop.f32.mrf.mxu0
      %v3480 = vadd.f32 0.0, %v3479
      %v3481 = vpop.f32.mrf.mxu0
      %3482 = vmatprep.mubr.f32.mxu0 0.0
      %3483 = vmatmul.mubr.f32.gmra.mxu0 %v3277
      %v3484 = vpop.f32.mrf.mxu0
      %v3485 = vadd.f32 0.0, %v3484
      %v3486 = vpop.f32.mrf.mxu0
      %3487 = vmatprep.mubr.f32.mxu0 0.0
      %3488 = vmatmul.mubr.f32.gmra.mxu0 %v3280
      %v3489 = vpop.f32.mrf.mxu0
      %v3490 = vadd.f32 0.0, %v3489
      %v3491 = vpop.f32.mrf.mxu0
      %3492 = vmatprep.mubr.f32.mxu0 0.0
      %3493 = vmatmul.mubr.f32.gmra.mxu0 %v3283
      %v3494 = vpop.f32.mrf.mxu0
      %v3495 = vadd.f32 0.0, %v3494
      %v3496 = vpop.f32.mrf.mxu0
      %3497 = vmatprep.mubr.f32.mxu0 0.0
      %3498 = vmatmul.mubr.f32.gmra.mxu0 %v3286
      %v3499 = vpop.f32.mrf.mxu0
      %v3500 = vadd.f32 0.0, %v3499
      %v3501 = vpop.f32.mrf.mxu0
      %3502 = vmatprep.mubr.f32.mxu0 0.0
      %3503 = vmatmul.mubr.f32.gmra.mxu0 %v3289
      %v3504 = vpop.f32.mrf.mxu0
      %v3505 = vadd.f32 0.0, %v3504
      %v3506 = vpop.f32.mrf.mxu0
      %3507 = vmatprep.mubr.f32.mxu0 0.0
      %3508 = vmatmul.mubr.f32.gmra.mxu0 %v3292
      %v3509 = vpop.f32.mrf.mxu0
      %v3510 = vadd.f32 0.0, %v3509
      %v3511 = vpop.f32.mrf.mxu0
      %3512 = vmatprep.mubr.f32.mxu0 0.0
      %3513 = vmatmul.mubr.f32.gmra.mxu0 %v3295
      %v3514 = vpop.f32.mrf.mxu0
      %v3515 = vadd.f32 0.0, %v3514
      %v3516 = vpop.f32.mrf.mxu0
      %3517 = vmatprep.mubr.f32.mxu0 0.0
      %3518 = vmatmul.mubr.f32.gmra.mxu0 %v3298
      %v3519 = vpop.f32.mrf.mxu0
      %v3520 = vadd.f32 0.0, %v3519
      %v3521 = vpop.f32.mrf.mxu0
      %3522 = vmatprep.mubr.f32.mxu0 0.0
      %3523 = vmatmul.mubr.f32.gmra.mxu0 %v3301
      %v3524 = vpop.f32.mrf.mxu0
      %v3525 = vadd.f32 0.0, %v3524
      %v3526 = vpop.f32.mrf.mxu0
      %3527 = vdwg.mxu0
      %s3528 = scalar_lea.vmem %s1, 48
      %v3529 = vld [vmem:[%s3528] sm:$0xff]
      %v3530 = vld [vmem:[%s3528 + $0x8] sm:$0xff]
      %3531 = vrot.lane.b32.xlu0 %v3172, 120
      %v3532 = vpop.permute.xlu0 %3531
      %3533 = vrot.lane.b32.xlu0 %v3173, 120
      %v3534 = vpop.permute.xlu0 %3533
      %3535 = vrot.lane.b32.xlu0 %v3174, 120
      %v3536 = vpop.permute.xlu0 %3535
      %3537 = vrot.lane.b32.xlu0 %v3175, 120
      %v3538 = vpop.permute.xlu0 %3537
      %3539 = vrot.lane.b32.xlu0 %v3176, 120
      %v3540 = vpop.permute.xlu0 %3539
      %3541 = vrot.lane.b32.xlu0 %v3177, 120
      %v3542 = vpop.permute.xlu0 %3541
      %3543 = vrot.lane.b32.xlu0 %v3178, 120
      %v3544 = vpop.permute.xlu0 %3543
      %3545 = vrot.lane.b32.xlu0 %v3179, 120
      %v3546 = vpop.permute.xlu0 %3545
      %3547 = vrot.lane.b32.xlu0 %v3180, 120
      %v3548 = vpop.permute.xlu0 %3547
      %3549 = vrot.lane.b32.xlu0 %v3181, 120
      %v3550 = vpop.permute.xlu0 %3549
      %3551 = vrot.lane.b32.xlu0 %v3182, 120
      %v3552 = vpop.permute.xlu0 %3551
      %3553 = vrot.lane.b32.xlu0 %v3183, 120
      %v3554 = vpop.permute.xlu0 %3553
      %3555 = vrot.lane.b32.xlu0 %v3184, 120
      %v3556 = vpop.permute.xlu0 %3555
      %3557 = vrot.lane.b32.xlu0 %v3185, 120
      %v3558 = vpop.permute.xlu0 %3557
      %3559 = vrot.lane.b32.xlu0 %v3186, 120
      %v3560 = vpop.permute.xlu0 %3559
      %3561 = vrot.lane.b32.xlu0 %v3187, 120
      %v3562 = vpop.permute.xlu0 %3561
      %3563 = vrot.lane.b32.xlu0 %v3188, 120
      %v3564 = vpop.permute.xlu0 %3563
      %3565 = vrot.lane.b32.xlu0 %v3189, 120
      %v3566 = vpop.permute.xlu0 %3565
      %3567 = vrot.lane.b32.xlu0 %v3190, 120
      %v3568 = vpop.permute.xlu0 %3567
      %3569 = vrot.lane.b32.xlu0 %v3191, 120
      %v3570 = vpop.permute.xlu0 %3569
      %3571 = vrot.lane.b32.xlu0 %v3192, 120
      %v3572 = vpop.permute.xlu0 %3571
      %3573 = vrot.lane.b32.xlu0 %v3193, 120
      %v3574 = vpop.permute.xlu0 %3573
      %3575 = vrot.lane.b32.xlu0 %v3194, 120
      %v3576 = vpop.permute.xlu0 %3575
      %3577 = vrot.lane.b32.xlu0 %v3195, 120
      %v3578 = vpop.permute.xlu0 %3577
      %3579 = vrot.lane.b32.xlu0 %v3196, 120
      %v3580 = vpop.permute.xlu0 %3579
      %3581 = vrot.lane.b32.xlu0 %v3197, 120
      %v3582 = vpop.permute.xlu0 %3581
      %3583 = vrot.lane.b32.xlu0 %v3198, 120
      %v3584 = vpop.permute.xlu0 %3583
      %3585 = vrot.lane.b32.xlu0 %v3199, 120
      %v3586 = vpop.permute.xlu0 %3585
      %3587 = vrot.lane.b32.xlu0 %v3200, 120
      %v3588 = vpop.permute.xlu0 %3587
      %3589 = vrot.lane.b32.xlu0 %v3201, 120
      %v3590 = vpop.permute.xlu0 %3589
      %3591 = vrot.lane.b32.xlu0 %v3202, 120
      %v3592 = vpop.permute.xlu0 %3591
      %3593 = vrot.lane.b32.xlu0 %v3203, 120
      %v3594 = vpop.permute.xlu0 %3593
      %v3595 = vsel %vm1237, %v3532, 0
      %v3597 = vsel %vm1237, %v3534, 0
      %v3599 = vsel %vm1237, %v3536, 0
      %v3601 = vsel %vm1237, %v3538, 0
      %v3603 = vsel %vm1237, %v3540, 0
      %v3605 = vsel %vm1237, %v3542, 0
      %v3607 = vsel %vm1237, %v3544, 0
      %v3609 = vsel %vm1237, %v3546, 0
      %v3611 = vsel %vm1237, %v3548, 0
      %v3613 = vsel %vm1237, %v3550, 0
      %v3615 = vsel %vm1237, %v3552, 0
      %v3617 = vsel %vm1237, %v3554, 0
      %v3619 = vsel %vm1237, %v3556, 0
      %v3621 = vsel %vm1237, %v3558, 0
      %v3623 = vsel %vm1237, %v3560, 0
      %v3625 = vsel %vm1237, %v3562, 0
      %v3627 = vsel %vm1237, %v3564, 0
      %v3629 = vsel %vm1237, %v3566, 0
      %v3631 = vsel %vm1237, %v3568, 0
      %v3633 = vsel %vm1237, %v3570, 0
      %v3635 = vsel %vm1237, %v3572, 0
      %v3637 = vsel %vm1237, %v3574, 0
      %v3639 = vsel %vm1237, %v3576, 0
      %v3641 = vsel %vm1237, %v3578, 0
      %v3643 = vsel %vm1237, %v3580, 0
      %v3645 = vsel %vm1237, %v3582, 0
      %v3647 = vsel %vm1237, %v3584, 0
      %v3649 = vsel %vm1237, %v3586, 0
      %v3651 = vsel %vm1237, %v3588, 0
      %v3653 = vsel %vm1237, %v3590, 0
      %v3655 = vsel %vm1237, %v3592, 0
      %v3657 = vsel %vm1237, %v3594, 0
      %3659 = vmatprep.subr.mxu0 0.0
      %3660 = vmatpush1.msra.mxu0 0.0
      %3661 = vmatprep.subr.mxu0 0.0
      %3662 = vmatpush1.msra.mxu0 0.0
      %3663 = vmatprep.subr.mxu0 0.0
      %3664 = vmatpush1.msra.mxu0 0.0
      %3665 = vmatprep.subr.mxu0 0.0
      %3666 = vmatpush1.msra.mxu0 0.0
      %3667 = vmatprep.subr.mxu0 0.0
      %3668 = vmatpush1.msra.mxu0 0.0
      %3669 = vmatprep.subr.mxu0 0.0
      %3670 = vmatpush1.msra.mxu0 0.0
      %3671 = vmatprep.subr.mxu0 0.0
      %3672 = vmatpush1.msra.mxu0 0.0
      %3673 = vmatprep.subr.mxu0 0.0
      %3674 = vmatpush1.msra.mxu0 0.0
      %3675 = vmatprep.subr.mxu0 0.0
      %3676 = vmatpush1.msra.mxu0 0.0
      %3677 = vmatprep.subr.mxu0 0.0
      %3678 = vmatpush1.msra.mxu0 0.0
      %3679 = vmatprep.subr.mxu0 0.0
      %3680 = vmatpush1.msra.mxu0 0.0
      %3681 = vmatprep.subr.mxu0 0.0
      %3682 = vmatpush1.msra.mxu0 0.0
      %3683 = vmatprep.subr.mxu0 0.0
      %3684 = vmatpush1.msra.mxu0 0.0
      %3685 = vmatprep.subr.mxu0 0.0
      %3686 = vmatpush1.msra.mxu0 0.0
      %3687 = vmatprep.subr.mxu0 0.0
      %3688 = vmatpush1.msra.mxu0 %v3530
      %3689 = vmatprep.subr.mxu0 0.0
      %3690 = vmatpush1.msra.mxu0 %v3529
      %3691 = vmatprep.subr.mxu0 0.0
      %3692 = vmatpush2.msra.mxu0 0.0
      %3693 = vmatprep.subr.mxu0 0.0
      %3694 = vmatpush2.msra.mxu0 0.0
      %3695 = vmatprep.subr.mxu0 0.0
      %3696 = vmatpush2.msra.mxu0 0.0
      %3697 = vmatprep.subr.mxu0 0.0
      %3698 = vmatpush2.msra.mxu0 0.0
      %3699 = vmatprep.subr.mxu0 0.0
      %3700 = vmatpush2.msra.mxu0 0.0
      %3701 = vmatprep.subr.mxu0 0.0
      %3702 = vmatpush2.msra.mxu0 0.0
      %3703 = vmatprep.subr.mxu0 0.0
      %3704 = vmatpush2.msra.mxu0 0.0
      %3705 = vmatprep.subr.mxu0 0.0
      %3706 = vmatpush2.msra.mxu0 0.0
      %3707 = vmatprep.subr.mxu0 0.0
      %3708 = vmatpush2.msra.mxu0 0.0
      %3709 = vmatprep.subr.mxu0 0.0
      %3710 = vmatpush2.msra.mxu0 0.0
      %3711 = vmatprep.subr.mxu0 0.0
      %3712 = vmatpush2.msra.mxu0 0.0
      %3713 = vmatprep.subr.mxu0 0.0
      %3714 = vmatpush2.msra.mxu0 0.0
      %3715 = vmatprep.subr.mxu0 0.0
      %3716 = vmatpush2.msra.mxu0 0.0
      %3717 = vmatprep.subr.mxu0 0.0
      %3718 = vmatpush2.msra.mxu0 0.0
      %3719 = vmatprep.subr.mxu0 0.0
      %3720 = vmatpush2.msra.mxu0 0.0
      %3721 = vmatprep.subr.mxu0 0.0
      %3722 = vmatpush2.msra.mxu0 0.0
      %3723 = vmatprep.mubr.f32.mxu0 0.0
      %3724 = vmatmul.mubr.f32.gmra.mxu0 %v3595
      %v3725 = vpop.f32.mrf.mxu0
      %v3726 = vadd.f32 0.0, %v3725
      %v3727 = vpop.f32.mrf.mxu0
      %3728 = vmatprep.mubr.f32.mxu0 0.0
      %3729 = vmatmul.mubr.f32.gmra.mxu0 %v3597
      %v3730 = vpop.f32.mrf.mxu0
      %v3731 = vadd.f32 0.0, %v3730
      %v3732 = vpop.f32.mrf.mxu0
      %3733 = vmatprep.mubr.f32.mxu0 0.0
      %3734 = vmatmul.mubr.f32.gmra.mxu0 %v3599
      %v3735 = vpop.f32.mrf.mxu0
      %v3736 = vadd.f32 0.0, %v3735
      %v3737 = vpop.f32.mrf.mxu0
      %3738 = vmatprep.mubr.f32.mxu0 0.0
      %3739 = vmatmul.mubr.f32.gmra.mxu0 %v3601
      %v3740 = vpop.f32.mrf.mxu0
      %v3741 = vadd.f32 0.0, %v3740
      %v3742 = vpop.f32.mrf.mxu0
      %3743 = vmatprep.mubr.f32.mxu0 0.0
      %3744 = vmatmul.mubr.f32.gmra.mxu0 %v3603
      %v3745 = vpop.f32.mrf.mxu0
      %v3746 = vadd.f32 0.0, %v3745
      %v3747 = vpop.f32.mrf.mxu0
      %3748 = vmatprep.mubr.f32.mxu0 0.0
      %3749 = vmatmul.mubr.f32.gmra.mxu0 %v3605
      %v3750 = vpop.f32.mrf.mxu0
      %v3751 = vadd.f32 0.0, %v3750
      %v3752 = vpop.f32.mrf.mxu0
      %3753 = vmatprep.mubr.f32.mxu0 0.0
      %3754 = vmatmul.mubr.f32.gmra.mxu0 %v3607
      %v3755 = vpop.f32.mrf.mxu0
      %v3756 = vadd.f32 0.0, %v3755
      %v3757 = vpop.f32.mrf.mxu0
      %3758 = vmatprep.mubr.f32.mxu0 0.0
      %3759 = vmatmul.mubr.f32.gmra.mxu0 %v3609
      %v3760 = vpop.f32.mrf.mxu0
      %v3761 = vadd.f32 0.0, %v3760
      %v3762 = vpop.f32.mrf.mxu0
      %3763 = vmatprep.mubr.f32.mxu0 0.0
      %3764 = vmatmul.mubr.f32.gmra.mxu0 %v3611
      %v3765 = vpop.f32.mrf.mxu0
      %v3766 = vadd.f32 0.0, %v3765
      %v3767 = vpop.f32.mrf.mxu0
      %3768 = vmatprep.mubr.f32.mxu0 0.0
      %3769 = vmatmul.mubr.f32.gmra.mxu0 %v3613
      %v3770 = vpop.f32.mrf.mxu0
      %v3771 = vadd.f32 0.0, %v3770
      %v3772 = vpop.f32.mrf.mxu0
      %3773 = vmatprep.mubr.f32.mxu0 0.0
      %3774 = vmatmul.mubr.f32.gmra.mxu0 %v3615
      %v3775 = vpop.f32.mrf.mxu0
      %v3776 = vadd.f32 0.0, %v3775
      %v3777 = vpop.f32.mrf.mxu0
      %3778 = vmatprep.mubr.f32.mxu0 0.0
      %3779 = vmatmul.mubr.f32.gmra.mxu0 %v3617
      %v3780 = vpop.f32.mrf.mxu0
      %v3781 = vadd.f32 0.0, %v3780
      %v3782 = vpop.f32.mrf.mxu0
      %3783 = vmatprep.mubr.f32.mxu0 0.0
      %3784 = vmatmul.mubr.f32.gmra.mxu0 %v3619
      %v3785 = vpop.f32.mrf.mxu0
      %v3786 = vadd.f32 0.0, %v3785
      %v3787 = vpop.f32.mrf.mxu0
      %3788 = vmatprep.mubr.f32.mxu0 0.0
      %3789 = vmatmul.mubr.f32.gmra.mxu0 %v3621
      %v3790 = vpop.f32.mrf.mxu0
      %v3791 = vadd.f32 0.0, %v3790
      %v3792 = vpop.f32.mrf.mxu0
      %3793 = vmatprep.mubr.f32.mxu0 0.0
      %3794 = vmatmul.mubr.f32.gmra.mxu0 %v3623
      %v3795 = vpop.f32.mrf.mxu0
      %v3796 = vadd.f32 0.0, %v3795
      %v3797 = vpop.f32.mrf.mxu0
      %3798 = vmatprep.mubr.f32.mxu0 0.0
      %3799 = vmatmul.mubr.f32.gmra.mxu0 %v3625
      %v3800 = vpop.f32.mrf.mxu0
      %v3801 = vadd.f32 0.0, %v3800
      %v3802 = vpop.f32.mrf.mxu0
      %3803 = vmatprep.mubr.f32.mxu0 0.0
      %3804 = vmatmul.mubr.f32.gmra.mxu0 %v3627
      %v3805 = vpop.f32.mrf.mxu0
      %v3806 = vadd.f32 0.0, %v3805
      %v3807 = vpop.f32.mrf.mxu0
      %3808 = vmatprep.mubr.f32.mxu0 0.0
      %3809 = vmatmul.mubr.f32.gmra.mxu0 %v3629
      %v3810 = vpop.f32.mrf.mxu0
      %v3811 = vadd.f32 0.0, %v3810
      %v3812 = vpop.f32.mrf.mxu0
      %3813 = vmatprep.mubr.f32.mxu0 0.0
      %3814 = vmatmul.mubr.f32.gmra.mxu0 %v3631
      %v3815 = vpop.f32.mrf.mxu0
      %v3816 = vadd.f32 0.0, %v3815
      %v3817 = vpop.f32.mrf.mxu0
      %3818 = vmatprep.mubr.f32.mxu0 0.0
      %3819 = vmatmul.mubr.f32.gmra.mxu0 %v3633
      %v3820 = vpop.f32.mrf.mxu0
      %v3821 = vadd.f32 0.0, %v3820
      %v3822 = vpop.f32.mrf.mxu0
      %3823 = vmatprep.mubr.f32.mxu0 0.0
      %3824 = vmatmul.mubr.f32.gmra.mxu0 %v3635
      %v3825 = vpop.f32.mrf.mxu0
      %v3826 = vadd.f32 0.0, %v3825
      %v3827 = vpop.f32.mrf.mxu0
      %3828 = vmatprep.mubr.f32.mxu0 0.0
      %3829 = vmatmul.mubr.f32.gmra.mxu0 %v3637
      %v3830 = vpop.f32.mrf.mxu0
      %v3831 = vadd.f32 0.0, %v3830
      %v3832 = vpop.f32.mrf.mxu0
      %3833 = vmatprep.mubr.f32.mxu0 0.0
      %3834 = vmatmul.mubr.f32.gmra.mxu0 %v3639
      %v3835 = vpop.f32.mrf.mxu0
      %v3836 = vadd.f32 0.0, %v3835
      %v3837 = vpop.f32.mrf.mxu0
      %3838 = vmatprep.mubr.f32.mxu0 0.0
      %3839 = vmatmul.mubr.f32.gmra.mxu0 %v3641
      %v3840 = vpop.f32.mrf.mxu0
      %v3841 = vadd.f32 0.0, %v3840
      %v3842 = vpop.f32.mrf.mxu0
      %3843 = vmatprep.mubr.f32.mxu0 0.0
      %3844 = vmatmul.mubr.f32.gmra.mxu0 %v3643
      %v3845 = vpop.f32.mrf.mxu0
      %v3846 = vadd.f32 0.0, %v3845
      %v3847 = vpop.f32.mrf.mxu0
      %3848 = vmatprep.mubr.f32.mxu0 0.0
      %3849 = vmatmul.mubr.f32.gmra.mxu0 %v3645
      %v3850 = vpop.f32.mrf.mxu0
      %v3851 = vadd.f32 0.0, %v3850
      %v3852 = vpop.f32.mrf.mxu0
      %3853 = vmatprep.mubr.f32.mxu0 0.0
      %3854 = vmatmul.mubr.f32.gmra.mxu0 %v3647
      %v3855 = vpop.f32.mrf.mxu0
      %v3856 = vadd.f32 0.0, %v3855
      %v3857 = vpop.f32.mrf.mxu0
      %3858 = vmatprep.mubr.f32.mxu0 0.0
      %3859 = vmatmul.mubr.f32.gmra.mxu0 %v3649
      %v3860 = vpop.f32.mrf.mxu0
      %v3861 = vadd.f32 0.0, %v3860
      %v3862 = vpop.f32.mrf.mxu0
      %3863 = vmatprep.mubr.f32.mxu0 0.0
      %3864 = vmatmul.mubr.f32.gmra.mxu0 %v3651
      %v3865 = vpop.f32.mrf.mxu0
      %v3866 = vadd.f32 0.0, %v3865
      %v3867 = vpop.f32.mrf.mxu0
      %3868 = vmatprep.mubr.f32.mxu0 0.0
      %3869 = vmatmul.mubr.f32.gmra.mxu0 %v3653
      %v3870 = vpop.f32.mrf.mxu0
      %v3871 = vadd.f32 0.0, %v3870
      %v3872 = vpop.f32.mrf.mxu0
      %3873 = vmatprep.mubr.f32.mxu0 0.0
      %3874 = vmatmul.mubr.f32.gmra.mxu0 %v3655
      %v3875 = vpop.f32.mrf.mxu0
      %v3876 = vadd.f32 0.0, %v3875
      %v3877 = vpop.f32.mrf.mxu0
      %3878 = vmatprep.mubr.f32.mxu0 0.0
      %3879 = vmatmul.mubr.f32.gmra.mxu0 %v3657
      %v3880 = vpop.f32.mrf.mxu0
      %v3881 = vadd.f32 0.0, %v3880
      %v3882 = vpop.f32.mrf.mxu0
      %3883 = vdwg.mxu0
      %3916 = vrot.lane.b32.xlu0 %v3726, 8
      %v3917 = vpop.permute.xlu0 %3916
      %3918 = vrot.lane.b32.xlu0 %v3731, 8
      %v3919 = vpop.permute.xlu0 %3918
      %3920 = vrot.lane.b32.xlu0 %v3736, 8
      %v3921 = vpop.permute.xlu0 %3920
      %3922 = vrot.lane.b32.xlu0 %v3741, 8
      %v3923 = vpop.permute.xlu0 %3922
      %3924 = vrot.lane.b32.xlu0 %v3746, 8
      %v3925 = vpop.permute.xlu0 %3924
      %3926 = vrot.lane.b32.xlu0 %v3751, 8
      %v3927 = vpop.permute.xlu0 %3926
      %3928 = vrot.lane.b32.xlu0 %v3756, 8
      %v3929 = vpop.permute.xlu0 %3928
      %3930 = vrot.lane.b32.xlu0 %v3761, 8
      %v3931 = vpop.permute.xlu0 %3930
      %3932 = vrot.lane.b32.xlu0 %v3766, 8
      %v3933 = vpop.permute.xlu0 %3932
      %3934 = vrot.lane.b32.xlu0 %v3771, 8
      %v3935 = vpop.permute.xlu0 %3934
      %3936 = vrot.lane.b32.xlu0 %v3776, 8
      %v3937 = vpop.permute.xlu0 %3936
      %3938 = vrot.lane.b32.xlu0 %v3781, 8
      %v3939 = vpop.permute.xlu0 %3938
      %3940 = vrot.lane.b32.xlu0 %v3786, 8
      %v3941 = vpop.permute.xlu0 %3940
      %3942 = vrot.lane.b32.xlu0 %v3791, 8
      %v3943 = vpop.permute.xlu0 %3942
      %3944 = vrot.lane.b32.xlu0 %v3796, 8
      %v3945 = vpop.permute.xlu0 %3944
      %3946 = vrot.lane.b32.xlu0 %v3801, 8
      %v3947 = vpop.permute.xlu0 %3946
      %3948 = vrot.lane.b32.xlu0 %v3806, 8
      %v3949 = vpop.permute.xlu0 %3948
      %3950 = vrot.lane.b32.xlu0 %v3811, 8
      %v3951 = vpop.permute.xlu0 %3950
      %3952 = vrot.lane.b32.xlu0 %v3816, 8
      %v3953 = vpop.permute.xlu0 %3952
      %3954 = vrot.lane.b32.xlu0 %v3821, 8
      %v3955 = vpop.permute.xlu0 %3954
      %3956 = vrot.lane.b32.xlu0 %v3826, 8
      %v3957 = vpop.permute.xlu0 %3956
      %3958 = vrot.lane.b32.xlu0 %v3831, 8
      %v3959 = vpop.permute.xlu0 %3958
      %3960 = vrot.lane.b32.xlu0 %v3836, 8
      %v3961 = vpop.permute.xlu0 %3960
      %3962 = vrot.lane.b32.xlu0 %v3841, 8
      %v3963 = vpop.permute.xlu0 %3962
      %3964 = vrot.lane.b32.xlu0 %v3846, 8
      %v3965 = vpop.permute.xlu0 %3964
      %3966 = vrot.lane.b32.xlu0 %v3851, 8
      %v3967 = vpop.permute.xlu0 %3966
      %3968 = vrot.lane.b32.xlu0 %v3856, 8
      %v3969 = vpop.permute.xlu0 %3968
      %3970 = vrot.lane.b32.xlu0 %v3861, 8
      %v3971 = vpop.permute.xlu0 %3970
      %3972 = vrot.lane.b32.xlu0 %v3866, 8
      %v3973 = vpop.permute.xlu0 %3972
      %3974 = vrot.lane.b32.xlu0 %v3871, 8
      %v3975 = vpop.permute.xlu0 %3974
      %3976 = vrot.lane.b32.xlu0 %v3876, 8
      %v3977 = vpop.permute.xlu0 %3976
      %3978 = vrot.lane.b32.xlu0 %v3881, 8
      %v3979 = vpop.permute.xlu0 %3978
      %v4012 = vsel %vm2043, %v3370, %v3917
      %v4013 = vsel %vm2043, %v3375, %v3919
      %v4014 = vsel %vm2043, %v3380, %v3921
      %v4015 = vsel %vm2043, %v3385, %v3923
      %v4016 = vsel %vm2043, %v3390, %v3925
      %v4017 = vsel %vm2043, %v3395, %v3927
      %v4018 = vsel %vm2043, %v3400, %v3929
      %v4019 = vsel %vm2043, %v3405, %v3931
      %v4020 = vsel %vm2043, %v3410, %v3933
      %v4021 = vsel %vm2043, %v3415, %v3935
      %v4022 = vsel %vm2043, %v3420, %v3937
      %v4023 = vsel %vm2043, %v3425, %v3939
      %v4024 = vsel %vm2043, %v3430, %v3941
      %v4025 = vsel %vm2043, %v3435, %v3943
      %v4026 = vsel %vm2043, %v3440, %v3945
      %v4027 = vsel %vm2043, %v3445, %v3947
      %v4028 = vsel %vm2043, %v3450, %v3949
      %v4029 = vsel %vm2043, %v3455, %v3951
      %v4030 = vsel %vm2043, %v3460, %v3953
      %v4031 = vsel %vm2043, %v3465, %v3955
      %v4032 = vsel %vm2043, %v3470, %v3957
      %v4033 = vsel %vm2043, %v3475, %v3959
      %v4034 = vsel %vm2043, %v3480, %v3961
      %v4035 = vsel %vm2043, %v3485, %v3963
      %v4036 = vsel %vm2043, %v3490, %v3965
      %v4037 = vsel %vm2043, %v3495, %v3967
      %v4038 = vsel %vm2043, %v3500, %v3969
      %v4039 = vsel %vm2043, %v3505, %v3971
      %v4040 = vsel %vm2043, %v3510, %v3973
      %v4041 = vsel %vm2043, %v3515, %v3975
      %v4042 = vsel %vm2043, %v3520, %v3977
      %v4043 = vsel %vm2043, %v3525, %v3979
      %v4044 = vadd.f32 %v4012, %v2080
      %v4045 = vadd.f32 %v4013, %v2080
      %v4046 = vadd.f32 %v4014, %v2080
      %v4047 = vadd.f32 %v4015, %v2080
      %v4048 = vadd.f32 %v4016, %v2080
      %v4049 = vadd.f32 %v4017, %v2080
      %v4050 = vadd.f32 %v4018, %v2080
      %v4051 = vadd.f32 %v4019, %v2080
      %v4052 = vadd.f32 %v4020, %v2080
      %v4053 = vadd.f32 %v4021, %v2080
      %v4054 = vadd.f32 %v4022, %v2080
      %v4055 = vadd.f32 %v4023, %v2080
      %v4056 = vadd.f32 %v4024, %v2080
      %v4057 = vadd.f32 %v4025, %v2080
      %v4058 = vadd.f32 %v4026, %v2080
      %v4059 = vadd.f32 %v4027, %v2080
      %v4060 = vadd.f32 %v4028, %v2080
      %v4061 = vadd.f32 %v4029, %v2080
      %v4062 = vadd.f32 %v4030, %v2080
      %v4063 = vadd.f32 %v4031, %v2080
      %v4064 = vadd.f32 %v4032, %v2080
      %v4065 = vadd.f32 %v4033, %v2080
      %v4066 = vadd.f32 %v4034, %v2080
      %v4067 = vadd.f32 %v4035, %v2080
      %v4068 = vadd.f32 %v4036, %v2080
      %v4069 = vadd.f32 %v4037, %v2080
      %v4070 = vadd.f32 %v4038, %v2080
      %v4071 = vadd.f32 %v4039, %v2080
      %v4072 = vadd.f32 %v4040, %v2080
      %v4073 = vadd.f32 %v4041, %v2080
      %v4074 = vadd.f32 %v4042, %v2080
      %v4075 = vadd.f32 %v4043, %v2080
      %s4076 = scalar_lea.vmem %s170, 256
      %4077 = vst.msk [vmem:[%s4076] sm:$0xff] %vm1237, %v4044
      %4078 = vst.msk [vmem:[%s4076 + $0x8] sm:$0xff] %vm1237, %v4045
      %4079 = vst.msk [vmem:[%s4076 + $0x10] sm:$0xff] %vm1237, %v4046
      %4080 = vst.msk [vmem:[%s4076 + $0x18] sm:$0xff] %vm1237, %v4047
      %4081 = vst.msk [vmem:[%s4076 + $0x20] sm:$0xff] %vm1237, %v4048
      %4082 = vst.msk [vmem:[%s4076 + $0x28] sm:$0xff] %vm1237, %v4049
      %4083 = vst.msk [vmem:[%s4076 + $0x30] sm:$0xff] %vm1237, %v4050
      %4084 = vst.msk [vmem:[%s4076 + $0x38] sm:$0xff] %vm1237, %v4051
      %4085 = vst.msk [vmem:[%s4076 + $0x40] sm:$0xff] %vm1237, %v4052
      %4086 = vst.msk [vmem:[%s4076 + $0x48] sm:$0xff] %vm1237, %v4053
      %4087 = vst.msk [vmem:[%s4076 + $0x50] sm:$0xff] %vm1237, %v4054
      %4088 = vst.msk [vmem:[%s4076 + $0x58] sm:$0xff] %vm1237, %v4055
      %4089 = vst.msk [vmem:[%s4076 + $0x60] sm:$0xff] %vm1237, %v4056
      %4090 = vst.msk [vmem:[%s4076 + $0x68] sm:$0xff] %vm1237, %v4057
      %4091 = vst.msk [vmem:[%s4076 + $0x70] sm:$0xff] %vm1237, %v4058
      %4092 = vst.msk [vmem:[%s4076 + $0x78] sm:$0xff] %vm1237, %v4059
      %4093 = vst.msk [vmem:[%s4076 + $0x80] sm:$0xff] %vm1237, %v4060
      %4094 = vst.msk [vmem:[%s4076 + $0x88] sm:$0xff] %vm1237, %v4061
      %4095 = vst.msk [vmem:[%s4076 + $0x90] sm:$0xff] %vm1237, %v4062
      %4096 = vst.msk [vmem:[%s4076 + $0x98] sm:$0xff] %vm1237, %v4063
      %4097 = vst.msk [vmem:[%s4076 + $0xa0] sm:$0xff] %vm1237, %v4064
      %4098 = vst.msk [vmem:[%s4076 + $0xa8] sm:$0xff] %vm1237, %v4065
      %4099 = vst.msk [vmem:[%s4076 + $0xb0] sm:$0xff] %vm1237, %v4066
      %4100 = vst.msk [vmem:[%s4076 + $0xb8] sm:$0xff] %vm1237, %v4067
      %4101 = vst.msk [vmem:[%s4076 + $0xc0] sm:$0xff] %vm1237, %v4068
      %4102 = vst.msk [vmem:[%s4076 + $0xc8] sm:$0xff] %vm1237, %v4069
      %4103 = vst.msk [vmem:[%s4076 + $0xd0] sm:$0xff] %vm1237, %v4070
      %4104 = vst.msk [vmem:[%s4076 + $0xd8] sm:$0xff] %vm1237, %v4071
      %4105 = vst.msk [vmem:[%s4076 + $0xe0] sm:$0xff] %vm1237, %v4072
      %4106 = vst.msk [vmem:[%s4076 + $0xe8] sm:$0xff] %vm1237, %v4073
      %4107 = vst.msk [vmem:[%s4076 + $0xf0] sm:$0xff] %vm1237, %v4074
      %4108 = vst.msk [vmem:[%s4076 + $0xf8] sm:$0xff] %vm1237, %v4075
      %p4109 = scmp.lt.s32.totalorder %s14, 1
      %s4110 = scalar_select %p4109, %s14, 1
      %s4111 = smul.addr %s4110, 64
      %s4112 = smul.addr %s4111, 8
      %s4113 = scalar_lea.vmem %s3, %s4112
      // Predicated region
      $region33: #{tpu_custom_call.1} parent=31 // pred_check
        %p4114 = pneg %p100
      $region34: #{tpu_custom_call.1} parent=31 // pred_check_branch
        %4116 = sbr.rel (%p4114) target = $region36
      $region35: #{tpu_custom_call.1} parent=31 // pred_region
        _
      $region36: #{tpu_custom_call.1} parent=31 // pred_fallthru
        _
    $region32: #{tpu_custom_call.1} parent=5 // pred_fallthru
      _
    %p4117 = scmp.le.s32.totalorder 2, %s9
    // Predicated region
    $region37: #{tpu_custom_call.1} parent=5 // pred_check
      %p4118 = pneg %p4117
    $region38: #{tpu_custom_call.1} parent=5 // pred_check_branch
      %4120 = sbr.rel (%p4118) target = $region40
    $region39: #{tpu_custom_call.1} parent=5 // pred_region
      %s4121 = ssub.s32 %s9, 2
      // Predicated region
      $region41: #{tpu_custom_call.1} parent=39 // pred_check
        %p4122 = pneg %p106
      $region42: #{tpu_custom_call.1} parent=39 // pred_check_branch
        %4124 = sbr.rel (%p4122) target = $region44
      $region43: #{tpu_custom_call.1} parent=39 // pred_region
        %p4125 = scmp.lt.s32.totalorder %s15, 1
        %s4126 = scalar_select %p4125, %s15, 1
        %s4127 = smul.addr %s4126, 64
        %s4128 = smul.addr %s4127, 8
        %s4129 = scalar_lea.vmem %s3, %s4128
      $region44: #{tpu_custom_call.1} parent=39 // pred_fallthru
        _
    $region40: #{tpu_custom_call.1} parent=5 // pred_fallthru
      _
  $region6: #{tpu_custom_call.1} parent=0 // loop_footer
    %s13 = sadd.s32 1, %s9
  $region7: #{tpu_custom_call.1} parent=0 // loop_footer_branch
    %8 = sbr.rel target = $region3
  $region8: #{tpu_custom_call.1} parent=0 // loop_exit
    _

</llo_original>
